<compile_context>
chip_gen: v7x
topology: tpu7x:2x2x1
jax: 0.10.0
libtpu: 0.0.40
codegen_flags: <defaults>
</compile_context>

<pallas_src>
import functools

import jax
import jax.numpy as jnp
import numpy as np
from jax.experimental import pallas as pl
from jax.experimental.pallas import tpu as pltpu

_TAPS = tuple((dh, dw) for dh in range(3) for dw in range(3))


# =============================================================================
# Fused whole-network kernel (one image per grid step)
# =============================================================================

def _fused_forward_kernel(xp_ref, w1_ref, ep1_ref, w2_ref, ep2_ref,
                          w3_ref, ep3_ref, attw_ref, attb_ref,
                          wf1_ref, bf1_ref, wf2_ref, bf2_ref,
                          o_ref,
                          pad2_ref, pc2_ref, pad3_ref, pc3_ref, fc_in_ref):
    """Refs (per grid step, one image):
      xp_ref  : (1, 256, 9)   f32  conv1 im2col patches (rows = h*16 + w)
      w1_ref  : (9, 32)       f32  conv1 weights (tap-major)
      ep*_ref : (3, Cout)     f32  rows = [conv bias, BN scale, BN shift]
      w2_ref  : (288, 64)     bf16 conv2 weights, rows = (tap, cin)
      w3_ref  : (576, 128)    bf16 conv3 weights
      attw/attb : (1,128)/(1,1) f32  1x1 attention conv
      wf1_ref : (2048, 256)   bf16 fc1, rows pre-permuted to (pos*128 + c)
      wf2_ref : (256, nc)     bf16 fc2
      o_ref   : (1, 1, nc)    f32  logits
      scratch : conv2/conv3 padded inputs + im2col patches + fc input slab
    """
    f32, bf16 = jnp.float32, jnp.bfloat16

    def conv_epilogue(acc, ep):
        # PyTorch block order: Conv(+bias) -> ReLU -> BatchNorm(eval, folded)
        bias, scale, shift = ep[0:1, :], ep[1:2, :], ep[2:3, :]
        return jnp.maximum(acc + bias, 0.0) * scale + shift

    # ---- conv1: 3x3, 1->32 as one (256, 9) @ (9, 32) matmul (f32) ----------
    y1 = jnp.dot(xp_ref[0], w1_ref[...], preferred_element_type=f32)
    y1 = conv_epilogue(y1, ep1_ref[...])                       # (256, 32)

    # ---- MaxPool 16x16 -> 8x8, written into conv2's zero-padded input ------
    pad2_ref[...] = jnp.zeros(pad2_ref.shape, pad2_ref.dtype)
    y1 = y1.reshape(8, 2, 16, 32)                 # (h/2, h%2, w, c) -- free
    yh = jnp.maximum(y1[:, 0], y1[:, 1])          # (8, 16, 32)  h-pooled
    for pw in range(8):                           # w-pooled, column-wise
        pad2_ref[1:9, 1 + pw, :] = jnp.maximum(yh[:, 2 * pw, :],
                                               yh[:, 2 * pw + 1, :])

    # ---- conv2: 3x3, 32->64, patches (64, 288), single K=288 matmul --------
    for k, (dh, dw) in enumerate(_TAPS):
        tap = pad2_ref[dh:dh + 8, dw:dw + 8, :]                  # (8, 8, 32)
        pc2_ref[:, 32 * k:32 * (k + 1)] = tap.reshape(64, 32)
    y2 = jnp.dot(pc2_ref[...].astype(bf16), w2_ref[...],
                 preferred_element_type=f32)
    y2 = conv_epilogue(y2, ep2_ref[...])                        # (64, 64)

    # ---- MaxPool 8x8 -> 4x4, written into conv3's zero-padded input --------
    pad3_ref[...] = jnp.zeros(pad3_ref.shape, pad3_ref.dtype)
    y2 = y2.reshape(4, 2, 8, 64)
    yh = jnp.maximum(y2[:, 0], y2[:, 1])                        # (4, 8, 64)
    for pw in range(4):
        pad3_ref[1:5, 1 + pw, :] = jnp.maximum(yh[:, 2 * pw, :],
                                               yh[:, 2 * pw + 1, :])

    # ---- conv3: 3x3, 64->128, patches (16, 576), single K=576 matmul -------
    for k, (dh, dw) in enumerate(_TAPS):
        for oh in range(4):
            pc3_ref[4 * oh:4 * oh + 4, 64 * k:64 * (k + 1)] = (
                pad3_ref[oh + dh, dw:dw + 4, :])
    y3 = jnp.dot(pc3_ref[...].astype(bf16), w3_ref[...],
                 preferred_element_type=f32)
    y3 = conv_epilogue(y3, ep3_ref[...])                        # (16, 128)
    # AdaptiveAvgPool2d((4, 4)) is the identity on the 16x16 input path.

    # ---- attention: 1x1 conv + sigmoid gate over all 16 positions at once --
    logit = jnp.sum(y3 * attw_ref[...], axis=-1, keepdims=True) + attb_ref[...]
    g = y3 * jax.nn.sigmoid(logit)                              # (16, 128)

    # ---- classifier: pack gated features, single K=2048 fc1, then fc2 ------
    for s in range(16):
        fc_in_ref[0:1, 128 * s:128 * (s + 1)] = g[s:s + 1, :].astype(bf16)
    h = jnp.dot(fc_in_ref[...], wf1_ref[...], preferred_element_type=f32)
    h = jnp.maximum(h + bf1_ref[...], 0.0)                      # (1, 256)
    # Dropout(0.5) is identity in eval mode.
    out = jnp.dot(h.astype(bf16), wf2_ref[...],
                  preferred_element_type=f32) + bf2_ref[...]    # (1, nc)
    # TODO(synk): nc=10 logits are a lane-sparse store; pack if it ever matters.
    o_ref[0] = out


# =============================================================================
# Wrapper: constant-foldable weight prep + one pallas_call
# =============================================================================

def _conv1_im2col(x_bhw):
    """(B, 16, 16) -> (B, 256, 9) 'same' 3x3 patches, rows = h*16 + w."""
    B, H, W = x_bhw.shape
    xpad = jnp.pad(x_bhw, ((0, 0), (1, 1), (1, 1)))
    taps = [xpad[:, dh:dh + H, dw:dw + W] for dh, dw in _TAPS]
    return jnp.stack(taps, axis=-1).reshape(B, H * W, 9)


def forward(params, x_nchw):
    B, cin, H, W = x_nchw.shape
    if (cin, H, W) != (1, 16, 16):
        # TODO(synk): general input sizes need the non-identity
        # AdaptiveAvgPool2d((4,4)) path; the fused kernel is specialized here.
        raise NotImplementedError("fused kernel is specialized to 1x16x16 input")

    def ep(conv, bn):
        scale = params[f'{bn}_g'] / jnp.sqrt(params[f'{bn}_v'] + 1e-5)
        shift = params[f'{bn}_b'] - params[f'{bn}_m'] * scale
        return jnp.stack([params[f'{conv}_b'], scale, shift]).astype(jnp.float32)

    xpat = _conv1_im2col(x_nchw[:, 0].astype(jnp.float32))        # (B, 256, 9)
    w1 = params['conv1_w'].reshape(9, 32).astype(jnp.float32)
    w2 = params['conv2_w'].reshape(288, 64).astype(jnp.bfloat16)
    w3 = params['conv3_w'].reshape(576, 128).astype(jnp.bfloat16)
    attw = params['att_w'].reshape(1, 128).astype(jnp.float32)
    attb = params['att_b'].reshape(1, 1).astype(jnp.float32)
    # fc1 rows: PyTorch NCHW-flatten order (c*16+s) -> position-major (s*128+c)
    # so the kernel's NHWC position slab needs no runtime transpose.
    wf1 = (params['fc1_w'].reshape(128, 16, 256).transpose(1, 0, 2)
           .reshape(2048, 256).astype(jnp.bfloat16))
    bf1 = params['fc1_b'].reshape(1, 256).astype(jnp.float32)
    wf2 = params['fc2_w'].astype(jnp.bfloat16)
    bf2 = params['fc2_b'].reshape(1, -1).astype(jnp.float32)
    nc = wf2.shape[-1]

    out = pl.pallas_call(
        _fused_forward_kernel,
        out_shape=jax.ShapeDtypeStruct((B, 1, nc), jnp.float32),
        grid=(B,),
        in_specs=[
            pl.BlockSpec((1, 256, 9), lambda b: (b, 0, 0)),   # per-image patches
            pl.BlockSpec((9, 32), lambda b: (0, 0)),          # resident weights
            pl.BlockSpec((3, 32), lambda b: (0, 0)),
            pl.BlockSpec((288, 64), lambda b: (0, 0)),
            pl.BlockSpec((3, 64), lambda b: (0, 0)),
            pl.BlockSpec((576, 128), lambda b: (0, 0)),
            pl.BlockSpec((3, 128), lambda b: (0, 0)),
            pl.BlockSpec((1, 128), lambda b: (0, 0)),
            pl.BlockSpec((1, 1), lambda b: (0, 0)),
            pl.BlockSpec((2048, 256), lambda b: (0, 0)),
            pl.BlockSpec((1, 256), lambda b: (0, 0)),
            pl.BlockSpec((256, nc), lambda b: (0, 0)),
            pl.BlockSpec((1, nc), lambda b: (0, 0)),
        ],
        out_specs=pl.BlockSpec((1, 1, nc), lambda b: (b, 0, 0)),
        scratch_shapes=[
            pltpu.VMEM((10, 10, 32), jnp.float32),   # conv2 zero-padded input
            pltpu.VMEM((64, 288), jnp.float32),      # conv2 im2col patches
            pltpu.VMEM((6, 6, 64), jnp.float32),     # conv3 zero-padded input
            pltpu.VMEM((16, 576), jnp.float32),      # conv3 im2col patches
            pltpu.VMEM((1, 2048), jnp.bfloat16),     # gated classifier input
        ],
        compiler_params=pltpu.CompilerParams(
            dimension_semantics=("parallel",)),
    )(xpat, w1, ep('conv1', 'bn1'), w2, ep('conv2', 'bn2'),
      w3, ep('conv3', 'bn3'), attw, attb, wf1, bf1, wf2, bf2)
    return out.reshape(B, nc)


# =============================================================================
# Parameters (deterministic synthetic init — no checkpoint loading)
# =============================================================================

def init_params(key, num_classes=10):
    ks = iter(jax.random.split(key, 32))
    p = {}

    def conv_layer(name, cin, cout):
        p[f'{name}_w'] = jax.random.normal(
            next(ks), (3, 3, cin, cout), jnp.float32) / jnp.sqrt(9.0 * cin)
        p[f'{name}_b'] = 0.01 * jax.random.normal(next(ks), (cout,), jnp.float32)

    def bn_layer(name, c):
        p[f'{name}_g'] = 1.0 + 0.1 * jax.random.normal(next(ks), (c,), jnp.float32)
        p[f'{name}_b'] = 0.1 * jax.random.normal(next(ks), (c,), jnp.float32)
        p[f'{name}_m'] = 0.1 * jax.random.normal(next(ks), (c,), jnp.float32)
        p[f'{name}_v'] = jax.random.uniform(next(ks), (c,), jnp.float32, 0.5, 1.5)

    conv_layer('conv1', 1, 32);   bn_layer('bn1', 32)
    conv_layer('conv2', 32, 64);  bn_layer('bn2', 64)
    conv_layer('conv3', 64, 128); bn_layer('bn3', 128)

    p['att_w'] = jax.random.normal(next(ks), (128,), jnp.float32) / jnp.sqrt(128.0)
    p['att_b'] = 0.01 * jax.random.normal(next(ks), (1,), jnp.float32)

    # fc1_w rows are indexed in PyTorch's NCHW flatten order (c*16 + s).
    p['fc1_w'] = jax.random.normal(next(ks), (128 * 16, 256), jnp.float32) / jnp.sqrt(2048.0)
    p['fc1_b'] = 0.01 * jax.random.normal(next(ks), (256,), jnp.float32)
    p['fc2_w'] = jax.random.normal(next(ks), (256, num_classes), jnp.float32) / jnp.sqrt(256.0)
    p['fc2_b'] = 0.01 * jax.random.normal(next(ks), (num_classes,), jnp.float32)
    return p


# =============================================================================
# Pure-JAX reference (PyTorch eval semantics) and test harness
# =============================================================================

def max_pool_2x2(x):
    B, H, W, C = x.shape
    return x.reshape(B, H // 2, 2, W // 2, 2, C).max(axis=(2, 4))


def adaptive_avg_pool(x, out_h, out_w):
    B, H, W, C = x.shape
    rows = []
    for i in range(out_h):
        h0 = (i * H) // out_h
        h1 = -((-(i + 1) * H) // out_h)
        cols = []
        for j in range(out_w):
            w0 = (j * W) // out_w
            w1 = -((-(j + 1) * W) // out_w)
            cols.append(jnp.mean(x[:, h0:h1, w0:w1, :], axis=(1, 2)))
        rows.append(jnp.stack(cols, axis=1))
    return jnp.stack(rows, axis=1)


def reference_forward(params, x_nchw):
    x = jnp.transpose(x_nchw, (0, 2, 3, 1)).astype(jnp.float32)
    B = x.shape[0]

    def conv3x3(inp, w, b):
        return jax.lax.conv_general_dilated(
            inp, w, window_strides=(1, 1), padding='SAME',
            dimension_numbers=('NHWC', 'HWIO', 'NHWC')) + b

    def block(inp, conv, bn):
        y = jnp.maximum(conv3x3(inp, params[f'{conv}_w'], params[f'{conv}_b']), 0.0)
        return ((y - params[f'{bn}_m']) / jnp.sqrt(params[f'{bn}_v'] + 1e-5)
                * params[f'{bn}_g'] + params[f'{bn}_b'])

    y = max_pool_2x2(block(x, 'conv1', 'bn1'))
    y = max_pool_2x2(block(y, 'conv2', 'bn2'))
    y = adaptive_avg_pool(block(y, 'conv3', 'bn3'), 4, 4)

    logit = jnp.einsum('bhwc,c->bhw', y, params['att_w'])[..., None] + params['att_b']
    y = y * jax.nn.sigmoid(logit)

    flat = jnp.transpose(y, (0, 3, 1, 2)).reshape(B, -1)     # NCHW flatten
    h = jnp.maximum(flat @ params['fc1_w'] + params['fc1_b'], 0.0)
    return h @ params['fc2_w'] + params['fc2_b']


if __name__ == "__main__":
    key = jax.random.PRNGKey(0)
    pkey, xkey = jax.random.split(key)

    params = init_params(pkey, num_classes=10)
    # MNIST-style single-channel input at 16x16: 16 -> pool 8 -> pool 4, so
    # AdaptiveAvgPool2d((4,4)) is the identity on this path.
    x = jax.random.normal(xkey, (2, 1, 16, 16), jnp.float32)

    fwd = jax.jit(functools.partial(forward, params))
    out = fwd(x)
    jax.block_until_ready(out)
    assert out.shape == (2, 10), out.shape

    ref = reference_forward(params, x)
    np.testing.assert_allclose(np.asarray(out), np.asarray(ref),
                               rtol=5e-2, atol=5e-2)

    print("KERNEL_OK")
</pallas_src>

<mosaic_0001>
module attributes {stable_mosaic.version = 11 : i64} {
  func.func @_fused_forward_kernel(%arg0: i32, %arg1: memref<1x256x9xf32, #tpu.memory_space<vmem>>, %arg2: memref<9x32xf32, #tpu.memory_space<vmem>>, %arg3: memref<3x32xf32, #tpu.memory_space<vmem>>, %arg4: memref<288x64xbf16, #tpu.memory_space<vmem>>, %arg5: memref<3x64xf32, #tpu.memory_space<vmem>>, %arg6: memref<576x128xbf16, #tpu.memory_space<vmem>>, %arg7: memref<3x128xf32, #tpu.memory_space<vmem>>, %arg8: memref<1x128xf32, #tpu.memory_space<vmem>>, %arg9: memref<1x1xf32, #tpu.memory_space<vmem>>, %arg10: memref<2048x256xbf16, #tpu.memory_space<vmem>>, %arg11: memref<1x256xf32, #tpu.memory_space<vmem>>, %arg12: memref<256x10xbf16, #tpu.memory_space<vmem>>, %arg13: memref<1x10xf32, #tpu.memory_space<vmem>>, %arg14: memref<1x1x10xf32, #tpu.memory_space<vmem>>, %arg15: memref<10x10x32xf32, #tpu.memory_space<vmem>>, %arg16: memref<64x288xf32, #tpu.memory_space<vmem>>, %arg17: memref<6x6x64xf32, #tpu.memory_space<vmem>>, %arg18: memref<16x576xf32, #tpu.memory_space<vmem>>, %arg19: memref<1x2048xbf16, #tpu.memory_space<vmem>>) attributes {dimension_semantics = [#tpu.dimension_semantics<parallel>], iteration_bounds = array<i64: 2>, scalar_prefetch = 0 : i64, scratch_operands = 5 : i64, tpu.core_type = #tpu.core_type<tc>, window_params = [{transform_indices = @transform_0, window_bounds = array<i64: 1, 256, 9>}, {pipeline_mode = #tpu.pipeline_mode<synchronous>, transform_indices = @transform_1, window_bounds = array<i64: 9, 32>}, {pipeline_mode = #tpu.pipeline_mode<synchronous>, transform_indices = @transform_2, window_bounds = array<i64: 3, 32>}, {pipeline_mode = #tpu.pipeline_mode<synchronous>, transform_indices = @transform_3, window_bounds = array<i64: 288, 64>}, {pipeline_mode = #tpu.pipeline_mode<synchronous>, transform_indices = @transform_4, window_bounds = array<i64: 3, 64>}, {pipeline_mode = #tpu.pipeline_mode<synchronous>, transform_indices = @transform_5, window_bounds = array<i64: 576, 128>}, {pipeline_mode = #tpu.pipeline_mode<synchronous>, transform_indices = @transform_6, window_bounds = array<i64: 3, 128>}, {pipeline_mode = #tpu.pipeline_mode<synchronous>, transform_indices = @transform_7, window_bounds = array<i64: 1, 128>}, {pipeline_mode = #tpu.pipeline_mode<synchronous>, transform_indices = @transform_8, window_bounds = array<i64: 1, 1>}, {pipeline_mode = #tpu.pipeline_mode<synchronous>, transform_indices = @transform_9, window_bounds = array<i64: 2048, 256>}, {pipeline_mode = #tpu.pipeline_mode<synchronous>, transform_indices = @transform_10, window_bounds = array<i64: 1, 256>}, {pipeline_mode = #tpu.pipeline_mode<synchronous>, transform_indices = @transform_11, window_bounds = array<i64: 256, 10>}, {pipeline_mode = #tpu.pipeline_mode<synchronous>, transform_indices = @transform_12, window_bounds = array<i64: 1, 10>}, {transform_indices = @transform_13, window_bounds = array<i64: 1, 1, 10>}]} {
    %c0 = arith.constant 0 : index
    %c0_0 = arith.constant 0 : index
    %c0_1 = arith.constant 0 : index
    %0 = vector.load %arg1[%c0, %c0_0, %c0_1] : memref<1x256x9xf32, #tpu.memory_space<vmem>>, vector<1x256x9xf32>
    %1 = vector.shape_cast %0 : vector<1x256x9xf32> to vector<256x9xf32>
    %c0_2 = arith.constant 0 : index
    %c0_3 = arith.constant 0 : index
    %2 = vector.load %arg2[%c0_2, %c0_3] : memref<9x32xf32, #tpu.memory_space<vmem>>, vector<9x32xf32>
    %cst = arith.constant dense<0.000000e+00> : vector<256x32xf32>
    %3 = tpu.matmul %1, %2, %cst {dimension_numbers = #tpu.dot_dimension_numbers<[1], [0], [0], [1], [0, 0, 1, 1], [], []>} : vector<256x9xf32>, vector<9x32xf32>, vector<256x32xf32> -> vector<256x32xf32>
    %c0_4 = arith.constant 0 : index
    %c0_5 = arith.constant 0 : index
    %4 = vector.load %arg3[%c0_4, %c0_5] : memref<3x32xf32, #tpu.memory_space<vmem>>, vector<3x32xf32>
    %5 = vector.extract_strided_slice %4 {offsets = [0, 0], sizes = [1, 32], strides = [1, 1]} : vector<3x32xf32> to vector<1x32xf32>
    %6 = vector.extract_strided_slice %4 {offsets = [1, 0], sizes = [1, 32], strides = [1, 1]} : vector<3x32xf32> to vector<1x32xf32>
    %7 = vector.extract_strided_slice %4 {offsets = [2, 0], sizes = [1, 32], strides = [1, 1]} : vector<3x32xf32> to vector<1x32xf32>
    %8 = vector.broadcast %5 : vector<1x32xf32> to vector<256x32xf32>
    %9 = arith.addf %3, %8 : vector<256x32xf32>
    %cst_6 = arith.constant 0.000000e+00 : f32
    %10 = vector.broadcast %cst_6 : f32 to vector<256x32xf32>
    %11 = arith.maximumf %9, %10 : vector<256x32xf32>
    %12 = vector.broadcast %6 : vector<1x32xf32> to vector<256x32xf32>
    %13 = arith.mulf %11, %12 : vector<256x32xf32>
    %14 = vector.broadcast %7 : vector<1x32xf32> to vector<256x32xf32>
    %15 = arith.addf %13, %14 : vector<256x32xf32>
    %cst_7 = arith.constant 0.000000e+00 : f32
    %16 = vector.broadcast %cst_7 : f32 to vector<10x10x32xf32>
    %c0_8 = arith.constant 0 : index
    %c0_9 = arith.constant 0 : index
    %c0_10 = arith.constant 0 : index
    %17 = vector.load %arg15[%c0_8, %c0_9, %c0_10] : memref<10x10x32xf32, #tpu.memory_space<vmem>>, vector<10x10x32xf32>
    tpu.vector_store %arg15[%c0_8, %c0_9, %c0_10], %16 {strides = array<i32>} : memref<10x10x32xf32, #tpu.memory_space<vmem>>, vector<10x10x32xf32>,
    %18 = vector.shape_cast %15 : vector<256x32xf32> to vector<8x2x16x32xf32>
    %19 = vector.extract_strided_slice %18 {offsets = [0, 0, 0, 0], sizes = [8, 1, 16, 32], strides = [1, 1, 1, 1]} : vector<8x2x16x32xf32> to vector<8x1x16x32xf32>
    %20 = vector.shape_cast %19 : vector<8x1x16x32xf32> to vector<8x16x32xf32>
    %21 = vector.extract_strided_slice %18 {offsets = [0, 1, 0, 0], sizes = [8, 1, 16, 32], strides = [1, 1, 1, 1]} : vector<8x2x16x32xf32> to vector<8x1x16x32xf32>
    %22 = vector.shape_cast %21 : vector<8x1x16x32xf32> to vector<8x16x32xf32>
    %23 = arith.maximumf %20, %22 : vector<8x16x32xf32>
    %24 = vector.extract_strided_slice %23 {offsets = [0, 0, 0], sizes = [8, 1, 32], strides = [1, 1, 1]} : vector<8x16x32xf32> to vector<8x1x32xf32>
    %25 = vector.shape_cast %24 : vector<8x1x32xf32> to vector<8x32xf32>
    %26 = vector.extract_strided_slice %23 {offsets = [0, 1, 0], sizes = [8, 1, 32], strides = [1, 1, 1]} : vector<8x16x32xf32> to vector<8x1x32xf32>
    %27 = vector.shape_cast %26 : vector<8x1x32xf32> to vector<8x32xf32>
    %28 = arith.maximumf %25, %27 : vector<8x32xf32>
    %c1 = arith.constant 1 : index
    %c1_11 = arith.constant 1 : index
    %c0_12 = arith.constant 0 : index
    %29 = vector.load %arg15[%c1, %c1_11, %c0_12] : memref<10x10x32xf32, #tpu.memory_space<vmem>>, vector<8x1x32xf32>
    %30 = vector.shape_cast %29 : vector<8x1x32xf32> to vector<8x32xf32>
    %31 = vector.shape_cast %28 : vector<8x32xf32> to vector<8x1x32xf32>
    tpu.vector_store %arg15[%c1, %c1_11, %c0_12], %31 {strides = array<i32>} : memref<10x10x32xf32, #tpu.memory_space<vmem>>, vector<8x1x32xf32>,
    %32 = vector.extract_strided_slice %23 {offsets = [0, 2, 0], sizes = [8, 1, 32], strides = [1, 1, 1]} : vector<8x16x32xf32> to vector<8x1x32xf32>
    %33 = vector.shape_cast %32 : vector<8x1x32xf32> to vector<8x32xf32>
    %34 = vector.extract_strided_slice %23 {offsets = [0, 3, 0], sizes = [8, 1, 32], strides = [1, 1, 1]} : vector<8x16x32xf32> to vector<8x1x32xf32>
    %35 = vector.shape_cast %34 : vector<8x1x32xf32> to vector<8x32xf32>
    %36 = arith.maximumf %33, %35 : vector<8x32xf32>
    %c1_13 = arith.constant 1 : index
    %c2 = arith.constant 2 : index
    %c0_14 = arith.constant 0 : index
    %37 = vector.load %arg15[%c1_13, %c2, %c0_14] : memref<10x10x32xf32, #tpu.memory_space<vmem>>, vector<8x1x32xf32>
    %38 = vector.shape_cast %37 : vector<8x1x32xf32> to vector<8x32xf32>
    %39 = vector.shape_cast %36 : vector<8x32xf32> to vector<8x1x32xf32>
    tpu.vector_store %arg15[%c1_13, %c2, %c0_14], %39 {strides = array<i32>} : memref<10x10x32xf32, #tpu.memory_space<vmem>>, vector<8x1x32xf32>,
    %40 = vector.extract_strided_slice %23 {offsets = [0, 4, 0], sizes = [8, 1, 32], strides = [1, 1, 1]} : vector<8x16x32xf32> to vector<8x1x32xf32>
    %41 = vector.shape_cast %40 : vector<8x1x32xf32> to vector<8x32xf32>
    %42 = vector.extract_strided_slice %23 {offsets = [0, 5, 0], sizes = [8, 1, 32], strides = [1, 1, 1]} : vector<8x16x32xf32> to vector<8x1x32xf32>
    %43 = vector.shape_cast %42 : vector<8x1x32xf32> to vector<8x32xf32>
    %44 = arith.maximumf %41, %43 : vector<8x32xf32>
    %c1_15 = arith.constant 1 : index
    %c3 = arith.constant 3 : index
    %c0_16 = arith.constant 0 : index
    %45 = vector.load %arg15[%c1_15, %c3, %c0_16] : memref<10x10x32xf32, #tpu.memory_space<vmem>>, vector<8x1x32xf32>
    %46 = vector.shape_cast %45 : vector<8x1x32xf32> to vector<8x32xf32>
    %47 = vector.shape_cast %44 : vector<8x32xf32> to vector<8x1x32xf32>
    tpu.vector_store %arg15[%c1_15, %c3, %c0_16], %47 {strides = array<i32>} : memref<10x10x32xf32, #tpu.memory_space<vmem>>, vector<8x1x32xf32>,
    %48 = vector.extract_strided_slice %23 {offsets = [0, 6, 0], sizes = [8, 1, 32], strides = [1, 1, 1]} : vector<8x16x32xf32> to vector<8x1x32xf32>
    %49 = vector.shape_cast %48 : vector<8x1x32xf32> to vector<8x32xf32>
    %50 = vector.extract_strided_slice %23 {offsets = [0, 7, 0], sizes = [8, 1, 32], strides = [1, 1, 1]} : vector<8x16x32xf32> to vector<8x1x32xf32>
    %51 = vector.shape_cast %50 : vector<8x1x32xf32> to vector<8x32xf32>
    %52 = arith.maximumf %49, %51 : vector<8x32xf32>
    %c1_17 = arith.constant 1 : index
    %c4 = arith.constant 4 : index
    %c0_18 = arith.constant 0 : index
    %53 = vector.load %arg15[%c1_17, %c4, %c0_18] : memref<10x10x32xf32, #tpu.memory_space<vmem>>, vector<8x1x32xf32>
    %54 = vector.shape_cast %53 : vector<8x1x32xf32> to vector<8x32xf32>
    %55 = vector.shape_cast %52 : vector<8x32xf32> to vector<8x1x32xf32>
    tpu.vector_store %arg15[%c1_17, %c4, %c0_18], %55 {strides = array<i32>} : memref<10x10x32xf32, #tpu.memory_space<vmem>>, vector<8x1x32xf32>,
    %56 = vector.extract_strided_slice %23 {offsets = [0, 8, 0], sizes = [8, 1, 32], strides = [1, 1, 1]} : vector<8x16x32xf32> to vector<8x1x32xf32>
    %57 = vector.shape_cast %56 : vector<8x1x32xf32> to vector<8x32xf32>
    %58 = vector.extract_strided_slice %23 {offsets = [0, 9, 0], sizes = [8, 1, 32], strides = [1, 1, 1]} : vector<8x16x32xf32> to vector<8x1x32xf32>
    %59 = vector.shape_cast %58 : vector<8x1x32xf32> to vector<8x32xf32>
    %60 = arith.maximumf %57, %59 : vector<8x32xf32>
    %c1_19 = arith.constant 1 : index
    %c5 = arith.constant 5 : index
    %c0_20 = arith.constant 0 : index
    %61 = vector.load %arg15[%c1_19, %c5, %c0_20] : memref<10x10x32xf32, #tpu.memory_space<vmem>>, vector<8x1x32xf32>
    %62 = vector.shape_cast %61 : vector<8x1x32xf32> to vector<8x32xf32>
    %63 = vector.shape_cast %60 : vector<8x32xf32> to vector<8x1x32xf32>
    tpu.vector_store %arg15[%c1_19, %c5, %c0_20], %63 {strides = array<i32>} : memref<10x10x32xf32, #tpu.memory_space<vmem>>, vector<8x1x32xf32>,
    %64 = vector.extract_strided_slice %23 {offsets = [0, 10, 0], sizes = [8, 1, 32], strides = [1, 1, 1]} : vector<8x16x32xf32> to vector<8x1x32xf32>
    %65 = vector.shape_cast %64 : vector<8x1x32xf32> to vector<8x32xf32>
    %66 = vector.extract_strided_slice %23 {offsets = [0, 11, 0], sizes = [8, 1, 32], strides = [1, 1, 1]} : vector<8x16x32xf32> to vector<8x1x32xf32>
    %67 = vector.shape_cast %66 : vector<8x1x32xf32> to vector<8x32xf32>
    %68 = arith.maximumf %65, %67 : vector<8x32xf32>
    %c1_21 = arith.constant 1 : index
    %c6 = arith.constant 6 : index
    %c0_22 = arith.constant 0 : index
    %69 = vector.load %arg15[%c1_21, %c6, %c0_22] : memref<10x10x32xf32, #tpu.memory_space<vmem>>, vector<8x1x32xf32>
    %70 = vector.shape_cast %69 : vector<8x1x32xf32> to vector<8x32xf32>
    %71 = vector.shape_cast %68 : vector<8x32xf32> to vector<8x1x32xf32>
    tpu.vector_store %arg15[%c1_21, %c6, %c0_22], %71 {strides = array<i32>} : memref<10x10x32xf32, #tpu.memory_space<vmem>>, vector<8x1x32xf32>,
    %72 = vector.extract_strided_slice %23 {offsets = [0, 12, 0], sizes = [8, 1, 32], strides = [1, 1, 1]} : vector<8x16x32xf32> to vector<8x1x32xf32>
    %73 = vector.shape_cast %72 : vector<8x1x32xf32> to vector<8x32xf32>
    %74 = vector.extract_strided_slice %23 {offsets = [0, 13, 0], sizes = [8, 1, 32], strides = [1, 1, 1]} : vector<8x16x32xf32> to vector<8x1x32xf32>
    %75 = vector.shape_cast %74 : vector<8x1x32xf32> to vector<8x32xf32>
    %76 = arith.maximumf %73, %75 : vector<8x32xf32>
    %c1_23 = arith.constant 1 : index
    %c7 = arith.constant 7 : index
    %c0_24 = arith.constant 0 : index
    %77 = vector.load %arg15[%c1_23, %c7, %c0_24] : memref<10x10x32xf32, #tpu.memory_space<vmem>>, vector<8x1x32xf32>
    %78 = vector.shape_cast %77 : vector<8x1x32xf32> to vector<8x32xf32>
    %79 = vector.shape_cast %76 : vector<8x32xf32> to vector<8x1x32xf32>
    tpu.vector_store %arg15[%c1_23, %c7, %c0_24], %79 {strides = array<i32>} : memref<10x10x32xf32, #tpu.memory_space<vmem>>, vector<8x1x32xf32>,
    %80 = vector.extract_strided_slice %23 {offsets = [0, 14, 0], sizes = [8, 1, 32], strides = [1, 1, 1]} : vector<8x16x32xf32> to vector<8x1x32xf32>
    %81 = vector.shape_cast %80 : vector<8x1x32xf32> to vector<8x32xf32>
    %82 = vector.extract_strided_slice %23 {offsets = [0, 15, 0], sizes = [8, 1, 32], strides = [1, 1, 1]} : vector<8x16x32xf32> to vector<8x1x32xf32>
    %83 = vector.shape_cast %82 : vector<8x1x32xf32> to vector<8x32xf32>
    %84 = arith.maximumf %81, %83 : vector<8x32xf32>
    %c1_25 = arith.constant 1 : index
    %c8 = arith.constant 8 : index
    %c0_26 = arith.constant 0 : index
    %85 = vector.load %arg15[%c1_25, %c8, %c0_26] : memref<10x10x32xf32, #tpu.memory_space<vmem>>, vector<8x1x32xf32>
    %86 = vector.shape_cast %85 : vector<8x1x32xf32> to vector<8x32xf32>
    %87 = vector.shape_cast %84 : vector<8x32xf32> to vector<8x1x32xf32>
    tpu.vector_store %arg15[%c1_25, %c8, %c0_26], %87 {strides = array<i32>} : memref<10x10x32xf32, #tpu.memory_space<vmem>>, vector<8x1x32xf32>,
    %c0_27 = arith.constant 0 : index
    %c0_28 = arith.constant 0 : index
    %c0_29 = arith.constant 0 : index
    %88 = vector.load %arg15[%c0_27, %c0_28, %c0_29] : memref<10x10x32xf32, #tpu.memory_space<vmem>>, vector<8x8x32xf32>
    %89 = vector.shape_cast %88 : vector<8x8x32xf32> to vector<64x32xf32>
    %c0_30 = arith.constant 0 : index
    %c0_31 = arith.constant 0 : index
    %90 = vector.load %arg16[%c0_30, %c0_31] : memref<64x288xf32, #tpu.memory_space<vmem>>, vector<64x32xf32>
    tpu.vector_store %arg16[%c0_30, %c0_31], %89 {strides = array<i32>} : memref<64x288xf32, #tpu.memory_space<vmem>>, vector<64x32xf32>,
    %c0_32 = arith.constant 0 : index
    %c1_33 = arith.constant 1 : index
    %c0_34 = arith.constant 0 : index
    %91 = vector.load %arg15[%c0_32, %c1_33, %c0_34] : memref<10x10x32xf32, #tpu.memory_space<vmem>>, vector<8x8x32xf32>
    %92 = vector.shape_cast %91 : vector<8x8x32xf32> to vector<64x32xf32>
    %c0_35 = arith.constant 0 : index
    %c32 = arith.constant 32 : index
    %93 = vector.load %arg16[%c0_35, %c32] : memref<64x288xf32, #tpu.memory_space<vmem>>, vector<64x32xf32>
    tpu.vector_store %arg16[%c0_35, %c32], %92 {strides = array<i32>} : memref<64x288xf32, #tpu.memory_space<vmem>>, vector<64x32xf32>,
    %c0_36 = arith.constant 0 : index
    %c2_37 = arith.constant 2 : index
    %c0_38 = arith.constant 0 : index
    %94 = vector.load %arg15[%c0_36, %c2_37, %c0_38] : memref<10x10x32xf32, #tpu.memory_space<vmem>>, vector<8x8x32xf32>
    %95 = vector.shape_cast %94 : vector<8x8x32xf32> to vector<64x32xf32>
    %c0_39 = arith.constant 0 : index
    %c64 = arith.constant 64 : index
    %96 = vector.load %arg16[%c0_39, %c64] : memref<64x288xf32, #tpu.memory_space<vmem>>, vector<64x32xf32>
    tpu.vector_store %arg16[%c0_39, %c64], %95 {strides = array<i32>} : memref<64x288xf32, #tpu.memory_space<vmem>>, vector<64x32xf32>,
    %c1_40 = arith.constant 1 : index
    %c0_41 = arith.constant 0 : index
    %c0_42 = arith.constant 0 : index
    %97 = vector.load %arg15[%c1_40, %c0_41, %c0_42] : memref<10x10x32xf32, #tpu.memory_space<vmem>>, vector<8x8x32xf32>
    %98 = vector.shape_cast %97 : vector<8x8x32xf32> to vector<64x32xf32>
    %c0_43 = arith.constant 0 : index
    %c96 = arith.constant 96 : index
    %99 = vector.load %arg16[%c0_43, %c96] : memref<64x288xf32, #tpu.memory_space<vmem>>, vector<64x32xf32>
    tpu.vector_store %arg16[%c0_43, %c96], %98 {strides = array<i32>} : memref<64x288xf32, #tpu.memory_space<vmem>>, vector<64x32xf32>,
    %c1_44 = arith.constant 1 : index
    %c1_45 = arith.constant 1 : index
    %c0_46 = arith.constant 0 : index
    %100 = vector.load %arg15[%c1_44, %c1_45, %c0_46] : memref<10x10x32xf32, #tpu.memory_space<vmem>>, vector<8x8x32xf32>
    %101 = vector.shape_cast %100 : vector<8x8x32xf32> to vector<64x32xf32>
    %c0_47 = arith.constant 0 : index
    %c128 = arith.constant 128 : index
    %102 = vector.load %arg16[%c0_47, %c128] : memref<64x288xf32, #tpu.memory_space<vmem>>, vector<64x32xf32>
    tpu.vector_store %arg16[%c0_47, %c128], %101 {strides = array<i32>} : memref<64x288xf32, #tpu.memory_space<vmem>>, vector<64x32xf32>,
    %c1_48 = arith.constant 1 : index
    %c2_49 = arith.constant 2 : index
    %c0_50 = arith.constant 0 : index
    %103 = vector.load %arg15[%c1_48, %c2_49, %c0_50] : memref<10x10x32xf32, #tpu.memory_space<vmem>>, vector<8x8x32xf32>
    %104 = vector.shape_cast %103 : vector<8x8x32xf32> to vector<64x32xf32>
    %c0_51 = arith.constant 0 : index
    %c160 = arith.constant 160 : index
    %105 = vector.load %arg16[%c0_51, %c160] : memref<64x288xf32, #tpu.memory_space<vmem>>, vector<64x32xf32>
    tpu.vector_store %arg16[%c0_51, %c160], %104 {strides = array<i32>} : memref<64x288xf32, #tpu.memory_space<vmem>>, vector<64x32xf32>,
    %c2_52 = arith.constant 2 : index
    %c0_53 = arith.constant 0 : index
    %c0_54 = arith.constant 0 : index
    %106 = vector.load %arg15[%c2_52, %c0_53, %c0_54] : memref<10x10x32xf32, #tpu.memory_space<vmem>>, vector<8x8x32xf32>
    %107 = vector.shape_cast %106 : vector<8x8x32xf32> to vector<64x32xf32>
    %c0_55 = arith.constant 0 : index
    %c192 = arith.constant 192 : index
    %108 = vector.load %arg16[%c0_55, %c192] : memref<64x288xf32, #tpu.memory_space<vmem>>, vector<64x32xf32>
    tpu.vector_store %arg16[%c0_55, %c192], %107 {strides = array<i32>} : memref<64x288xf32, #tpu.memory_space<vmem>>, vector<64x32xf32>,
    %c2_56 = arith.constant 2 : index
    %c1_57 = arith.constant 1 : index
    %c0_58 = arith.constant 0 : index
    %109 = vector.load %arg15[%c2_56, %c1_57, %c0_58] : memref<10x10x32xf32, #tpu.memory_space<vmem>>, vector<8x8x32xf32>
    %110 = vector.shape_cast %109 : vector<8x8x32xf32> to vector<64x32xf32>
    %c0_59 = arith.constant 0 : index
    %c224 = arith.constant 224 : index
    %111 = vector.load %arg16[%c0_59, %c224] : memref<64x288xf32, #tpu.memory_space<vmem>>, vector<64x32xf32>
    tpu.vector_store %arg16[%c0_59, %c224], %110 {strides = array<i32>} : memref<64x288xf32, #tpu.memory_space<vmem>>, vector<64x32xf32>,
    %c2_60 = arith.constant 2 : index
    %c2_61 = arith.constant 2 : index
    %c0_62 = arith.constant 0 : index
    %112 = vector.load %arg15[%c2_60, %c2_61, %c0_62] : memref<10x10x32xf32, #tpu.memory_space<vmem>>, vector<8x8x32xf32>
    %113 = vector.shape_cast %112 : vector<8x8x32xf32> to vector<64x32xf32>
    %c0_63 = arith.constant 0 : index
    %c256 = arith.constant 256 : index
    %114 = vector.load %arg16[%c0_63, %c256] : memref<64x288xf32, #tpu.memory_space<vmem>>, vector<64x32xf32>
    tpu.vector_store %arg16[%c0_63, %c256], %113 {strides = array<i32>} : memref<64x288xf32, #tpu.memory_space<vmem>>, vector<64x32xf32>,
    %c0_64 = arith.constant 0 : index
    %c0_65 = arith.constant 0 : index
    %115 = vector.load %arg16[%c0_64, %c0_65] : memref<64x288xf32, #tpu.memory_space<vmem>>, vector<64x288xf32>
    %116 = arith.truncf %115 : vector<64x288xf32> to vector<64x288xbf16>
    %c0_66 = arith.constant 0 : index
    %c0_67 = arith.constant 0 : index
    %117 = vector.load %arg4[%c0_66, %c0_67] : memref<288x64xbf16, #tpu.memory_space<vmem>>, vector<288x64xbf16>
    %cst_68 = arith.constant dense<0.000000e+00> : vector<64x64xf32>
    %118 = tpu.matmul %116, %117, %cst_68 {dimension_numbers = #tpu.dot_dimension_numbers<[1], [0], [0], [1], [0, 0, 1, 1], [], []>} : vector<64x288xbf16>, vector<288x64xbf16>, vector<64x64xf32> -> vector<64x64xf32>
    %c0_69 = arith.constant 0 : index
    %c0_70 = arith.constant 0 : index
    %119 = vector.load %arg5[%c0_69, %c0_70] : memref<3x64xf32, #tpu.memory_space<vmem>>, vector<3x64xf32>
    %120 = vector.extract_strided_slice %119 {offsets = [0, 0], sizes = [1, 64], strides = [1, 1]} : vector<3x64xf32> to vector<1x64xf32>
    %121 = vector.extract_strided_slice %119 {offsets = [1, 0], sizes = [1, 64], strides = [1, 1]} : vector<3x64xf32> to vector<1x64xf32>
    %122 = vector.extract_strided_slice %119 {offsets = [2, 0], sizes = [1, 64], strides = [1, 1]} : vector<3x64xf32> to vector<1x64xf32>
    %123 = vector.broadcast %120 : vector<1x64xf32> to vector<64x64xf32>
    %124 = arith.addf %118, %123 : vector<64x64xf32>
    %cst_71 = arith.constant 0.000000e+00 : f32
    %125 = vector.broadcast %cst_71 : f32 to vector<64x64xf32>
    %126 = arith.maximumf %124, %125 : vector<64x64xf32>
    %127 = vector.broadcast %121 : vector<1x64xf32> to vector<64x64xf32>
    %128 = arith.mulf %126, %127 : vector<64x64xf32>
    %129 = vector.broadcast %122 : vector<1x64xf32> to vector<64x64xf32>
    %130 = arith.addf %128, %129 : vector<64x64xf32>
    %cst_72 = arith.constant 0.000000e+00 : f32
    %131 = vector.broadcast %cst_72 : f32 to vector<6x6x64xf32>
    %c0_73 = arith.constant 0 : index
    %c0_74 = arith.constant 0 : index
    %c0_75 = arith.constant 0 : index
    %132 = vector.load %arg17[%c0_73, %c0_74, %c0_75] : memref<6x6x64xf32, #tpu.memory_space<vmem>>, vector<6x6x64xf32>
    tpu.vector_store %arg17[%c0_73, %c0_74, %c0_75], %131 {strides = array<i32>} : memref<6x6x64xf32, #tpu.memory_space<vmem>>, vector<6x6x64xf32>,
    %133 = vector.shape_cast %130 : vector<64x64xf32> to vector<4x2x8x64xf32>
    %134 = vector.extract_strided_slice %133 {offsets = [0, 0, 0, 0], sizes = [4, 1, 8, 64], strides = [1, 1, 1, 1]} : vector<4x2x8x64xf32> to vector<4x1x8x64xf32>
    %135 = vector.shape_cast %134 : vector<4x1x8x64xf32> to vector<4x8x64xf32>
    %136 = vector.extract_strided_slice %133 {offsets = [0, 1, 0, 0], sizes = [4, 1, 8, 64], strides = [1, 1, 1, 1]} : vector<4x2x8x64xf32> to vector<4x1x8x64xf32>
    %137 = vector.shape_cast %136 : vector<4x1x8x64xf32> to vector<4x8x64xf32>
    %138 = arith.maximumf %135, %137 : vector<4x8x64xf32>
    %139 = vector.extract_strided_slice %138 {offsets = [0, 0, 0], sizes = [4, 1, 64], strides = [1, 1, 1]} : vector<4x8x64xf32> to vector<4x1x64xf32>
    %140 = vector.shape_cast %139 : vector<4x1x64xf32> to vector<4x64xf32>
    %141 = vector.extract_strided_slice %138 {offsets = [0, 1, 0], sizes = [4, 1, 64], strides = [1, 1, 1]} : vector<4x8x64xf32> to vector<4x1x64xf32>
    %142 = vector.shape_cast %141 : vector<4x1x64xf32> to vector<4x64xf32>
    %143 = arith.maximumf %140, %142 : vector<4x64xf32>
    %c1_76 = arith.constant 1 : index
    %c1_77 = arith.constant 1 : index
    %c0_78 = arith.constant 0 : index
    %144 = vector.load %arg17[%c1_76, %c1_77, %c0_78] : memref<6x6x64xf32, #tpu.memory_space<vmem>>, vector<4x1x64xf32>
    %145 = vector.shape_cast %144 : vector<4x1x64xf32> to vector<4x64xf32>
    %146 = vector.shape_cast %143 : vector<4x64xf32> to vector<4x1x64xf32>
    tpu.vector_store %arg17[%c1_76, %c1_77, %c0_78], %146 {strides = array<i32>} : memref<6x6x64xf32, #tpu.memory_space<vmem>>, vector<4x1x64xf32>,
    %147 = vector.extract_strided_slice %138 {offsets = [0, 2, 0], sizes = [4, 1, 64], strides = [1, 1, 1]} : vector<4x8x64xf32> to vector<4x1x64xf32>
    %148 = vector.shape_cast %147 : vector<4x1x64xf32> to vector<4x64xf32>
    %149 = vector.extract_strided_slice %138 {offsets = [0, 3, 0], sizes = [4, 1, 64], strides = [1, 1, 1]} : vector<4x8x64xf32> to vector<4x1x64xf32>
    %150 = vector.shape_cast %149 : vector<4x1x64xf32> to vector<4x64xf32>
    %151 = arith.maximumf %148, %150 : vector<4x64xf32>
    %c1_79 = arith.constant 1 : index
    %c2_80 = arith.constant 2 : index
    %c0_81 = arith.constant 0 : index
    %152 = vector.load %arg17[%c1_79, %c2_80, %c0_81] : memref<6x6x64xf32, #tpu.memory_space<vmem>>, vector<4x1x64xf32>
    %153 = vector.shape_cast %152 : vector<4x1x64xf32> to vector<4x64xf32>
    %154 = vector.shape_cast %151 : vector<4x64xf32> to vector<4x1x64xf32>
    tpu.vector_store %arg17[%c1_79, %c2_80, %c0_81], %154 {strides = array<i32>} : memref<6x6x64xf32, #tpu.memory_space<vmem>>, vector<4x1x64xf32>,
    %155 = vector.extract_strided_slice %138 {offsets = [0, 4, 0], sizes = [4, 1, 64], strides = [1, 1, 1]} : vector<4x8x64xf32> to vector<4x1x64xf32>
    %156 = vector.shape_cast %155 : vector<4x1x64xf32> to vector<4x64xf32>
    %157 = vector.extract_strided_slice %138 {offsets = [0, 5, 0], sizes = [4, 1, 64], strides = [1, 1, 1]} : vector<4x8x64xf32> to vector<4x1x64xf32>
    %158 = vector.shape_cast %157 : vector<4x1x64xf32> to vector<4x64xf32>
    %159 = arith.maximumf %156, %158 : vector<4x64xf32>
    %c1_82 = arith.constant 1 : index
    %c3_83 = arith.constant 3 : index
    %c0_84 = arith.constant 0 : index
    %160 = vector.load %arg17[%c1_82, %c3_83, %c0_84] : memref<6x6x64xf32, #tpu.memory_space<vmem>>, vector<4x1x64xf32>
    %161 = vector.shape_cast %160 : vector<4x1x64xf32> to vector<4x64xf32>
    %162 = vector.shape_cast %159 : vector<4x64xf32> to vector<4x1x64xf32>
    tpu.vector_store %arg17[%c1_82, %c3_83, %c0_84], %162 {strides = array<i32>} : memref<6x6x64xf32, #tpu.memory_space<vmem>>, vector<4x1x64xf32>,
    %163 = vector.extract_strided_slice %138 {offsets = [0, 6, 0], sizes = [4, 1, 64], strides = [1, 1, 1]} : vector<4x8x64xf32> to vector<4x1x64xf32>
    %164 = vector.shape_cast %163 : vector<4x1x64xf32> to vector<4x64xf32>
    %165 = vector.extract_strided_slice %138 {offsets = [0, 7, 0], sizes = [4, 1, 64], strides = [1, 1, 1]} : vector<4x8x64xf32> to vector<4x1x64xf32>
    %166 = vector.shape_cast %165 : vector<4x1x64xf32> to vector<4x64xf32>
    %167 = arith.maximumf %164, %166 : vector<4x64xf32>
    %c1_85 = arith.constant 1 : index
    %c4_86 = arith.constant 4 : index
    %c0_87 = arith.constant 0 : index
    %168 = vector.load %arg17[%c1_85, %c4_86, %c0_87] : memref<6x6x64xf32, #tpu.memory_space<vmem>>, vector<4x1x64xf32>
    %169 = vector.shape_cast %168 : vector<4x1x64xf32> to vector<4x64xf32>
    %170 = vector.shape_cast %167 : vector<4x64xf32> to vector<4x1x64xf32>
    tpu.vector_store %arg17[%c1_85, %c4_86, %c0_87], %170 {strides = array<i32>} : memref<6x6x64xf32, #tpu.memory_space<vmem>>, vector<4x1x64xf32>,
    %c0_88 = arith.constant 0 : index
    %c0_89 = arith.constant 0 : index
    %c0_90 = arith.constant 0 : index
    %171 = vector.load %arg17[%c0_88, %c0_89, %c0_90] : memref<6x6x64xf32, #tpu.memory_space<vmem>>, vector<1x4x64xf32>
    %172 = vector.shape_cast %171 : vector<1x4x64xf32> to vector<4x64xf32>
    %c0_91 = arith.constant 0 : index
    %c0_92 = arith.constant 0 : index
    %173 = vector.load %arg18[%c0_91, %c0_92] : memref<16x576xf32, #tpu.memory_space<vmem>>, vector<4x64xf32>
    tpu.vector_store %arg18[%c0_91, %c0_92], %172 {strides = array<i32>} : memref<16x576xf32, #tpu.memory_space<vmem>>, vector<4x64xf32>,
    %c1_93 = arith.constant 1 : index
    %c0_94 = arith.constant 0 : index
    %c0_95 = arith.constant 0 : index
    %174 = vector.load %arg17[%c1_93, %c0_94, %c0_95] : memref<6x6x64xf32, #tpu.memory_space<vmem>>, vector<1x4x64xf32>
    %175 = vector.shape_cast %174 : vector<1x4x64xf32> to vector<4x64xf32>
    %c4_96 = arith.constant 4 : index
    %c0_97 = arith.constant 0 : index
    %176 = vector.load %arg18[%c4_96, %c0_97] : memref<16x576xf32, #tpu.memory_space<vmem>>, vector<4x64xf32>
    tpu.vector_store %arg18[%c4_96, %c0_97], %175 {strides = array<i32>} : memref<16x576xf32, #tpu.memory_space<vmem>>, vector<4x64xf32>,
    %c2_98 = arith.constant 2 : index
    %c0_99 = arith.constant 0 : index
    %c0_100 = arith.constant 0 : index
    %177 = vector.load %arg17[%c2_98, %c0_99, %c0_100] : memref<6x6x64xf32, #tpu.memory_space<vmem>>, vector<1x4x64xf32>
    %178 = vector.shape_cast %177 : vector<1x4x64xf32> to vector<4x64xf32>
    %c8_101 = arith.constant 8 : index
    %c0_102 = arith.constant 0 : index
    %179 = vector.load %arg18[%c8_101, %c0_102] : memref<16x576xf32, #tpu.memory_space<vmem>>, vector<4x64xf32>
    tpu.vector_store %arg18[%c8_101, %c0_102], %178 {strides = array<i32>} : memref<16x576xf32, #tpu.memory_space<vmem>>, vector<4x64xf32>,
    %c3_103 = arith.constant 3 : index
    %c0_104 = arith.constant 0 : index
    %c0_105 = arith.constant 0 : index
    %180 = vector.load %arg17[%c3_103, %c0_104, %c0_105] : memref<6x6x64xf32, #tpu.memory_space<vmem>>, vector<1x4x64xf32>
    %181 = vector.shape_cast %180 : vector<1x4x64xf32> to vector<4x64xf32>
    %c12 = arith.constant 12 : index
    %c0_106 = arith.constant 0 : index
    %182 = vector.load %arg18[%c12, %c0_106] : memref<16x576xf32, #tpu.memory_space<vmem>>, vector<4x64xf32>
    tpu.vector_store %arg18[%c12, %c0_106], %181 {strides = array<i32>} : memref<16x576xf32, #tpu.memory_space<vmem>>, vector<4x64xf32>,
    %c0_107 = arith.constant 0 : index
    %c1_108 = arith.constant 1 : index
    %c0_109 = arith.constant 0 : index
    %183 = vector.load %arg17[%c0_107, %c1_108, %c0_109] : memref<6x6x64xf32, #tpu.memory_space<vmem>>, vector<1x4x64xf32>
    %184 = vector.shape_cast %183 : vector<1x4x64xf32> to vector<4x64xf32>
    %c0_110 = arith.constant 0 : index
    %c64_111 = arith.constant 64 : index
    %185 = vector.load %arg18[%c0_110, %c64_111] : memref<16x576xf32, #tpu.memory_space<vmem>>, vector<4x64xf32>
    tpu.vector_store %arg18[%c0_110, %c64_111], %184 {strides = array<i32>} : memref<16x576xf32, #tpu.memory_space<vmem>>, vector<4x64xf32>,
    %c1_112 = arith.constant 1 : index
    %c1_113 = arith.constant 1 : index
    %c0_114 = arith.constant 0 : index
    %186 = vector.load %arg17[%c1_112, %c1_113, %c0_114] : memref<6x6x64xf32, #tpu.memory_space<vmem>>, vector<1x4x64xf32>
    %187 = vector.shape_cast %186 : vector<1x4x64xf32> to vector<4x64xf32>
    %c4_115 = arith.constant 4 : index
    %c64_116 = arith.constant 64 : index
    %188 = vector.load %arg18[%c4_115, %c64_116] : memref<16x576xf32, #tpu.memory_space<vmem>>, vector<4x64xf32>
    tpu.vector_store %arg18[%c4_115, %c64_116], %187 {strides = array<i32>} : memref<16x576xf32, #tpu.memory_space<vmem>>, vector<4x64xf32>,
    %c2_117 = arith.constant 2 : index
    %c1_118 = arith.constant 1 : index
    %c0_119 = arith.constant 0 : index
    %189 = vector.load %arg17[%c2_117, %c1_118, %c0_119] : memref<6x6x64xf32, #tpu.memory_space<vmem>>, vector<1x4x64xf32>
    %190 = vector.shape_cast %189 : vector<1x4x64xf32> to vector<4x64xf32>
    %c8_120 = arith.constant 8 : index
    %c64_121 = arith.constant 64 : index
    %191 = vector.load %arg18[%c8_120, %c64_121] : memref<16x576xf32, #tpu.memory_space<vmem>>, vector<4x64xf32>
    tpu.vector_store %arg18[%c8_120, %c64_121], %190 {strides = array<i32>} : memref<16x576xf32, #tpu.memory_space<vmem>>, vector<4x64xf32>,
    %c3_122 = arith.constant 3 : index
    %c1_123 = arith.constant 1 : index
    %c0_124 = arith.constant 0 : index
    %192 = vector.load %arg17[%c3_122, %c1_123, %c0_124] : memref<6x6x64xf32, #tpu.memory_space<vmem>>, vector<1x4x64xf32>
    %193 = vector.shape_cast %192 : vector<1x4x64xf32> to vector<4x64xf32>
    %c12_125 = arith.constant 12 : index
    %c64_126 = arith.constant 64 : index
    %194 = vector.load %arg18[%c12_125, %c64_126] : memref<16x576xf32, #tpu.memory_space<vmem>>, vector<4x64xf32>
    tpu.vector_store %arg18[%c12_125, %c64_126], %193 {strides = array<i32>} : memref<16x576xf32, #tpu.memory_space<vmem>>, vector<4x64xf32>,
    %c0_127 = arith.constant 0 : index
    %c2_128 = arith.constant 2 : index
    %c0_129 = arith.constant 0 : index
    %195 = vector.load %arg17[%c0_127, %c2_128, %c0_129] : memref<6x6x64xf32, #tpu.memory_space<vmem>>, vector<1x4x64xf32>
    %196 = vector.shape_cast %195 : vector<1x4x64xf32> to vector<4x64xf32>
    %c0_130 = arith.constant 0 : index
    %c128_131 = arith.constant 128 : index
    %197 = vector.load %arg18[%c0_130, %c128_131] : memref<16x576xf32, #tpu.memory_space<vmem>>, vector<4x64xf32>
    tpu.vector_store %arg18[%c0_130, %c128_131], %196 {strides = array<i32>} : memref<16x576xf32, #tpu.memory_space<vmem>>, vector<4x64xf32>,
    %c1_132 = arith.constant 1 : index
    %c2_133 = arith.constant 2 : index
    %c0_134 = arith.constant 0 : index
    %198 = vector.load %arg17[%c1_132, %c2_133, %c0_134] : memref<6x6x64xf32, #tpu.memory_space<vmem>>, vector<1x4x64xf32>
    %199 = vector.shape_cast %198 : vector<1x4x64xf32> to vector<4x64xf32>
    %c4_135 = arith.constant 4 : index
    %c128_136 = arith.constant 128 : index
    %200 = vector.load %arg18[%c4_135, %c128_136] : memref<16x576xf32, #tpu.memory_space<vmem>>, vector<4x64xf32>
    tpu.vector_store %arg18[%c4_135, %c128_136], %199 {strides = array<i32>} : memref<16x576xf32, #tpu.memory_space<vmem>>, vector<4x64xf32>,
    %c2_137 = arith.constant 2 : index
    %c2_138 = arith.constant 2 : index
    %c0_139 = arith.constant 0 : index
    %201 = vector.load %arg17[%c2_137, %c2_138, %c0_139] : memref<6x6x64xf32, #tpu.memory_space<vmem>>, vector<1x4x64xf32>
    %202 = vector.shape_cast %201 : vector<1x4x64xf32> to vector<4x64xf32>
    %c8_140 = arith.constant 8 : index
    %c128_141 = arith.constant 128 : index
    %203 = vector.load %arg18[%c8_140, %c128_141] : memref<16x576xf32, #tpu.memory_space<vmem>>, vector<4x64xf32>
    tpu.vector_store %arg18[%c8_140, %c128_141], %202 {strides = array<i32>} : memref<16x576xf32, #tpu.memory_space<vmem>>, vector<4x64xf32>,
    %c3_142 = arith.constant 3 : index
    %c2_143 = arith.constant 2 : index
    %c0_144 = arith.constant 0 : index
    %204 = vector.load %arg17[%c3_142, %c2_143, %c0_144] : memref<6x6x64xf32, #tpu.memory_space<vmem>>, vector<1x4x64xf32>
    %205 = vector.shape_cast %204 : vector<1x4x64xf32> to vector<4x64xf32>
    %c12_145 = arith.constant 12 : index
    %c128_146 = arith.constant 128 : index
    %206 = vector.load %arg18[%c12_145, %c128_146] : memref<16x576xf32, #tpu.memory_space<vmem>>, vector<4x64xf32>
    tpu.vector_store %arg18[%c12_145, %c128_146], %205 {strides = array<i32>} : memref<16x576xf32, #tpu.memory_space<vmem>>, vector<4x64xf32>,
    %c1_147 = arith.constant 1 : index
    %c0_148 = arith.constant 0 : index
    %c0_149 = arith.constant 0 : index
    %207 = vector.load %arg17[%c1_147, %c0_148, %c0_149] : memref<6x6x64xf32, #tpu.memory_space<vmem>>, vector<1x4x64xf32>
    %208 = vector.shape_cast %207 : vector<1x4x64xf32> to vector<4x64xf32>
    %c0_150 = arith.constant 0 : index
    %c192_151 = arith.constant 192 : index
    %209 = vector.load %arg18[%c0_150, %c192_151] : memref<16x576xf32, #tpu.memory_space<vmem>>, vector<4x64xf32>
    tpu.vector_store %arg18[%c0_150, %c192_151], %208 {strides = array<i32>} : memref<16x576xf32, #tpu.memory_space<vmem>>, vector<4x64xf32>,
    %c2_152 = arith.constant 2 : index
    %c0_153 = arith.constant 0 : index
    %c0_154 = arith.constant 0 : index
    %210 = vector.load %arg17[%c2_152, %c0_153, %c0_154] : memref<6x6x64xf32, #tpu.memory_space<vmem>>, vector<1x4x64xf32>
    %211 = vector.shape_cast %210 : vector<1x4x64xf32> to vector<4x64xf32>
    %c4_155 = arith.constant 4 : index
    %c192_156 = arith.constant 192 : index
    %212 = vector.load %arg18[%c4_155, %c192_156] : memref<16x576xf32, #tpu.memory_space<vmem>>, vector<4x64xf32>
    tpu.vector_store %arg18[%c4_155, %c192_156], %211 {strides = array<i32>} : memref<16x576xf32, #tpu.memory_space<vmem>>, vector<4x64xf32>,
    %c3_157 = arith.constant 3 : index
    %c0_158 = arith.constant 0 : index
    %c0_159 = arith.constant 0 : index
    %213 = vector.load %arg17[%c3_157, %c0_158, %c0_159] : memref<6x6x64xf32, #tpu.memory_space<vmem>>, vector<1x4x64xf32>
    %214 = vector.shape_cast %213 : vector<1x4x64xf32> to vector<4x64xf32>
    %c8_160 = arith.constant 8 : index
    %c192_161 = arith.constant 192 : index
    %215 = vector.load %arg18[%c8_160, %c192_161] : memref<16x576xf32, #tpu.memory_space<vmem>>, vector<4x64xf32>
    tpu.vector_store %arg18[%c8_160, %c192_161], %214 {strides = array<i32>} : memref<16x576xf32, #tpu.memory_space<vmem>>, vector<4x64xf32>,
    %c4_162 = arith.constant 4 : index
    %c0_163 = arith.constant 0 : index
    %c0_164 = arith.constant 0 : index
    %216 = vector.load %arg17[%c4_162, %c0_163, %c0_164] : memref<6x6x64xf32, #tpu.memory_space<vmem>>, vector<1x4x64xf32>
    %217 = vector.shape_cast %216 : vector<1x4x64xf32> to vector<4x64xf32>
    %c12_165 = arith.constant 12 : index
    %c192_166 = arith.constant 192 : index
    %218 = vector.load %arg18[%c12_165, %c192_166] : memref<16x576xf32, #tpu.memory_space<vmem>>, vector<4x64xf32>
    tpu.vector_store %arg18[%c12_165, %c192_166], %217 {strides = array<i32>} : memref<16x576xf32, #tpu.memory_space<vmem>>, vector<4x64xf32>,
    %c1_167 = arith.constant 1 : index
    %c1_168 = arith.constant 1 : index
    %c0_169 = arith.constant 0 : index
    %219 = vector.load %arg17[%c1_167, %c1_168, %c0_169] : memref<6x6x64xf32, #tpu.memory_space<vmem>>, vector<1x4x64xf32>
    %220 = vector.shape_cast %219 : vector<1x4x64xf32> to vector<4x64xf32>
    %c0_170 = arith.constant 0 : index
    %c256_171 = arith.constant 256 : index
    %221 = vector.load %arg18[%c0_170, %c256_171] : memref<16x576xf32, #tpu.memory_space<vmem>>, vector<4x64xf32>
    tpu.vector_store %arg18[%c0_170, %c256_171], %220 {strides = array<i32>} : memref<16x576xf32, #tpu.memory_space<vmem>>, vector<4x64xf32>,
    %c2_172 = arith.constant 2 : index
    %c1_173 = arith.constant 1 : index
    %c0_174 = arith.constant 0 : index
    %222 = vector.load %arg17[%c2_172, %c1_173, %c0_174] : memref<6x6x64xf32, #tpu.memory_space<vmem>>, vector<1x4x64xf32>
    %223 = vector.shape_cast %222 : vector<1x4x64xf32> to vector<4x64xf32>
    %c4_175 = arith.constant 4 : index
    %c256_176 = arith.constant 256 : index
    %224 = vector.load %arg18[%c4_175, %c256_176] : memref<16x576xf32, #tpu.memory_space<vmem>>, vector<4x64xf32>
    tpu.vector_store %arg18[%c4_175, %c256_176], %223 {strides = array<i32>} : memref<16x576xf32, #tpu.memory_space<vmem>>, vector<4x64xf32>,
    %c3_177 = arith.constant 3 : index
    %c1_178 = arith.constant 1 : index
    %c0_179 = arith.constant 0 : index
    %225 = vector.load %arg17[%c3_177, %c1_178, %c0_179] : memref<6x6x64xf32, #tpu.memory_space<vmem>>, vector<1x4x64xf32>
    %226 = vector.shape_cast %225 : vector<1x4x64xf32> to vector<4x64xf32>
    %c8_180 = arith.constant 8 : index
    %c256_181 = arith.constant 256 : index
    %227 = vector.load %arg18[%c8_180, %c256_181] : memref<16x576xf32, #tpu.memory_space<vmem>>, vector<4x64xf32>
    tpu.vector_store %arg18[%c8_180, %c256_181], %226 {strides = array<i32>} : memref<16x576xf32, #tpu.memory_space<vmem>>, vector<4x64xf32>,
    %c4_182 = arith.constant 4 : index
    %c1_183 = arith.constant 1 : index
    %c0_184 = arith.constant 0 : index
    %228 = vector.load %arg17[%c4_182, %c1_183, %c0_184] : memref<6x6x64xf32, #tpu.memory_space<vmem>>, vector<1x4x64xf32>
    %229 = vector.shape_cast %228 : vector<1x4x64xf32> to vector<4x64xf32>
    %c12_185 = arith.constant 12 : index
    %c256_186 = arith.constant 256 : index
    %230 = vector.load %arg18[%c12_185, %c256_186] : memref<16x576xf32, #tpu.memory_space<vmem>>, vector<4x64xf32>
    tpu.vector_store %arg18[%c12_185, %c256_186], %229 {strides = array<i32>} : memref<16x576xf32, #tpu.memory_space<vmem>>, vector<4x64xf32>,
    %c1_187 = arith.constant 1 : index
    %c2_188 = arith.constant 2 : index
    %c0_189 = arith.constant 0 : index
    %231 = vector.load %arg17[%c1_187, %c2_188, %c0_189] : memref<6x6x64xf32, #tpu.memory_space<vmem>>, vector<1x4x64xf32>
    %232 = vector.shape_cast %231 : vector<1x4x64xf32> to vector<4x64xf32>
    %c0_190 = arith.constant 0 : index
    %c320 = arith.constant 320 : index
    %233 = vector.load %arg18[%c0_190, %c320] : memref<16x576xf32, #tpu.memory_space<vmem>>, vector<4x64xf32>
    tpu.vector_store %arg18[%c0_190, %c320], %232 {strides = array<i32>} : memref<16x576xf32, #tpu.memory_space<vmem>>, vector<4x64xf32>,
    %c2_191 = arith.constant 2 : index
    %c2_192 = arith.constant 2 : index
    %c0_193 = arith.constant 0 : index
    %234 = vector.load %arg17[%c2_191, %c2_192, %c0_193] : memref<6x6x64xf32, #tpu.memory_space<vmem>>, vector<1x4x64xf32>
    %235 = vector.shape_cast %234 : vector<1x4x64xf32> to vector<4x64xf32>
    %c4_194 = arith.constant 4 : index
    %c320_195 = arith.constant 320 : index
    %236 = vector.load %arg18[%c4_194, %c320_195] : memref<16x576xf32, #tpu.memory_space<vmem>>, vector<4x64xf32>
    tpu.vector_store %arg18[%c4_194, %c320_195], %235 {strides = array<i32>} : memref<16x576xf32, #tpu.memory_space<vmem>>, vector<4x64xf32>,
    %c3_196 = arith.constant 3 : index
    %c2_197 = arith.constant 2 : index
    %c0_198 = arith.constant 0 : index
    %237 = vector.load %arg17[%c3_196, %c2_197, %c0_198] : memref<6x6x64xf32, #tpu.memory_space<vmem>>, vector<1x4x64xf32>
    %238 = vector.shape_cast %237 : vector<1x4x64xf32> to vector<4x64xf32>
    %c8_199 = arith.constant 8 : index
    %c320_200 = arith.constant 320 : index
    %239 = vector.load %arg18[%c8_199, %c320_200] : memref<16x576xf32, #tpu.memory_space<vmem>>, vector<4x64xf32>
    tpu.vector_store %arg18[%c8_199, %c320_200], %238 {strides = array<i32>} : memref<16x576xf32, #tpu.memory_space<vmem>>, vector<4x64xf32>,
    %c4_201 = arith.constant 4 : index
    %c2_202 = arith.constant 2 : index
    %c0_203 = arith.constant 0 : index
    %240 = vector.load %arg17[%c4_201, %c2_202, %c0_203] : memref<6x6x64xf32, #tpu.memory_space<vmem>>, vector<1x4x64xf32>
    %241 = vector.shape_cast %240 : vector<1x4x64xf32> to vector<4x64xf32>
    %c12_204 = arith.constant 12 : index
    %c320_205 = arith.constant 320 : index
    %242 = vector.load %arg18[%c12_204, %c320_205] : memref<16x576xf32, #tpu.memory_space<vmem>>, vector<4x64xf32>
    tpu.vector_store %arg18[%c12_204, %c320_205], %241 {strides = array<i32>} : memref<16x576xf32, #tpu.memory_space<vmem>>, vector<4x64xf32>,
    %c2_206 = arith.constant 2 : index
    %c0_207 = arith.constant 0 : index
    %c0_208 = arith.constant 0 : index
    %243 = vector.load %arg17[%c2_206, %c0_207, %c0_208] : memref<6x6x64xf32, #tpu.memory_space<vmem>>, vector<1x4x64xf32>
    %244 = vector.shape_cast %243 : vector<1x4x64xf32> to vector<4x64xf32>
    %c0_209 = arith.constant 0 : index
    %c384 = arith.constant 384 : index
    %245 = vector.load %arg18[%c0_209, %c384] : memref<16x576xf32, #tpu.memory_space<vmem>>, vector<4x64xf32>
    tpu.vector_store %arg18[%c0_209, %c384], %244 {strides = array<i32>} : memref<16x576xf32, #tpu.memory_space<vmem>>, vector<4x64xf32>,
    %c3_210 = arith.constant 3 : index
    %c0_211 = arith.constant 0 : index
    %c0_212 = arith.constant 0 : index
    %246 = vector.load %arg17[%c3_210, %c0_211, %c0_212] : memref<6x6x64xf32, #tpu.memory_space<vmem>>, vector<1x4x64xf32>
    %247 = vector.shape_cast %246 : vector<1x4x64xf32> to vector<4x64xf32>
    %c4_213 = arith.constant 4 : index
    %c384_214 = arith.constant 384 : index
    %248 = vector.load %arg18[%c4_213, %c384_214] : memref<16x576xf32, #tpu.memory_space<vmem>>, vector<4x64xf32>
    tpu.vector_store %arg18[%c4_213, %c384_214], %247 {strides = array<i32>} : memref<16x576xf32, #tpu.memory_space<vmem>>, vector<4x64xf32>,
    %c4_215 = arith.constant 4 : index
    %c0_216 = arith.constant 0 : index
    %c0_217 = arith.constant 0 : index
    %249 = vector.load %arg17[%c4_215, %c0_216, %c0_217] : memref<6x6x64xf32, #tpu.memory_space<vmem>>, vector<1x4x64xf32>
    %250 = vector.shape_cast %249 : vector<1x4x64xf32> to vector<4x64xf32>
    %c8_218 = arith.constant 8 : index
    %c384_219 = arith.constant 384 : index
    %251 = vector.load %arg18[%c8_218, %c384_219] : memref<16x576xf32, #tpu.memory_space<vmem>>, vector<4x64xf32>
    tpu.vector_store %arg18[%c8_218, %c384_219], %250 {strides = array<i32>} : memref<16x576xf32, #tpu.memory_space<vmem>>, vector<4x64xf32>,
    %c5_220 = arith.constant 5 : index
    %c0_221 = arith.constant 0 : index
    %c0_222 = arith.constant 0 : index
    %252 = vector.load %arg17[%c5_220, %c0_221, %c0_222] : memref<6x6x64xf32, #tpu.memory_space<vmem>>, vector<1x4x64xf32>
    %253 = vector.shape_cast %252 : vector<1x4x64xf32> to vector<4x64xf32>
    %c12_223 = arith.constant 12 : index
    %c384_224 = arith.constant 384 : index
    %254 = vector.load %arg18[%c12_223, %c384_224] : memref<16x576xf32, #tpu.memory_space<vmem>>, vector<4x64xf32>
    tpu.vector_store %arg18[%c12_223, %c384_224], %253 {strides = array<i32>} : memref<16x576xf32, #tpu.memory_space<vmem>>, vector<4x64xf32>,
    %c2_225 = arith.constant 2 : index
    %c1_226 = arith.constant 1 : index
    %c0_227 = arith.constant 0 : index
    %255 = vector.load %arg17[%c2_225, %c1_226, %c0_227] : memref<6x6x64xf32, #tpu.memory_space<vmem>>, vector<1x4x64xf32>
    %256 = vector.shape_cast %255 : vector<1x4x64xf32> to vector<4x64xf32>
    %c0_228 = arith.constant 0 : index
    %c448 = arith.constant 448 : index
    %257 = vector.load %arg18[%c0_228, %c448] : memref<16x576xf32, #tpu.memory_space<vmem>>, vector<4x64xf32>
    tpu.vector_store %arg18[%c0_228, %c448], %256 {strides = array<i32>} : memref<16x576xf32, #tpu.memory_space<vmem>>, vector<4x64xf32>,
    %c3_229 = arith.constant 3 : index
    %c1_230 = arith.constant 1 : index
    %c0_231 = arith.constant 0 : index
    %258 = vector.load %arg17[%c3_229, %c1_230, %c0_231] : memref<6x6x64xf32, #tpu.memory_space<vmem>>, vector<1x4x64xf32>
    %259 = vector.shape_cast %258 : vector<1x4x64xf32> to vector<4x64xf32>
    %c4_232 = arith.constant 4 : index
    %c448_233 = arith.constant 448 : index
    %260 = vector.load %arg18[%c4_232, %c448_233] : memref<16x576xf32, #tpu.memory_space<vmem>>, vector<4x64xf32>
    tpu.vector_store %arg18[%c4_232, %c448_233], %259 {strides = array<i32>} : memref<16x576xf32, #tpu.memory_space<vmem>>, vector<4x64xf32>,
    %c4_234 = arith.constant 4 : index
    %c1_235 = arith.constant 1 : index
    %c0_236 = arith.constant 0 : index
    %261 = vector.load %arg17[%c4_234, %c1_235, %c0_236] : memref<6x6x64xf32, #tpu.memory_space<vmem>>, vector<1x4x64xf32>
    %262 = vector.shape_cast %261 : vector<1x4x64xf32> to vector<4x64xf32>
    %c8_237 = arith.constant 8 : index
    %c448_238 = arith.constant 448 : index
    %263 = vector.load %arg18[%c8_237, %c448_238] : memref<16x576xf32, #tpu.memory_space<vmem>>, vector<4x64xf32>
    tpu.vector_store %arg18[%c8_237, %c448_238], %262 {strides = array<i32>} : memref<16x576xf32, #tpu.memory_space<vmem>>, vector<4x64xf32>,
    %c5_239 = arith.constant 5 : index
    %c1_240 = arith.constant 1 : index
    %c0_241 = arith.constant 0 : index
    %264 = vector.load %arg17[%c5_239, %c1_240, %c0_241] : memref<6x6x64xf32, #tpu.memory_space<vmem>>, vector<1x4x64xf32>
    %265 = vector.shape_cast %264 : vector<1x4x64xf32> to vector<4x64xf32>
    %c12_242 = arith.constant 12 : index
    %c448_243 = arith.constant 448 : index
    %266 = vector.load %arg18[%c12_242, %c448_243] : memref<16x576xf32, #tpu.memory_space<vmem>>, vector<4x64xf32>
    tpu.vector_store %arg18[%c12_242, %c448_243], %265 {strides = array<i32>} : memref<16x576xf32, #tpu.memory_space<vmem>>, vector<4x64xf32>,
    %c2_244 = arith.constant 2 : index
    %c2_245 = arith.constant 2 : index
    %c0_246 = arith.constant 0 : index
    %267 = vector.load %arg17[%c2_244, %c2_245, %c0_246] : memref<6x6x64xf32, #tpu.memory_space<vmem>>, vector<1x4x64xf32>
    %268 = vector.shape_cast %267 : vector<1x4x64xf32> to vector<4x64xf32>
    %c0_247 = arith.constant 0 : index
    %c512 = arith.constant 512 : index
    %269 = vector.load %arg18[%c0_247, %c512] : memref<16x576xf32, #tpu.memory_space<vmem>>, vector<4x64xf32>
    tpu.vector_store %arg18[%c0_247, %c512], %268 {strides = array<i32>} : memref<16x576xf32, #tpu.memory_space<vmem>>, vector<4x64xf32>,
    %c3_248 = arith.constant 3 : index
    %c2_249 = arith.constant 2 : index
    %c0_250 = arith.constant 0 : index
    %270 = vector.load %arg17[%c3_248, %c2_249, %c0_250] : memref<6x6x64xf32, #tpu.memory_space<vmem>>, vector<1x4x64xf32>
    %271 = vector.shape_cast %270 : vector<1x4x64xf32> to vector<4x64xf32>
    %c4_251 = arith.constant 4 : index
    %c512_252 = arith.constant 512 : index
    %272 = vector.load %arg18[%c4_251, %c512_252] : memref<16x576xf32, #tpu.memory_space<vmem>>, vector<4x64xf32>
    tpu.vector_store %arg18[%c4_251, %c512_252], %271 {strides = array<i32>} : memref<16x576xf32, #tpu.memory_space<vmem>>, vector<4x64xf32>,
    %c4_253 = arith.constant 4 : index
    %c2_254 = arith.constant 2 : index
    %c0_255 = arith.constant 0 : index
    %273 = vector.load %arg17[%c4_253, %c2_254, %c0_255] : memref<6x6x64xf32, #tpu.memory_space<vmem>>, vector<1x4x64xf32>
    %274 = vector.shape_cast %273 : vector<1x4x64xf32> to vector<4x64xf32>
    %c8_256 = arith.constant 8 : index
    %c512_257 = arith.constant 512 : index
    %275 = vector.load %arg18[%c8_256, %c512_257] : memref<16x576xf32, #tpu.memory_space<vmem>>, vector<4x64xf32>
    tpu.vector_store %arg18[%c8_256, %c512_257], %274 {strides = array<i32>} : memref<16x576xf32, #tpu.memory_space<vmem>>, vector<4x64xf32>,
    %c5_258 = arith.constant 5 : index
    %c2_259 = arith.constant 2 : index
    %c0_260 = arith.constant 0 : index
    %276 = vector.load %arg17[%c5_258, %c2_259, %c0_260] : memref<6x6x64xf32, #tpu.memory_space<vmem>>, vector<1x4x64xf32>
    %277 = vector.shape_cast %276 : vector<1x4x64xf32> to vector<4x64xf32>
    %c12_261 = arith.constant 12 : index
    %c512_262 = arith.constant 512 : index
    %278 = vector.load %arg18[%c12_261, %c512_262] : memref<16x576xf32, #tpu.memory_space<vmem>>, vector<4x64xf32>
    tpu.vector_store %arg18[%c12_261, %c512_262], %277 {strides = array<i32>} : memref<16x576xf32, #tpu.memory_space<vmem>>, vector<4x64xf32>,
    %c0_263 = arith.constant 0 : index
    %c0_264 = arith.constant 0 : index
    %279 = vector.load %arg18[%c0_263, %c0_264] : memref<16x576xf32, #tpu.memory_space<vmem>>, vector<16x576xf32>
    %280 = arith.truncf %279 : vector<16x576xf32> to vector<16x576xbf16>
    %c0_265 = arith.constant 0 : index
    %c0_266 = arith.constant 0 : index
    %281 = vector.load %arg6[%c0_265, %c0_266] : memref<576x128xbf16, #tpu.memory_space<vmem>>, vector<576x128xbf16>
    %cst_267 = arith.constant dense<0.000000e+00> : vector<16x128xf32>
    %282 = tpu.matmul %280, %281, %cst_267 {dimension_numbers = #tpu.dot_dimension_numbers<[1], [0], [0], [1], [0, 0, 1, 1], [], []>} : vector<16x576xbf16>, vector<576x128xbf16>, vector<16x128xf32> -> vector<16x128xf32>
    %c0_268 = arith.constant 0 : index
    %c0_269 = arith.constant 0 : index
    %283 = vector.load %arg7[%c0_268, %c0_269] : memref<3x128xf32, #tpu.memory_space<vmem>>, vector<3x128xf32>
    %284 = vector.extract_strided_slice %283 {offsets = [0, 0], sizes = [1, 128], strides = [1, 1]} : vector<3x128xf32> to vector<1x128xf32>
    %285 = vector.extract_strided_slice %283 {offsets = [1, 0], sizes = [1, 128], strides = [1, 1]} : vector<3x128xf32> to vector<1x128xf32>
    %286 = vector.extract_strided_slice %283 {offsets = [2, 0], sizes = [1, 128], strides = [1, 1]} : vector<3x128xf32> to vector<1x128xf32>
    %287 = vector.broadcast %284 : vector<1x128xf32> to vector<16x128xf32>
    %288 = arith.addf %282, %287 : vector<16x128xf32>
    %cst_270 = arith.constant 0.000000e+00 : f32
    %289 = vector.broadcast %cst_270 : f32 to vector<16x128xf32>
    %290 = arith.maximumf %288, %289 : vector<16x128xf32>
    %291 = vector.broadcast %285 : vector<1x128xf32> to vector<16x128xf32>
    %292 = arith.mulf %290, %291 : vector<16x128xf32>
    %293 = vector.broadcast %286 : vector<1x128xf32> to vector<16x128xf32>
    %294 = arith.addf %292, %293 : vector<16x128xf32>
    %c0_271 = arith.constant 0 : index
    %c0_272 = arith.constant 0 : index
    %295 = vector.load %arg8[%c0_271, %c0_272] : memref<1x128xf32, #tpu.memory_space<vmem>>, vector<1x128xf32>
    %296 = vector.broadcast %295 : vector<1x128xf32> to vector<16x128xf32>
    %297 = arith.mulf %294, %296 : vector<16x128xf32>
    %cst_273 = arith.constant dense<0.000000e+00> : vector<16xf32>
    %298 = vector.multi_reduction <add>, %297, %cst_273 [1] : vector<16x128xf32> to vector<16xf32>
    %299 = vector.shape_cast %298 : vector<16xf32> to vector<16x1xf32>
    %c0_274 = arith.constant 0 : index
    %c0_275 = arith.constant 0 : index
    %300 = vector.load %arg9[%c0_274, %c0_275] : memref<1x1xf32, #tpu.memory_space<vmem>>, vector<1x1xf32>
    %301 = vector.broadcast %300 : vector<1x1xf32> to vector<16x1xf32>
    %302 = arith.addf %299, %301 : vector<16x1xf32>
    %303 = arith.negf %302 : vector<16x1xf32>
    %304 = math.exp %303 : vector<16x1xf32>
    %cst_276 = arith.constant 1.000000e+00 : f32
    %305 = vector.broadcast %cst_276 : f32 to vector<16x1xf32>
    %306 = arith.addf %305, %304 : vector<16x1xf32>
    %307 = arith.divf %305, %306 : vector<16x1xf32>
    %308 = vector.broadcast %307 : vector<16x1xf32> to vector<16x128xf32>
    %309 = arith.mulf %294, %308 : vector<16x128xf32>
    %310 = vector.extract_strided_slice %309 {offsets = [0, 0], sizes = [1, 128], strides = [1, 1]} : vector<16x128xf32> to vector<1x128xf32>
    %311 = arith.truncf %310 : vector<1x128xf32> to vector<1x128xbf16>
    %c0_277 = arith.constant 0 : index
    %c0_278 = arith.constant 0 : index
    %312 = vector.load %arg19[%c0_277, %c0_278] : memref<1x2048xbf16, #tpu.memory_space<vmem>>, vector<1x128xbf16>
    tpu.vector_store %arg19[%c0_277, %c0_278], %311 {strides = array<i32>} : memref<1x2048xbf16, #tpu.memory_space<vmem>>, vector<1x128xbf16>,
    %313 = vector.extract_strided_slice %309 {offsets = [1, 0], sizes = [1, 128], strides = [1, 1]} : vector<16x128xf32> to vector<1x128xf32>
    %314 = arith.truncf %313 : vector<1x128xf32> to vector<1x128xbf16>
    %c0_279 = arith.constant 0 : index
    %c128_280 = arith.constant 128 : index
    %315 = vector.load %arg19[%c0_279, %c128_280] : memref<1x2048xbf16, #tpu.memory_space<vmem>>, vector<1x128xbf16>
    tpu.vector_store %arg19[%c0_279, %c128_280], %314 {strides = array<i32>} : memref<1x2048xbf16, #tpu.memory_space<vmem>>, vector<1x128xbf16>,
    %316 = vector.extract_strided_slice %309 {offsets = [2, 0], sizes = [1, 128], strides = [1, 1]} : vector<16x128xf32> to vector<1x128xf32>
    %317 = arith.truncf %316 : vector<1x128xf32> to vector<1x128xbf16>
    %c0_281 = arith.constant 0 : index
    %c256_282 = arith.constant 256 : index
    %318 = vector.load %arg19[%c0_281, %c256_282] : memref<1x2048xbf16, #tpu.memory_space<vmem>>, vector<1x128xbf16>
    tpu.vector_store %arg19[%c0_281, %c256_282], %317 {strides = array<i32>} : memref<1x2048xbf16, #tpu.memory_space<vmem>>, vector<1x128xbf16>,
    %319 = vector.extract_strided_slice %309 {offsets = [3, 0], sizes = [1, 128], strides = [1, 1]} : vector<16x128xf32> to vector<1x128xf32>
    %320 = arith.truncf %319 : vector<1x128xf32> to vector<1x128xbf16>
    %c0_283 = arith.constant 0 : index
    %c384_284 = arith.constant 384 : index
    %321 = vector.load %arg19[%c0_283, %c384_284] : memref<1x2048xbf16, #tpu.memory_space<vmem>>, vector<1x128xbf16>
    tpu.vector_store %arg19[%c0_283, %c384_284], %320 {strides = array<i32>} : memref<1x2048xbf16, #tpu.memory_space<vmem>>, vector<1x128xbf16>,
    %322 = vector.extract_strided_slice %309 {offsets = [4, 0], sizes = [1, 128], strides = [1, 1]} : vector<16x128xf32> to vector<1x128xf32>
    %323 = arith.truncf %322 : vector<1x128xf32> to vector<1x128xbf16>
    %c0_285 = arith.constant 0 : index
    %c512_286 = arith.constant 512 : index
    %324 = vector.load %arg19[%c0_285, %c512_286] : memref<1x2048xbf16, #tpu.memory_space<vmem>>, vector<1x128xbf16>
    tpu.vector_store %arg19[%c0_285, %c512_286], %323 {strides = array<i32>} : memref<1x2048xbf16, #tpu.memory_space<vmem>>, vector<1x128xbf16>,
    %325 = vector.extract_strided_slice %309 {offsets = [5, 0], sizes = [1, 128], strides = [1, 1]} : vector<16x128xf32> to vector<1x128xf32>
    %326 = arith.truncf %325 : vector<1x128xf32> to vector<1x128xbf16>
    %c0_287 = arith.constant 0 : index
    %c640 = arith.constant 640 : index
    %327 = vector.load %arg19[%c0_287, %c640] : memref<1x2048xbf16, #tpu.memory_space<vmem>>, vector<1x128xbf16>
    tpu.vector_store %arg19[%c0_287, %c640], %326 {strides = array<i32>} : memref<1x2048xbf16, #tpu.memory_space<vmem>>, vector<1x128xbf16>,
    %328 = vector.extract_strided_slice %309 {offsets = [6, 0], sizes = [1, 128], strides = [1, 1]} : vector<16x128xf32> to vector<1x128xf32>
    %329 = arith.truncf %328 : vector<1x128xf32> to vector<1x128xbf16>
    %c0_288 = arith.constant 0 : index
    %c768 = arith.constant 768 : index
    %330 = vector.load %arg19[%c0_288, %c768] : memref<1x2048xbf16, #tpu.memory_space<vmem>>, vector<1x128xbf16>
    tpu.vector_store %arg19[%c0_288, %c768], %329 {strides = array<i32>} : memref<1x2048xbf16, #tpu.memory_space<vmem>>, vector<1x128xbf16>,
    %331 = vector.extract_strided_slice %309 {offsets = [7, 0], sizes = [1, 128], strides = [1, 1]} : vector<16x128xf32> to vector<1x128xf32>
    %332 = arith.truncf %331 : vector<1x128xf32> to vector<1x128xbf16>
    %c0_289 = arith.constant 0 : index
    %c896 = arith.constant 896 : index
    %333 = vector.load %arg19[%c0_289, %c896] : memref<1x2048xbf16, #tpu.memory_space<vmem>>, vector<1x128xbf16>
    tpu.vector_store %arg19[%c0_289, %c896], %332 {strides = array<i32>} : memref<1x2048xbf16, #tpu.memory_space<vmem>>, vector<1x128xbf16>,
    %334 = vector.extract_strided_slice %309 {offsets = [8, 0], sizes = [1, 128], strides = [1, 1]} : vector<16x128xf32> to vector<1x128xf32>
    %335 = arith.truncf %334 : vector<1x128xf32> to vector<1x128xbf16>
    %c0_290 = arith.constant 0 : index
    %c1024 = arith.constant 1024 : index
    %336 = vector.load %arg19[%c0_290, %c1024] : memref<1x2048xbf16, #tpu.memory_space<vmem>>, vector<1x128xbf16>
    tpu.vector_store %arg19[%c0_290, %c1024], %335 {strides = array<i32>} : memref<1x2048xbf16, #tpu.memory_space<vmem>>, vector<1x128xbf16>,
    %337 = vector.extract_strided_slice %309 {offsets = [9, 0], sizes = [1, 128], strides = [1, 1]} : vector<16x128xf32> to vector<1x128xf32>
    %338 = arith.truncf %337 : vector<1x128xf32> to vector<1x128xbf16>
    %c0_291 = arith.constant 0 : index
    %c1152 = arith.constant 1152 : index
    %339 = vector.load %arg19[%c0_291, %c1152] : memref<1x2048xbf16, #tpu.memory_space<vmem>>, vector<1x128xbf16>
    tpu.vector_store %arg19[%c0_291, %c1152], %338 {strides = array<i32>} : memref<1x2048xbf16, #tpu.memory_space<vmem>>, vector<1x128xbf16>,
    %340 = vector.extract_strided_slice %309 {offsets = [10, 0], sizes = [1, 128], strides = [1, 1]} : vector<16x128xf32> to vector<1x128xf32>
    %341 = arith.truncf %340 : vector<1x128xf32> to vector<1x128xbf16>
    %c0_292 = arith.constant 0 : index
    %c1280 = arith.constant 1280 : index
    %342 = vector.load %arg19[%c0_292, %c1280] : memref<1x2048xbf16, #tpu.memory_space<vmem>>, vector<1x128xbf16>
    tpu.vector_store %arg19[%c0_292, %c1280], %341 {strides = array<i32>} : memref<1x2048xbf16, #tpu.memory_space<vmem>>, vector<1x128xbf16>,
    %343 = vector.extract_strided_slice %309 {offsets = [11, 0], sizes = [1, 128], strides = [1, 1]} : vector<16x128xf32> to vector<1x128xf32>
    %344 = arith.truncf %343 : vector<1x128xf32> to vector<1x128xbf16>
    %c0_293 = arith.constant 0 : index
    %c1408 = arith.constant 1408 : index
    %345 = vector.load %arg19[%c0_293, %c1408] : memref<1x2048xbf16, #tpu.memory_space<vmem>>, vector<1x128xbf16>
    tpu.vector_store %arg19[%c0_293, %c1408], %344 {strides = array<i32>} : memref<1x2048xbf16, #tpu.memory_space<vmem>>, vector<1x128xbf16>,
    %346 = vector.extract_strided_slice %309 {offsets = [12, 0], sizes = [1, 128], strides = [1, 1]} : vector<16x128xf32> to vector<1x128xf32>
    %347 = arith.truncf %346 : vector<1x128xf32> to vector<1x128xbf16>
    %c0_294 = arith.constant 0 : index
    %c1536 = arith.constant 1536 : index
    %348 = vector.load %arg19[%c0_294, %c1536] : memref<1x2048xbf16, #tpu.memory_space<vmem>>, vector<1x128xbf16>
    tpu.vector_store %arg19[%c0_294, %c1536], %347 {strides = array<i32>} : memref<1x2048xbf16, #tpu.memory_space<vmem>>, vector<1x128xbf16>,
    %349 = vector.extract_strided_slice %309 {offsets = [13, 0], sizes = [1, 128], strides = [1, 1]} : vector<16x128xf32> to vector<1x128xf32>
    %350 = arith.truncf %349 : vector<1x128xf32> to vector<1x128xbf16>
    %c0_295 = arith.constant 0 : index
    %c1664 = arith.constant 1664 : index
    %351 = vector.load %arg19[%c0_295, %c1664] : memref<1x2048xbf16, #tpu.memory_space<vmem>>, vector<1x128xbf16>
    tpu.vector_store %arg19[%c0_295, %c1664], %350 {strides = array<i32>} : memref<1x2048xbf16, #tpu.memory_space<vmem>>, vector<1x128xbf16>,
    %352 = vector.extract_strided_slice %309 {offsets = [14, 0], sizes = [1, 128], strides = [1, 1]} : vector<16x128xf32> to vector<1x128xf32>
    %353 = arith.truncf %352 : vector<1x128xf32> to vector<1x128xbf16>
    %c0_296 = arith.constant 0 : index
    %c1792 = arith.constant 1792 : index
    %354 = vector.load %arg19[%c0_296, %c1792] : memref<1x2048xbf16, #tpu.memory_space<vmem>>, vector<1x128xbf16>
    tpu.vector_store %arg19[%c0_296, %c1792], %353 {strides = array<i32>} : memref<1x2048xbf16, #tpu.memory_space<vmem>>, vector<1x128xbf16>,
    %355 = vector.extract_strided_slice %309 {offsets = [15, 0], sizes = [1, 128], strides = [1, 1]} : vector<16x128xf32> to vector<1x128xf32>
    %356 = arith.truncf %355 : vector<1x128xf32> to vector<1x128xbf16>
    %c0_297 = arith.constant 0 : index
    %c1920 = arith.constant 1920 : index
    %357 = vector.load %arg19[%c0_297, %c1920] : memref<1x2048xbf16, #tpu.memory_space<vmem>>, vector<1x128xbf16>
    tpu.vector_store %arg19[%c0_297, %c1920], %356 {strides = array<i32>} : memref<1x2048xbf16, #tpu.memory_space<vmem>>, vector<1x128xbf16>,
    %c0_298 = arith.constant 0 : index
    %c0_299 = arith.constant 0 : index
    %358 = vector.load %arg19[%c0_298, %c0_299] : memref<1x2048xbf16, #tpu.memory_space<vmem>>, vector<1x2048xbf16>
    %c0_300 = arith.constant 0 : index
    %c0_301 = arith.constant 0 : index
    %359 = vector.load %arg10[%c0_300, %c0_301] : memref<2048x256xbf16, #tpu.memory_space<vmem>>, vector<2048x256xbf16>
    %cst_302 = arith.constant dense<0.000000e+00> : vector<1x256xf32>
    %360 = tpu.matmul %358, %359, %cst_302 {dimension_numbers = #tpu.dot_dimension_numbers<[1], [0], [0], [1], [0, 0, 1, 1], [], []>} : vector<1x2048xbf16>, vector<2048x256xbf16>, vector<1x256xf32> -> vector<1x256xf32>
    %c0_303 = arith.constant 0 : index
    %c0_304 = arith.constant 0 : index
    %361 = vector.load %arg11[%c0_303, %c0_304] : memref<1x256xf32, #tpu.memory_space<vmem>>, vector<1x256xf32>
    %362 = arith.addf %360, %361 : vector<1x256xf32>
    %cst_305 = arith.constant 0.000000e+00 : f32
    %363 = vector.broadcast %cst_305 : f32 to vector<1x256xf32>
    %364 = arith.maximumf %362, %363 : vector<1x256xf32>
    %365 = arith.truncf %364 : vector<1x256xf32> to vector<1x256xbf16>
    %c0_306 = arith.constant 0 : index
    %c0_307 = arith.constant 0 : index
    %366 = vector.load %arg12[%c0_306, %c0_307] : memref<256x10xbf16, #tpu.memory_space<vmem>>, vector<256x10xbf16>
    %cst_308 = arith.constant dense<0.000000e+00> : vector<1x10xf32>
    %367 = tpu.matmul %365, %366, %cst_308 {dimension_numbers = #tpu.dot_dimension_numbers<[1], [0], [0], [1], [0, 0, 1, 1], [], []>} : vector<1x256xbf16>, vector<256x10xbf16>, vector<1x10xf32> -> vector<1x10xf32>
    %c0_309 = arith.constant 0 : index
    %c0_310 = arith.constant 0 : index
    %368 = vector.load %arg13[%c0_309, %c0_310] : memref<1x10xf32, #tpu.memory_space<vmem>>, vector<1x10xf32>
    %369 = arith.addf %367, %368 : vector<1x10xf32>
    %c0_311 = arith.constant 0 : index
    %c0_312 = arith.constant 0 : index
    %c0_313 = arith.constant 0 : index
    %370 = vector.load %arg14[%c0_311, %c0_312, %c0_313] : memref<1x1x10xf32, #tpu.memory_space<vmem>>, vector<1x1x10xf32>
    %371 = vector.shape_cast %370 : vector<1x1x10xf32> to vector<1x10xf32>
    %372 = vector.shape_cast %369 : vector<1x10xf32> to vector<1x1x10xf32>
    tpu.vector_store %arg14[%c0_311, %c0_312, %c0_313], %372 {strides = array<i32>} : memref<1x1x10xf32, #tpu.memory_space<vmem>>, vector<1x1x10xf32>,
    return
  }
  func.func @transform_0(%arg0: i32) -> (i32, i32, i32) {
    %c0_i32 = arith.constant 0 : i32
    %c0_i32_0 = arith.constant 0 : i32
    %c0_i32_1 = arith.constant 0 : i32
    return %arg0, %c0_i32, %c0_i32_0 : i32, i32, i32
  }
  func.func @transform_1(%arg0: i32) -> (i32, i32) {
    %c0_i32 = arith.constant 0 : i32
    %c0_i32_0 = arith.constant 0 : i32
    %c0_i32_1 = arith.constant 0 : i32
    return %c0_i32, %c0_i32_0 : i32, i32
  }
  func.func @transform_2(%arg0: i32) -> (i32, i32) {
    %c0_i32 = arith.constant 0 : i32
    %c0_i32_0 = arith.constant 0 : i32
    %c0_i32_1 = arith.constant 0 : i32
    return %c0_i32, %c0_i32_0 : i32, i32
  }
  func.func @transform_3(%arg0: i32) -> (i32, i32) {
    %c0_i32 = arith.constant 0 : i32
    %c0_i32_0 = arith.constant 0 : i32
    %c0_i32_1 = arith.constant 0 : i32
    return %c0_i32, %c0_i32_0 : i32, i32
  }
  func.func @transform_4(%arg0: i32) -> (i32, i32) {
    %c0_i32 = arith.constant 0 : i32
    %c0_i32_0 = arith.constant 0 : i32
    %c0_i32_1 = arith.constant 0 : i32
    return %c0_i32, %c0_i32_0 : i32, i32
  }
  func.func @transform_5(%arg0: i32) -> (i32, i32) {
    %c0_i32 = arith.constant 0 : i32
    %c0_i32_0 = arith.constant 0 : i32
    %c0_i32_1 = arith.constant 0 : i32
    return %c0_i32, %c0_i32_0 : i32, i32
  }
  func.func @transform_6(%arg0: i32) -> (i32, i32) {
    %c0_i32 = arith.constant 0 : i32
    %c0_i32_0 = arith.constant 0 : i32
    %c0_i32_1 = arith.constant 0 : i32
    return %c0_i32, %c0_i32_0 : i32, i32
  }
  func.func @transform_7(%arg0: i32) -> (i32, i32) {
    %c0_i32 = arith.constant 0 : i32
    %c0_i32_0 = arith.constant 0 : i32
    %c0_i32_1 = arith.constant 0 : i32
    return %c0_i32, %c0_i32_0 : i32, i32
  }
  func.func @transform_8(%arg0: i32) -> (i32, i32) {
    %c0_i32 = arith.constant 0 : i32
    %c0_i32_0 = arith.constant 0 : i32
    %c0_i32_1 = arith.constant 0 : i32
    return %c0_i32, %c0_i32_0 : i32, i32
  }
  func.func @transform_9(%arg0: i32) -> (i32, i32) {
    %c0_i32 = arith.constant 0 : i32
    %c0_i32_0 = arith.constant 0 : i32
    %c0_i32_1 = arith.constant 0 : i32
    return %c0_i32, %c0_i32_0 : i32, i32
  }
  func.func @transform_10(%arg0: i32) -> (i32, i32) {
    %c0_i32 = arith.constant 0 : i32
    %c0_i32_0 = arith.constant 0 : i32
    %c0_i32_1 = arith.constant 0 : i32
    return %c0_i32, %c0_i32_0 : i32, i32
  }
  func.func @transform_11(%arg0: i32) -> (i32, i32) {
    %c0_i32 = arith.constant 0 : i32
    %c0_i32_0 = arith.constant 0 : i32
    %c0_i32_1 = arith.constant 0 : i32
    return %c0_i32, %c0_i32_0 : i32, i32
  }
  func.func @transform_12(%arg0: i32) -> (i32, i32) {
    %c0_i32 = arith.constant 0 : i32
    %c0_i32_0 = arith.constant 0 : i32
    %c0_i32_1 = arith.constant 0 : i32
    return %c0_i32, %c0_i32_0 : i32, i32
  }
  func.func @transform_13(%arg0: i32) -> (i32, i32, i32) {
    %c0_i32 = arith.constant 0 : i32
    %c0_i32_0 = arith.constant 0 : i32
    %c0_i32_1 = arith.constant 0 : i32
    return %arg0, %c0_i32, %c0_i32_0 : i32, i32, i32
  }
}

</mosaic_0001>

<llo_original>
// kernel: forward.1
$region0: #{forward.1}
  #allocation0 [shape = 'u32[]', space=smem, size = 0x4, offset = 0x4, fixed_abs, tag = 'smem constant byte address 0x4 - core index']
  #allocation1 [shape = 'u32[144,128]{1,0:T(1,128)}', space=vmem, size = 0x12000, scoped, tag = 'internal scratch']
  #allocation2 [shape = 'f32[10,10,32]{2,1,0:T(8,128)}', space=vmem, size = 0x14000, scoped, tag = 'scratch operand']
  #allocation3 [shape = 'f32[64,288]{1,0:T(8,128)}', space=vmem, size = 0x18000, scoped, tag = 'scratch operand']
  #allocation4 [shape = 'f32[6,6,64]{2,1,0:T(8,128)}', space=vmem, size = 0x6000, scoped, tag = 'scratch operand']
  #allocation5 [shape = 'f32[16,576]{1,0:T(8,128)}', space=vmem, size = 0xa000, scoped, tag = 'scratch operand']
  #allocation6 [shape = 'bf16[1,2048]{1,0:T(2,128)(2,1)}', space=vmem, size = 0x2000, scoped, tag = 'scratch operand']
  #allocation7 [shape = 'f32[1,1]{1,0:T(1,128)S(1)}', space=vmem, size = 0x200, scoped, tag = 'scoped memory for forward.1']
  %s0 = inlined_call_operand.vmem [shape: f32[2,256,9], index: 0, kind: input, shape index: {}]
  %s1 = inlined_call_operand.vmem [shape: f32[9,32], index: 1, kind: input, shape index: {}]
  %s2 = inlined_call_operand.vmem [shape: f32[3,32], index: 2, kind: input, shape index: {}]
  %s3 = inlined_call_operand.vmem [shape: bf16[288,64], index: 3, kind: input, shape index: {}]
  %s4 = inlined_call_operand.vmem [shape: f32[3,64], index: 4, kind: input, shape index: {}]
  %s5 = inlined_call_operand.vmem [shape: bf16[576,128], index: 5, kind: input, shape index: {}]
  %s6 = inlined_call_operand.vmem [shape: f32[3,128], index: 6, kind: input, shape index: {}]
  %s7 = inlined_call_operand.vmem [shape: f32[1,128], index: 7, kind: input, shape index: {}]
  %s8 = inlined_call_operand.<no memory space> [shape: f32[1,1], index: 8, kind: input, shape index: {}]
  %s9 = inlined_call_operand.vmem [shape: bf16[2048,256], index: 9, kind: input, shape index: {}]
  %s10 = inlined_call_operand.vmem [shape: f32[1,256], index: 10, kind: input, shape index: {}]
  %s11 = inlined_call_operand.vmem [shape: bf16[256,10], index: 11, kind: input, shape index: {}]
  %s12 = inlined_call_operand.vmem [shape: f32[1,10], index: 12, kind: input, shape index: {}]
  %s13 = inlined_call_operand.hbm [shape: f32[2,1,10], index: 13, kind: output, shape index: {}]
  %s14 = sld [smem:[#allocation0]]
  $region85: #{forward.1} parent=0
    _
  %s16 = ssub.s32 1, %s14
  %s17 = scalar_select 0, %s16, %s14
  %v18 = vstv %s8
  %19 = vst [vmem:[#allocation7] sm:$0x1] %v18
  $region1: #{forward.1} parent=0
    #allocation8 [shape = 'u8[1024]{0}', space=vmem, size = 0x400, scoped, tag = 'output window, operand 0']
    #allocation9 [shape = 's32[2]{0}', space=sflag, size = 0x8, scoped, tag = 'scoped memory for forward.1']
    %20 = vsyncpa [#allocation9], 0
    %s21 = scalar_lea.sflag [#allocation9], 1
    %22 = vsyncpa %s21, 0
    loop: start=0, step=1, limit=4
    $region2: #{forward.1} parent=1 // loop_pre_header
      _
    $region3: #{forward.1} parent=1 // loop_header
      %s24 = sphi 0, %s28
      %p25 = scmp.ge.s32.totalorder %s24, 4
      %s34 = sphi 0, %s36
      %s37 = sphi 0, %s34
      %s38 = sphi 0, %s37
      %s54 = sphi 0, %s38
      %s58 = sphi 0, %s58
      %s60 = sphi 0, %s58
      %s61 = sphi 0, %s60
      %s75 = sphi 0, %s61
      %s79 = sphi 0, %s79
      %s81 = sphi 0, %s79
      %s82 = sphi 0, %s81
      %s96 = sphi 0, %s82
      %s100 = sphi 0, %s100
      %s102 = sphi 0, %s100
      %s103 = sphi 0, %s102
      %s117 = sphi 0, %s103
      %s121 = sphi 0, %s121
      %s123 = sphi 0, %s121
      %s124 = sphi 0, %s123
      %s138 = sphi 0, %s124
      %s142 = sphi 0, %s142
      %s144 = sphi 0, %s142
      %s145 = sphi 0, %s144
      %s159 = sphi 0, %s145
      %s163 = sphi 0, %s163
      %s165 = sphi 0, %s163
      %s166 = sphi 0, %s165
      %s180 = sphi 0, %s166
      %s184 = sphi 0, %s184
      %s186 = sphi 0, %s184
      %s187 = sphi 0, %s186
      %s201 = sphi 0, %s187
      %s205 = sphi 0, %s205
      %s207 = sphi 0, %s205
      %s208 = sphi 0, %s207
      %s222 = sphi 0, %s208
      %s226 = sphi 0, %s226
      %s228 = sphi 0, %s226
      %s229 = sphi 0, %s228
      %s243 = sphi 0, %s229
      %s247 = sphi 0, %s247
      %s249 = sphi 0, %s247
      %s250 = sphi 0, %s249
      %s264 = sphi 0, %s250
      %s268 = sphi 0, %s268
      %s270 = sphi 0, %s268
      %s271 = sphi 0, %s270
      %s285 = sphi 0, %s271
      %s289 = sphi 0, %s289
      %s291 = sphi 0, %s289
      %s292 = sphi 0, %s291
      %s306 = sphi 0, %s292
      %s312 = sphi 0, %s314
      %s315 = sphi 0, %s312
      %s316 = sphi 0, %s315
      %s332 = sphi 0, %s316
    $region4: #{forward.1} parent=1 // loop_header_branch
      %27 = sbr.rel (%p25) target = $region8
    $region5: #{forward.1} parent=1 // loop_body
      %s29 = ssub.s32 %s24, 1
      %s30 = ssub.s32 %s24, 2
      %s31 = sadd.s32 %s24, 1
      %s32 = ssub.s32 %s24, %s31
      %p33 = scmp.eq.s32.totalorder %s32, 0
      %s35 = sadd.s32 %s34, 1
      %s36 = scalar_select %p33, %s34, %s35
      %p39 = pneg %p33
      %p40 = scmp.eq.s32.totalorder %s24, 1
      %p41 = por %p39, %p40
      %p42 = scmp.ne.s32.totalorder %s34, %s37
      %p43 = scmp.eq.s32.totalorder %s24, 0
      %p44 = por %p42, %p43
      %p45 = scmp.ne.s32.totalorder %s34, %s37
      %p46 = scmp.eq.s32.totalorder %s29, 1
      %p47 = por %p45, %p46
      %p48 = scmp.ne.s32.totalorder %s37, %s38
      %p49 = scmp.eq.s32.totalorder %s29, 0
      %p50 = por %p48, %p49
      %p51 = scmp.ne.s32.totalorder %s37, %s38
      %p52 = scmp.eq.s32.totalorder %s30, 1
      %p53 = por %p51, %p52
      %p55 = scmp.ne.s32.totalorder %s38, %s54
      %p56 = scmp.eq.s32.totalorder %s30, 0
      %p57 = por %p55, %p56
      %s59 = sadd.s32 %s58, 1
      %p62 = scmp.eq.s32.totalorder %s24, 1
      %p63 = scmp.ne.s32.totalorder %s58, %s60
      %p64 = scmp.eq.s32.totalorder %s24, 0
      %p65 = por %p63, %p64
      %p66 = scmp.ne.s32.totalorder %s58, %s60
      %p67 = scmp.eq.s32.totalorder %s29, 1
      %p68 = por %p66, %p67
      %p69 = scmp.ne.s32.totalorder %s60, %s61
      %p70 = scmp.eq.s32.totalorder %s29, 0
      %p71 = por %p69, %p70
      %p72 = scmp.ne.s32.totalorder %s60, %s61
      %p73 = scmp.eq.s32.totalorder %s30, 1
      %p74 = por %p72, %p73
      %p76 = scmp.ne.s32.totalorder %s61, %s75
      %p77 = scmp.eq.s32.totalorder %s30, 0
      %p78 = por %p76, %p77
      %s80 = sadd.s32 %s79, 1
      %p83 = scmp.eq.s32.totalorder %s24, 1
      %p84 = scmp.ne.s32.totalorder %s79, %s81
      %p85 = scmp.eq.s32.totalorder %s24, 0
      %p86 = por %p84, %p85
      %p87 = scmp.ne.s32.totalorder %s79, %s81
      %p88 = scmp.eq.s32.totalorder %s29, 1
      %p89 = por %p87, %p88
      %p90 = scmp.ne.s32.totalorder %s81, %s82
      %p91 = scmp.eq.s32.totalorder %s29, 0
      %p92 = por %p90, %p91
      %p93 = scmp.ne.s32.totalorder %s81, %s82
      %p94 = scmp.eq.s32.totalorder %s30, 1
      %p95 = por %p93, %p94
      %p97 = scmp.ne.s32.totalorder %s82, %s96
      %p98 = scmp.eq.s32.totalorder %s30, 0
      %p99 = por %p97, %p98
      %s101 = sadd.s32 %s100, 1
      %p104 = scmp.eq.s32.totalorder %s24, 1
      %p105 = scmp.ne.s32.totalorder %s100, %s102
      %p106 = scmp.eq.s32.totalorder %s24, 0
      %p107 = por %p105, %p106
      %p108 = scmp.ne.s32.totalorder %s100, %s102
      %p109 = scmp.eq.s32.totalorder %s29, 1
      %p110 = por %p108, %p109
      %p111 = scmp.ne.s32.totalorder %s102, %s103
      %p112 = scmp.eq.s32.totalorder %s29, 0
      %p113 = por %p111, %p112
      %p114 = scmp.ne.s32.totalorder %s102, %s103
      %p115 = scmp.eq.s32.totalorder %s30, 1
      %p116 = por %p114, %p115
      %p118 = scmp.ne.s32.totalorder %s103, %s117
      %p119 = scmp.eq.s32.totalorder %s30, 0
      %p120 = por %p118, %p119
      %s122 = sadd.s32 %s121, 1
      %p125 = scmp.eq.s32.totalorder %s24, 1
      %p126 = scmp.ne.s32.totalorder %s121, %s123
      %p127 = scmp.eq.s32.totalorder %s24, 0
      %p128 = por %p126, %p127
      %p129 = scmp.ne.s32.totalorder %s121, %s123
      %p130 = scmp.eq.s32.totalorder %s29, 1
      %p131 = por %p129, %p130
      %p132 = scmp.ne.s32.totalorder %s123, %s124
      %p133 = scmp.eq.s32.totalorder %s29, 0
      %p134 = por %p132, %p133
      %p135 = scmp.ne.s32.totalorder %s123, %s124
      %p136 = scmp.eq.s32.totalorder %s30, 1
      %p137 = por %p135, %p136
      %p139 = scmp.ne.s32.totalorder %s124, %s138
      %p140 = scmp.eq.s32.totalorder %s30, 0
      %p141 = por %p139, %p140
      %s143 = sadd.s32 %s142, 1
      %p146 = scmp.eq.s32.totalorder %s24, 1
      %p147 = scmp.ne.s32.totalorder %s142, %s144
      %p148 = scmp.eq.s32.totalorder %s24, 0
      %p149 = por %p147, %p148
      %p150 = scmp.ne.s32.totalorder %s142, %s144
      %p151 = scmp.eq.s32.totalorder %s29, 1
      %p152 = por %p150, %p151
      %p153 = scmp.ne.s32.totalorder %s144, %s145
      %p154 = scmp.eq.s32.totalorder %s29, 0
      %p155 = por %p153, %p154
      %p156 = scmp.ne.s32.totalorder %s144, %s145
      %p157 = scmp.eq.s32.totalorder %s30, 1
      %p158 = por %p156, %p157
      %p160 = scmp.ne.s32.totalorder %s145, %s159
      %p161 = scmp.eq.s32.totalorder %s30, 0
      %p162 = por %p160, %p161
      %s164 = sadd.s32 %s163, 1
      %p167 = scmp.eq.s32.totalorder %s24, 1
      %p168 = scmp.ne.s32.totalorder %s163, %s165
      %p169 = scmp.eq.s32.totalorder %s24, 0
      %p170 = por %p168, %p169
      %p171 = scmp.ne.s32.totalorder %s163, %s165
      %p172 = scmp.eq.s32.totalorder %s29, 1
      %p173 = por %p171, %p172
      %p174 = scmp.ne.s32.totalorder %s165, %s166
      %p175 = scmp.eq.s32.totalorder %s29, 0
      %p176 = por %p174, %p175
      %p177 = scmp.ne.s32.totalorder %s165, %s166
      %p178 = scmp.eq.s32.totalorder %s30, 1
      %p179 = por %p177, %p178
      %p181 = scmp.ne.s32.totalorder %s166, %s180
      %p182 = scmp.eq.s32.totalorder %s30, 0
      %p183 = por %p181, %p182
      %s185 = sadd.s32 %s184, 1
      %p188 = scmp.eq.s32.totalorder %s24, 1
      %p189 = scmp.ne.s32.totalorder %s184, %s186
      %p190 = scmp.eq.s32.totalorder %s24, 0
      %p191 = por %p189, %p190
      %p192 = scmp.ne.s32.totalorder %s184, %s186
      %p193 = scmp.eq.s32.totalorder %s29, 1
      %p194 = por %p192, %p193
      %p195 = scmp.ne.s32.totalorder %s186, %s187
      %p196 = scmp.eq.s32.totalorder %s29, 0
      %p197 = por %p195, %p196
      %p198 = scmp.ne.s32.totalorder %s186, %s187
      %p199 = scmp.eq.s32.totalorder %s30, 1
      %p200 = por %p198, %p199
      %p202 = scmp.ne.s32.totalorder %s187, %s201
      %p203 = scmp.eq.s32.totalorder %s30, 0
      %p204 = por %p202, %p203
      %s206 = sadd.s32 %s205, 1
      %p209 = scmp.eq.s32.totalorder %s24, 1
      %p210 = scmp.ne.s32.totalorder %s205, %s207
      %p211 = scmp.eq.s32.totalorder %s24, 0
      %p212 = por %p210, %p211
      %p213 = scmp.ne.s32.totalorder %s205, %s207
      %p214 = scmp.eq.s32.totalorder %s29, 1
      %p215 = por %p213, %p214
      %p216 = scmp.ne.s32.totalorder %s207, %s208
      %p217 = scmp.eq.s32.totalorder %s29, 0
      %p218 = por %p216, %p217
      %p219 = scmp.ne.s32.totalorder %s207, %s208
      %p220 = scmp.eq.s32.totalorder %s30, 1
      %p221 = por %p219, %p220
      %p223 = scmp.ne.s32.totalorder %s208, %s222
      %p224 = scmp.eq.s32.totalorder %s30, 0
      %p225 = por %p223, %p224
      %s227 = sadd.s32 %s226, 1
      %p230 = scmp.eq.s32.totalorder %s24, 1
      %p231 = scmp.ne.s32.totalorder %s226, %s228
      %p232 = scmp.eq.s32.totalorder %s24, 0
      %p233 = por %p231, %p232
      %p234 = scmp.ne.s32.totalorder %s226, %s228
      %p235 = scmp.eq.s32.totalorder %s29, 1
      %p236 = por %p234, %p235
      %p237 = scmp.ne.s32.totalorder %s228, %s229
      %p238 = scmp.eq.s32.totalorder %s29, 0
      %p239 = por %p237, %p238
      %p240 = scmp.ne.s32.totalorder %s228, %s229
      %p241 = scmp.eq.s32.totalorder %s30, 1
      %p242 = por %p240, %p241
      %p244 = scmp.ne.s32.totalorder %s229, %s243
      %p245 = scmp.eq.s32.totalorder %s30, 0
      %p246 = por %p244, %p245
      %s248 = sadd.s32 %s247, 1
      %p251 = scmp.eq.s32.totalorder %s24, 1
      %p252 = scmp.ne.s32.totalorder %s247, %s249
      %p253 = scmp.eq.s32.totalorder %s24, 0
      %p254 = por %p252, %p253
      %p255 = scmp.ne.s32.totalorder %s247, %s249
      %p256 = scmp.eq.s32.totalorder %s29, 1
      %p257 = por %p255, %p256
      %p258 = scmp.ne.s32.totalorder %s249, %s250
      %p259 = scmp.eq.s32.totalorder %s29, 0
      %p260 = por %p258, %p259
      %p261 = scmp.ne.s32.totalorder %s249, %s250
      %p262 = scmp.eq.s32.totalorder %s30, 1
      %p263 = por %p261, %p262
      %p265 = scmp.ne.s32.totalorder %s250, %s264
      %p266 = scmp.eq.s32.totalorder %s30, 0
      %p267 = por %p265, %p266
      %s269 = sadd.s32 %s268, 1
      %p272 = scmp.eq.s32.totalorder %s24, 1
      %p273 = scmp.ne.s32.totalorder %s268, %s270
      %p274 = scmp.eq.s32.totalorder %s24, 0
      %p275 = por %p273, %p274
      %p276 = scmp.ne.s32.totalorder %s268, %s270
      %p277 = scmp.eq.s32.totalorder %s29, 1
      %p278 = por %p276, %p277
      %p279 = scmp.ne.s32.totalorder %s270, %s271
      %p280 = scmp.eq.s32.totalorder %s29, 0
      %p281 = por %p279, %p280
      %p282 = scmp.ne.s32.totalorder %s270, %s271
      %p283 = scmp.eq.s32.totalorder %s30, 1
      %p284 = por %p282, %p283
      %p286 = scmp.ne.s32.totalorder %s271, %s285
      %p287 = scmp.eq.s32.totalorder %s30, 0
      %p288 = por %p286, %p287
      %s290 = sadd.s32 %s289, 1
      %p293 = scmp.eq.s32.totalorder %s24, 1
      %p294 = scmp.ne.s32.totalorder %s289, %s291
      %p295 = scmp.eq.s32.totalorder %s24, 0
      %p296 = por %p294, %p295
      %p297 = scmp.ne.s32.totalorder %s289, %s291
      %p298 = scmp.eq.s32.totalorder %s29, 1
      %p299 = por %p297, %p298
      %p300 = scmp.ne.s32.totalorder %s291, %s292
      %p301 = scmp.eq.s32.totalorder %s29, 0
      %p302 = por %p300, %p301
      %p303 = scmp.ne.s32.totalorder %s291, %s292
      %p304 = scmp.eq.s32.totalorder %s30, 1
      %p305 = por %p303, %p304
      %p307 = scmp.ne.s32.totalorder %s292, %s306
      %p308 = scmp.eq.s32.totalorder %s30, 0
      %p309 = por %p307, %p308
      %s310 = ssub.s32 %s24, %s31
      %p311 = scmp.eq.s32.totalorder %s310, 0
      %s313 = sadd.s32 %s312, 1
      %s314 = scalar_select %p311, %s312, %s313
      %p317 = pneg %p311
      %p318 = scmp.eq.s32.totalorder %s24, 1
      %p319 = por %p317, %p318
      %p320 = scmp.ne.s32.totalorder %s312, %s315
      %p321 = scmp.eq.s32.totalorder %s24, 0
      %p322 = por %p320, %p321
      %p323 = scmp.ne.s32.totalorder %s312, %s315
      %p324 = scmp.eq.s32.totalorder %s29, 1
      %p325 = por %p323, %p324
      %p326 = scmp.ne.s32.totalorder %s315, %s316
      %p327 = scmp.eq.s32.totalorder %s29, 0
      %p328 = por %p326, %p327
      %p329 = scmp.ne.s32.totalorder %s315, %s316
      %p330 = scmp.eq.s32.totalorder %s30, 1
      %p331 = por %p329, %p330
      %p333 = scmp.ne.s32.totalorder %s316, %s332
      %p334 = scmp.eq.s32.totalorder %s30, 0
      %p335 = por %p333, %p334
      %p336 = scmp.le.s32.totalorder 1, %s24
      %p337 = scmp.lt.s32.totalorder %s24, 3
      %p338 = pnand %p336, %p337
      %p339 = pneg %p338
      // Predicated region
      $region9: #{forward.1} parent=5 // pred_check
        _
      $region10: #{forward.1} parent=5 // pred_check_branch
        %341 = sbr.rel (%p338) target = $region12
      $region11: #{forward.1} parent=5 // pred_region
        %s342 = ssub.s32 %s24, 1
        // Predicated region
        $region13: #{forward.1} parent=11 // pred_check
          %p343 = pneg %p71
        $region14: #{forward.1} parent=11 // pred_check_branch
          %345 = sbr.rel (%p343) target = $region16
        $region15: #{forward.1} parent=11 // pred_region
          _
        $region16: #{forward.1} parent=11 // pred_fallthru
          _
        // Predicated region
        $region17: #{forward.1} parent=11 // pred_check
          %p346 = pneg %p92
        $region18: #{forward.1} parent=11 // pred_check_branch
          %348 = sbr.rel (%p346) target = $region20
        $region19: #{forward.1} parent=11 // pred_region
          _
        $region20: #{forward.1} parent=11 // pred_fallthru
          _
        // Predicated region
        $region21: #{forward.1} parent=11 // pred_check
          %p349 = pneg %p113
        $region22: #{forward.1} parent=11 // pred_check_branch
          %351 = sbr.rel (%p349) target = $region24
        $region23: #{forward.1} parent=11 // pred_region
          _
        $region24: #{forward.1} parent=11 // pred_fallthru
          _
        // Predicated region
        $region25: #{forward.1} parent=11 // pred_check
          %p352 = pneg %p134
        $region26: #{forward.1} parent=11 // pred_check_branch
          %354 = sbr.rel (%p352) target = $region28
        $region27: #{forward.1} parent=11 // pred_region
          _
        $region28: #{forward.1} parent=11 // pred_fallthru
          _
        // Predicated region
        $region29: #{forward.1} parent=11 // pred_check
          %p355 = pneg %p155
        $region30: #{forward.1} parent=11 // pred_check_branch
          %357 = sbr.rel (%p355) target = $region32
        $region31: #{forward.1} parent=11 // pred_region
          _
        $region32: #{forward.1} parent=11 // pred_fallthru
          _
        // Predicated region
        $region33: #{forward.1} parent=11 // pred_check
          %p358 = pneg %p176
        $region34: #{forward.1} parent=11 // pred_check_branch
          %360 = sbr.rel (%p358) target = $region36
        $region35: #{forward.1} parent=11 // pred_region
          _
        $region36: #{forward.1} parent=11 // pred_fallthru
          _
        // Predicated region
        $region37: #{forward.1} parent=11 // pred_check
          %p361 = pneg %p197
        $region38: #{forward.1} parent=11 // pred_check_branch
          %363 = sbr.rel (%p361) target = $region40
        $region39: #{forward.1} parent=11 // pred_region
          _
        $region40: #{forward.1} parent=11 // pred_fallthru
          _
        // Predicated region
        $region41: #{forward.1} parent=11 // pred_check
          %p364 = pneg %p218
        $region42: #{forward.1} parent=11 // pred_check_branch
          %366 = sbr.rel (%p364) target = $region44
        $region43: #{forward.1} parent=11 // pred_region
          _
        $region44: #{forward.1} parent=11 // pred_fallthru
          _
        // Predicated region
        $region45: #{forward.1} parent=11 // pred_check
          %p367 = pneg %p239
        $region46: #{forward.1} parent=11 // pred_check_branch
          %369 = sbr.rel (%p367) target = $region48
        $region47: #{forward.1} parent=11 // pred_region
          _
        $region48: #{forward.1} parent=11 // pred_fallthru
          _
        // Predicated region
        $region49: #{forward.1} parent=11 // pred_check
          %p370 = pneg %p260
        $region50: #{forward.1} parent=11 // pred_check_branch
          %372 = sbr.rel (%p370) target = $region52
        $region51: #{forward.1} parent=11 // pred_region
          _
        $region52: #{forward.1} parent=11 // pred_fallthru
          _
        // Predicated region
        $region53: #{forward.1} parent=11 // pred_check
          %p373 = pneg %p281
        $region54: #{forward.1} parent=11 // pred_check_branch
          %375 = sbr.rel (%p373) target = $region56
        $region55: #{forward.1} parent=11 // pred_region
          _
        $region56: #{forward.1} parent=11 // pred_fallthru
          _
        // Predicated region
        $region57: #{forward.1} parent=11 // pred_check
          %p376 = pneg %p302
        $region58: #{forward.1} parent=11 // pred_check_branch
          %378 = sbr.rel (%p376) target = $region60
        $region59: #{forward.1} parent=11 // pred_region
          _
        $region60: #{forward.1} parent=11 // pred_fallthru
          _
      $region12: #{forward.1} parent=5 // pred_fallthru
        _
      %p379 = scmp.lt.s32.totalorder %s24, 2
      // Predicated region
      $region61: #{forward.1} parent=5 // pred_check
        %p380 = pneg %p379
      $region62: #{forward.1} parent=5 // pred_check_branch
        %382 = sbr.rel (%p380) target = $region64
      $region63: #{forward.1} parent=5 // pred_region
        // Predicated region
        $region65: #{forward.1} parent=63 // pred_check
          %p383 = pneg %p44
        $region66: #{forward.1} parent=63 // pred_check_branch
          %385 = sbr.rel (%p383) target = $region68
        $region67: #{forward.1} parent=63 // pred_region
          %p386 = scmp.lt.s32.totalorder %s24, 1
          %s387 = scalar_select %p386, %s24, 1
          %s388 = smul.addr %s387, 32
          %s389 = smul.addr %s388, 8
          %s390 = scalar_lea.vmem %s0, %s389
        $region68: #{forward.1} parent=63 // pred_fallthru
          _
      $region64: #{forward.1} parent=5 // pred_fallthru
        _
      %p391 = scmp.le.s32.totalorder 1, %s24
      %p392 = scmp.lt.s32.totalorder %s24, 3
      %p393 = pnand %p391, %p392
      %p394 = pneg %p393
      // Predicated region
      $region69: #{forward.1} parent=5 // pred_check
        _
      $region70: #{forward.1} parent=5 // pred_check_branch
        %396 = sbr.rel (%p393) target = $region72
      $region71: #{forward.1} parent=5 // pred_region
        %s397 = ssub.s32 %s24, 1
        %p398 = scmp.lt.s32.totalorder %s29, 1
        %s399 = scalar_select %p398, %s29, 1
        %s400 = smul.addr %s399, 32
        %s401 = smul.addr %s400, 8
        %s402 = scalar_lea.vmem %s0, %s401
        %p403 = pneg %p50
        %p404 = pneg %p47
        %p405 = pneg %p71
        %p406 = pneg %p68
        %p407 = pneg %p92
        %p408 = pneg %p89
        %p409 = pneg %p113
        %p410 = pneg %p110
        %p411 = pneg %p134
        %p412 = pneg %p131
        %p413 = pneg %p155
        %p414 = pneg %p152
        %p415 = pneg %p176
        %p416 = pneg %p173
        %p417 = pneg %p197
        %p418 = pneg %p194
        %p419 = pneg %p218
        %p420 = pneg %p215
        %p421 = pneg %p239
        %p422 = pneg %p236
        %p423 = pneg %p260
        %p424 = pneg %p257
        %p425 = pneg %p281
        %p426 = pneg %p278
        %p427 = pneg %p302
        %p428 = pneg %p299
        %p429 = pneg %p328
        %p430 = pneg %p325
        %s431 = sand.u32 %s315, 1
        %s432 = scalar_lea.sflag [#allocation9], %s431
        %s433 = sand.u32 %s315, 1
        %s434 = scalar_lea.vmem [#allocation8], %s433
        %p435 = scmp.lt.s32.totalorder %s29, 1
        %s436 = scalar_select %p435, %s29, 1
        %s437 = smul.addr %s436, 32
        %s438 = smul.addr %s437, 8
        %s439 = scalar_lea.vmem %s0, %s438
        %v441 = vld [vmem:[%s439] sm:$0xff]
        %v442 = vld [vmem:[%s439 + $0x8] sm:$0xff]
        %v443 = vld [vmem:[%s439 + $0x10] sm:$0xff]
        %v444 = vld [vmem:[%s439 + $0x18] sm:$0xff]
        %v445 = vld [vmem:[%s439 + $0x20] sm:$0xff]
        %v446 = vld [vmem:[%s439 + $0x28] sm:$0xff]
        %v447 = vld [vmem:[%s439 + $0x30] sm:$0xff]
        %v448 = vld [vmem:[%s439 + $0x38] sm:$0xff]
        %v449 = vld [vmem:[%s439 + $0x40] sm:$0xff]
        %v450 = vld [vmem:[%s439 + $0x48] sm:$0xff]
        %v451 = vld [vmem:[%s439 + $0x50] sm:$0xff]
        %v452 = vld [vmem:[%s439 + $0x58] sm:$0xff]
        %v453 = vld [vmem:[%s439 + $0x60] sm:$0xff]
        %v454 = vld [vmem:[%s439 + $0x68] sm:$0xff]
        %v455 = vld [vmem:[%s439 + $0x70] sm:$0xff]
        %v456 = vld [vmem:[%s439 + $0x78] sm:$0xff]
        %v457 = vld [vmem:[%s439 + $0x80] sm:$0xff]
        %v458 = vld [vmem:[%s439 + $0x88] sm:$0xff]
        %v459 = vld [vmem:[%s439 + $0x90] sm:$0xff]
        %v460 = vld [vmem:[%s439 + $0x98] sm:$0xff]
        %v461 = vld [vmem:[%s439 + $0xa0] sm:$0xff]
        %v462 = vld [vmem:[%s439 + $0xa8] sm:$0xff]
        %v463 = vld [vmem:[%s439 + $0xb0] sm:$0xff]
        %v464 = vld [vmem:[%s439 + $0xb8] sm:$0xff]
        %v465 = vld [vmem:[%s439 + $0xc0] sm:$0xff]
        %v466 = vld [vmem:[%s439 + $0xc8] sm:$0xff]
        %v467 = vld [vmem:[%s439 + $0xd0] sm:$0xff]
        %v468 = vld [vmem:[%s439 + $0xd8] sm:$0xff]
        %v469 = vld [vmem:[%s439 + $0xe0] sm:$0xff]
        %v470 = vld [vmem:[%s439 + $0xe8] sm:$0xff]
        %v471 = vld [vmem:[%s439 + $0xf0] sm:$0xff]
        %v472 = vld [vmem:[%s439 + $0xf8] sm:$0xff]
        %v473 = vld [vmem:[%s1] sm:$0xff]
        %v474 = vld [vmem:[%s1 + $0x8] sm:$0x1]
        %v475 = vld [vmem:[%s2] sm:$0x7]
        %v476 = vlaneseq
        %v477 = vshrl.u32 %v476, 7
        %v478 = vsub.s32 0, %v477
        %v479 = vrot.slane %v475, %v478
        %vm480 = vcmask 72704
        %v482 = vsel %vm480, %v441, 0
        %v485 = vsel %vm480, %v442, 0
        %v488 = vsel %vm480, %v443, 0
        %v491 = vsel %vm480, %v444, 0
        %v494 = vsel %vm480, %v445, 0
        %v497 = vsel %vm480, %v446, 0
        %v500 = vsel %vm480, %v447, 0
        %v503 = vsel %vm480, %v448, 0
        %v506 = vsel %vm480, %v449, 0
        %v509 = vsel %vm480, %v450, 0
        %v512 = vsel %vm480, %v451, 0
        %v515 = vsel %vm480, %v452, 0
        %v518 = vsel %vm480, %v453, 0
        %v521 = vsel %vm480, %v454, 0
        %v524 = vsel %vm480, %v455, 0
        %v527 = vsel %vm480, %v456, 0
        %v530 = vsel %vm480, %v457, 0
        %v533 = vsel %vm480, %v458, 0
        %v536 = vsel %vm480, %v459, 0
        %v539 = vsel %vm480, %v460, 0
        %v542 = vsel %vm480, %v461, 0
        %v545 = vsel %vm480, %v462, 0
        %v548 = vsel %vm480, %v463, 0
        %v551 = vsel %vm480, %v464, 0
        %v554 = vsel %vm480, %v465, 0
        %v557 = vsel %vm480, %v466, 0
        %v560 = vsel %vm480, %v467, 0
        %v563 = vsel %vm480, %v468, 0
        %v566 = vsel %vm480, %v469, 0
        %v569 = vsel %vm480, %v470, 0
        %v572 = vsel %vm480, %v471, 0
        %v575 = vsel %vm480, %v472, 0
        %vm577 = vcmask 1040384
        %v579 = vsel %vm577, %v474, 0
        %581 = vmatprep.subr.mxu0 0.0
        %582 = vmatpush1.msra.mxu0 %v473
        %583 = vmatprep.subr.mxu0 0.0
        %584 = vmatpush1.msra.mxu0 %v579
        %585 = vmatprep.subr.mxu0 0.0
        %586 = vmatpush1.msra.mxu0 0.0
        %587 = vmatprep.subr.mxu0 0.0
        %588 = vmatpush1.msra.mxu0 0.0
        %589 = vmatprep.subr.mxu0 0.0
        %590 = vmatpush1.msra.mxu0 0.0
        %591 = vmatprep.subr.mxu0 0.0
        %592 = vmatpush1.msra.mxu0 0.0
        %593 = vmatprep.subr.mxu0 0.0
        %594 = vmatpush1.msra.mxu0 0.0
        %595 = vmatprep.subr.mxu0 0.0
        %596 = vmatpush1.msra.mxu0 0.0
        %597 = vmatprep.subr.mxu0 0.0
        %598 = vmatpush1.msra.mxu0 0.0
        %599 = vmatprep.subr.mxu0 0.0
        %600 = vmatpush1.msra.mxu0 0.0
        %601 = vmatprep.subr.mxu0 0.0
        %602 = vmatpush1.msra.mxu0 0.0
        %603 = vmatprep.subr.mxu0 0.0
        %604 = vmatpush1.msra.mxu0 0.0
        %605 = vmatprep.subr.mxu0 0.0
        %606 = vmatpush1.msra.mxu0 0.0
        %607 = vmatprep.subr.mxu0 0.0
        %608 = vmatpush1.msra.mxu0 0.0
        %609 = vmatprep.subr.mxu0 0.0
        %610 = vmatpush1.msra.mxu0 0.0
        %611 = vmatprep.subr.mxu0 0.0
        %612 = vmatpush1.msra.mxu0 0.0
        %613 = vmatprep.subr.mxu0 0.0
        %614 = vmatpush1.msra.mxu0 0.0
        %615 = vmatprep.subr.mxu0 0.0
        %616 = vmatpush1.msra.mxu0 0.0
        %617 = vmatprep.subr.mxu0 0.0
        %618 = vmatpush1.msra.mxu0 0.0
        %619 = vmatprep.subr.mxu0 0.0
        %620 = vmatpush1.msra.mxu0 0.0
        %621 = vmatprep.subr.mxu0 0.0
        %622 = vmatpush1.msra.mxu0 0.0
        %623 = vmatprep.subr.mxu0 0.0
        %624 = vmatpush1.msra.mxu0 0.0
        %625 = vmatprep.subr.mxu0 0.0
        %626 = vmatpush1.msra.mxu0 0.0
        %627 = vmatprep.subr.mxu0 0.0
        %628 = vmatpush1.msra.mxu0 0.0
        %629 = vmatprep.subr.mxu0 0.0
        %630 = vmatpush1.msra.mxu0 0.0
        %631 = vmatprep.subr.mxu0 0.0
        %632 = vmatpush1.msra.mxu0 0.0
        %633 = vmatprep.subr.mxu0 0.0
        %634 = vmatpush1.msra.mxu0 0.0
        %635 = vmatprep.subr.mxu0 0.0
        %636 = vmatpush1.msra.mxu0 0.0
        %637 = vmatprep.subr.mxu0 0.0
        %638 = vmatpush1.msra.mxu0 0.0
        %639 = vmatprep.subr.mxu0 0.0
        %640 = vmatpush1.msra.mxu0 0.0
        %641 = vmatprep.subr.mxu0 0.0
        %642 = vmatpush1.msra.mxu0 0.0
        %643 = vmatprep.subr.mxu0 0.0
        %644 = vmatpush1.msra.mxu0 0.0
        %645 = vmatprep.mubr.f32.mxu0 0.0
        %646 = vmatmul.mubr.f32.gmra.mrb[0].mxu0 %v482
        %v647 = vpop.f32.mrb[0].mxu0
        %v648 = vadd.f32 %v479, %v647
        %v649 = vpop.f32.mrb[0].mxu0
        %650 = vmatprep.mubr.f32.mxu0 0.0
        %651 = vmatmul.mubr.f32.gmra.mrb[0].mxu0 %v485
        %v652 = vpop.f32.mrb[0].mxu0
        %v653 = vadd.f32 %v479, %v652
        %v654 = vpop.f32.mrb[0].mxu0
        %655 = vmatprep.mubr.f32.mxu0 0.0
        %656 = vmatmul.mubr.f32.gmra.mrb[0].mxu0 %v488
        %v657 = vpop.f32.mrb[0].mxu0
        %v658 = vadd.f32 %v479, %v657
        %v659 = vpop.f32.mrb[0].mxu0
        %660 = vmatprep.mubr.f32.mxu0 0.0
        %661 = vmatmul.mubr.f32.gmra.mrb[0].mxu0 %v491
        %v662 = vpop.f32.mrb[0].mxu0
        %v663 = vadd.f32 %v479, %v662
        %v664 = vpop.f32.mrb[0].mxu0
        %665 = vmatprep.mubr.f32.mxu0 0.0
        %666 = vmatmul.mubr.f32.gmra.mrb[0].mxu0 %v494
        %v667 = vpop.f32.mrb[0].mxu0
        %v668 = vadd.f32 %v479, %v667
        %v669 = vpop.f32.mrb[0].mxu0
        %670 = vmatprep.mubr.f32.mxu0 0.0
        %671 = vmatmul.mubr.f32.gmra.mrb[0].mxu0 %v497
        %v672 = vpop.f32.mrb[0].mxu0
        %v673 = vadd.f32 %v479, %v672
        %v674 = vpop.f32.mrb[0].mxu0
        %675 = vmatprep.mubr.f32.mxu0 0.0
        %676 = vmatmul.mubr.f32.gmra.mrb[0].mxu0 %v500
        %v677 = vpop.f32.mrb[0].mxu0
        %v678 = vadd.f32 %v479, %v677
        %v679 = vpop.f32.mrb[0].mxu0
        %680 = vmatprep.mubr.f32.mxu0 0.0
        %681 = vmatmul.mubr.f32.gmra.mrb[0].mxu0 %v503
        %v682 = vpop.f32.mrb[0].mxu0
        %v683 = vadd.f32 %v479, %v682
        %v684 = vpop.f32.mrb[0].mxu0
        %685 = vmatprep.mubr.f32.mxu0 0.0
        %686 = vmatmul.mubr.f32.gmra.mrb[0].mxu0 %v506
        %v687 = vpop.f32.mrb[0].mxu0
        %v688 = vadd.f32 %v479, %v687
        %v689 = vpop.f32.mrb[0].mxu0
        %690 = vmatprep.mubr.f32.mxu0 0.0
        %691 = vmatmul.mubr.f32.gmra.mrb[0].mxu0 %v509
        %v692 = vpop.f32.mrb[0].mxu0
        %v693 = vadd.f32 %v479, %v692
        %v694 = vpop.f32.mrb[0].mxu0
        %695 = vmatprep.mubr.f32.mxu0 0.0
        %696 = vmatmul.mubr.f32.gmra.mrb[0].mxu0 %v512
        %v697 = vpop.f32.mrb[0].mxu0
        %v698 = vadd.f32 %v479, %v697
        %v699 = vpop.f32.mrb[0].mxu0
        %700 = vmatprep.mubr.f32.mxu0 0.0
        %701 = vmatmul.mubr.f32.gmra.mrb[0].mxu0 %v515
        %v702 = vpop.f32.mrb[0].mxu0
        %v703 = vadd.f32 %v479, %v702
        %v704 = vpop.f32.mrb[0].mxu0
        %705 = vmatprep.mubr.f32.mxu0 0.0
        %706 = vmatmul.mubr.f32.gmra.mrb[0].mxu0 %v518
        %v707 = vpop.f32.mrb[0].mxu0
        %v708 = vadd.f32 %v479, %v707
        %v709 = vpop.f32.mrb[0].mxu0
        %710 = vmatprep.mubr.f32.mxu0 0.0
        %711 = vmatmul.mubr.f32.gmra.mrb[0].mxu0 %v521
        %v712 = vpop.f32.mrb[0].mxu0
        %v713 = vadd.f32 %v479, %v712
        %v714 = vpop.f32.mrb[0].mxu0
        %715 = vmatprep.mubr.f32.mxu0 0.0
        %716 = vmatmul.mubr.f32.gmra.mrb[0].mxu0 %v524
        %v717 = vpop.f32.mrb[0].mxu0
        %v718 = vadd.f32 %v479, %v717
        %v719 = vpop.f32.mrb[0].mxu0
        %720 = vmatprep.mubr.f32.mxu0 0.0
        %721 = vmatmul.mubr.f32.gmra.mrb[0].mxu0 %v527
        %v722 = vpop.f32.mrb[0].mxu0
        %v723 = vadd.f32 %v479, %v722
        %v724 = vpop.f32.mrb[0].mxu0
        %725 = vmatprep.mubr.f32.mxu0 0.0
        %726 = vmatmul.mubr.f32.gmra.mrb[0].mxu0 %v530
        %v727 = vpop.f32.mrb[0].mxu0
        %v728 = vadd.f32 %v479, %v727
        %v729 = vpop.f32.mrb[0].mxu0
        %730 = vmatprep.mubr.f32.mxu0 0.0
        %731 = vmatmul.mubr.f32.gmra.mrb[0].mxu0 %v533
        %v732 = vpop.f32.mrb[0].mxu0
        %v733 = vadd.f32 %v479, %v732
        %v734 = vpop.f32.mrb[0].mxu0
        %735 = vmatprep.mubr.f32.mxu0 0.0
        %736 = vmatmul.mubr.f32.gmra.mrb[0].mxu0 %v536
        %v737 = vpop.f32.mrb[0].mxu0
        %v738 = vadd.f32 %v479, %v737
        %v739 = vpop.f32.mrb[0].mxu0
        %740 = vmatprep.mubr.f32.mxu0 0.0
        %741 = vmatmul.mubr.f32.gmra.mrb[0].mxu0 %v539
        %v742 = vpop.f32.mrb[0].mxu0
        %v743 = vadd.f32 %v479, %v742
        %v744 = vpop.f32.mrb[0].mxu0
        %745 = vmatprep.mubr.f32.mxu0 0.0
        %746 = vmatmul.mubr.f32.gmra.mrb[0].mxu0 %v542
        %v747 = vpop.f32.mrb[0].mxu0
        %v748 = vadd.f32 %v479, %v747
        %v749 = vpop.f32.mrb[0].mxu0
        %750 = vmatprep.mubr.f32.mxu0 0.0
        %751 = vmatmul.mubr.f32.gmra.mrb[0].mxu0 %v545
        %v752 = vpop.f32.mrb[0].mxu0
        %v753 = vadd.f32 %v479, %v752
        %v754 = vpop.f32.mrb[0].mxu0
        %755 = vmatprep.mubr.f32.mxu0 0.0
        %756 = vmatmul.mubr.f32.gmra.mrb[0].mxu0 %v548
        %v757 = vpop.f32.mrb[0].mxu0
        %v758 = vadd.f32 %v479, %v757
        %v759 = vpop.f32.mrb[0].mxu0
        %760 = vmatprep.mubr.f32.mxu0 0.0
        %761 = vmatmul.mubr.f32.gmra.mrb[0].mxu0 %v551
        %v762 = vpop.f32.mrb[0].mxu0
        %v763 = vadd.f32 %v479, %v762
        %v764 = vpop.f32.mrb[0].mxu0
        %765 = vmatprep.mubr.f32.mxu0 0.0
        %766 = vmatmul.mubr.f32.gmra.mrb[0].mxu0 %v554
        %v767 = vpop.f32.mrb[0].mxu0
        %v768 = vadd.f32 %v479, %v767
        %v769 = vpop.f32.mrb[0].mxu0
        %770 = vmatprep.mubr.f32.mxu0 0.0
        %771 = vmatmul.mubr.f32.gmra.mrb[0].mxu0 %v557
        %v772 = vpop.f32.mrb[0].mxu0
        %v773 = vadd.f32 %v479, %v772
        %v774 = vpop.f32.mrb[0].mxu0
        %775 = vmatprep.mubr.f32.mxu0 0.0
        %776 = vmatmul.mubr.f32.gmra.mrb[0].mxu0 %v560
        %v777 = vpop.f32.mrb[0].mxu0
        %v778 = vadd.f32 %v479, %v777
        %v779 = vpop.f32.mrb[0].mxu0
        %780 = vmatprep.mubr.f32.mxu0 0.0
        %781 = vmatmul.mubr.f32.gmra.mrb[0].mxu0 %v563
        %v782 = vpop.f32.mrb[0].mxu0
        %v783 = vadd.f32 %v479, %v782
        %v784 = vpop.f32.mrb[0].mxu0
        %785 = vmatprep.mubr.f32.mxu0 0.0
        %786 = vmatmul.mubr.f32.gmra.mrb[0].mxu0 %v566
        %v787 = vpop.f32.mrb[0].mxu0
        %v788 = vadd.f32 %v479, %v787
        %v789 = vpop.f32.mrb[0].mxu0
        %790 = vmatprep.mubr.f32.mxu0 0.0
        %791 = vmatmul.mubr.f32.gmra.mrb[0].mxu0 %v569
        %v792 = vpop.f32.mrb[0].mxu0
        %v793 = vadd.f32 %v479, %v792
        %v794 = vpop.f32.mrb[0].mxu0
        %795 = vmatprep.mubr.f32.mxu0 0.0
        %796 = vmatmul.mubr.f32.gmra.mrb[0].mxu0 %v572
        %v797 = vpop.f32.mrb[0].mxu0
        %v798 = vadd.f32 %v479, %v797
        %v799 = vpop.f32.mrb[0].mxu0
        %800 = vmatprep.mubr.f32.mxu0 0.0
        %801 = vmatmul.mubr.f32.gmra.mrb[0].mxu0 %v575
        %v802 = vpop.f32.mrb[0].mxu0
        %v803 = vadd.f32 %v479, %v802
        %v804 = vpop.f32.mrb[0].mxu0
        %805 = vdwg.mxu0
        %v806 = vmax.f32 %v648, 0.0
        %v807 = vmax.f32 %v653, 0.0
        %v808 = vmax.f32 %v658, 0.0
        %v809 = vmax.f32 %v663, 0.0
        %v810 = vmax.f32 %v668, 0.0
        %v811 = vmax.f32 %v673, 0.0
        %v812 = vmax.f32 %v678, 0.0
        %v813 = vmax.f32 %v683, 0.0
        %v814 = vmax.f32 %v688, 0.0
        %v815 = vmax.f32 %v693, 0.0
        %v816 = vmax.f32 %v698, 0.0
        %v817 = vmax.f32 %v703, 0.0
        %v818 = vmax.f32 %v708, 0.0
        %v819 = vmax.f32 %v713, 0.0
        %v820 = vmax.f32 %v718, 0.0
        %v821 = vmax.f32 %v723, 0.0
        %v822 = vmax.f32 %v728, 0.0
        %v823 = vmax.f32 %v733, 0.0
        %v824 = vmax.f32 %v738, 0.0
        %v825 = vmax.f32 %v743, 0.0
        %v826 = vmax.f32 %v748, 0.0
        %v827 = vmax.f32 %v753, 0.0
        %v828 = vmax.f32 %v758, 0.0
        %v829 = vmax.f32 %v763, 0.0
        %v830 = vmax.f32 %v768, 0.0
        %v831 = vmax.f32 %v773, 0.0
        %v832 = vmax.f32 %v778, 0.0
        %v833 = vmax.f32 %v783, 0.0
        %v834 = vmax.f32 %v788, 0.0
        %v835 = vmax.f32 %v793, 0.0
        %v836 = vmax.f32 %v798, 0.0
        %v837 = vmax.f32 %v803, 0.0
        %v838 = vlaneseq
        %v839 = vshrl.u32 %v838, 7
        %v840 = vsub.s32 1, %v839
        %v841 = vrot.slane %v475, %v840
        %v842 = vmul.f32 %v806, %v841
        %v843 = vmul.f32 %v807, %v841
        %v844 = vmul.f32 %v808, %v841
        %v845 = vmul.f32 %v809, %v841
        %v846 = vmul.f32 %v810, %v841
        %v847 = vmul.f32 %v811, %v841
        %v848 = vmul.f32 %v812, %v841
        %v849 = vmul.f32 %v813, %v841
        %v850 = vmul.f32 %v814, %v841
        %v851 = vmul.f32 %v815, %v841
        %v852 = vmul.f32 %v816, %v841
        %v853 = vmul.f32 %v817, %v841
        %v854 = vmul.f32 %v818, %v841
        %v855 = vmul.f32 %v819, %v841
        %v856 = vmul.f32 %v820, %v841
        %v857 = vmul.f32 %v821, %v841
        %v858 = vmul.f32 %v822, %v841
        %v859 = vmul.f32 %v823, %v841
        %v860 = vmul.f32 %v824, %v841
        %v861 = vmul.f32 %v825, %v841
        %v862 = vmul.f32 %v826, %v841
        %v863 = vmul.f32 %v827, %v841
        %v864 = vmul.f32 %v828, %v841
        %v865 = vmul.f32 %v829, %v841
        %v866 = vmul.f32 %v830, %v841
        %v867 = vmul.f32 %v831, %v841
        %v868 = vmul.f32 %v832, %v841
        %v869 = vmul.f32 %v833, %v841
        %v870 = vmul.f32 %v834, %v841
        %v871 = vmul.f32 %v835, %v841
        %v872 = vmul.f32 %v836, %v841
        %v873 = vmul.f32 %v837, %v841
        %v874 = vlaneseq
        %v875 = vshrl.u32 %v874, 7
        %v876 = vsub.s32 2, %v875
        %v877 = vrot.slane %v475, %v876
        %v878 = vadd.f32 %v842, %v877
        %v879 = vadd.f32 %v843, %v877
        %v880 = vadd.f32 %v844, %v877
        %v881 = vadd.f32 %v845, %v877
        %v882 = vadd.f32 %v846, %v877
        %v883 = vadd.f32 %v847, %v877
        %v884 = vadd.f32 %v848, %v877
        %v885 = vadd.f32 %v849, %v877
        %v886 = vadd.f32 %v850, %v877
        %v887 = vadd.f32 %v851, %v877
        %v888 = vadd.f32 %v852, %v877
        %v889 = vadd.f32 %v853, %v877
        %v890 = vadd.f32 %v854, %v877
        %v891 = vadd.f32 %v855, %v877
        %v892 = vadd.f32 %v856, %v877
        %v893 = vadd.f32 %v857, %v877
        %v894 = vadd.f32 %v858, %v877
        %v895 = vadd.f32 %v859, %v877
        %v896 = vadd.f32 %v860, %v877
        %v897 = vadd.f32 %v861, %v877
        %v898 = vadd.f32 %v862, %v877
        %v899 = vadd.f32 %v863, %v877
        %v900 = vadd.f32 %v864, %v877
        %v901 = vadd.f32 %v865, %v877
        %v902 = vadd.f32 %v866, %v877
        %v903 = vadd.f32 %v867, %v877
        %v904 = vadd.f32 %v868, %v877
        %v905 = vadd.f32 %v869, %v877
        %v906 = vadd.f32 %v870, %v877
        %v907 = vadd.f32 %v871, %v877
        %v908 = vadd.f32 %v872, %v877
        %v909 = vadd.f32 %v873, %v877
        %vm910 = vcmask 261120
        %911 = vst.msk [vmem:[#allocation2] sm:$0xff] %vm910, 0.0
        %vm912 = vcmask 254976
        %913 = vst.msk [vmem:[#allocation2 + $0x8] sm:$0x3] %vm912, 0.0
        %914 = vst.msk [vmem:[#allocation2 + $0x10] sm:$0xff] %vm910, 0.0
        %915 = vst.msk [vmem:[#allocation2 + $0x18] sm:$0x3] %vm912, 0.0
        %916 = vst.msk [vmem:[#allocation2 + $0x20] sm:$0xff] %vm910, 0.0
        %917 = vst.msk [vmem:[#allocation2 + $0x28] sm:$0x3] %vm912, 0.0
        %918 = vst.msk [vmem:[#allocation2 + $0x30] sm:$0xff] %vm910, 0.0
        %919 = vst.msk [vmem:[#allocation2 + $0x38] sm:$0x3] %vm912, 0.0
        %920 = vst.msk [vmem:[#allocation2 + $0x40] sm:$0xff] %vm910, 0.0
        %921 = vst.msk [vmem:[#allocation2 + $0x48] sm:$0x3] %vm912, 0.0
        %922 = vst.msk [vmem:[#allocation2 + $0x50] sm:$0xff] %vm910, 0.0
        %923 = vst.msk [vmem:[#allocation2 + $0x58] sm:$0x3] %vm912, 0.0
        %924 = vst.msk [vmem:[#allocation2 + $0x60] sm:$0xff] %vm910, 0.0
        %925 = vst.msk [vmem:[#allocation2 + $0x68] sm:$0x3] %vm912, 0.0
        %926 = vst.msk [vmem:[#allocation2 + $0x70] sm:$0xff] %vm910, 0.0
        %927 = vst.msk [vmem:[#allocation2 + $0x78] sm:$0x3] %vm912, 0.0
        %928 = vst.msk [vmem:[#allocation2 + $0x80] sm:$0xff] %vm910, 0.0
        %929 = vst.msk [vmem:[#allocation2 + $0x88] sm:$0x3] %vm912, 0.0
        %930 = vst.msk [vmem:[#allocation2 + $0x90] sm:$0xff] %vm910, 0.0
        %931 = vst.msk [vmem:[#allocation2 + $0x98] sm:$0x3] %vm912, 0.0
        %v932 = vmax.f32 %v878, %v880
        %v933 = vmax.f32 %v879, %v881
        %v934 = vmax.f32 %v882, %v884
        %v935 = vmax.f32 %v883, %v885
        %v936 = vmax.f32 %v886, %v888
        %v937 = vmax.f32 %v887, %v889
        %v938 = vmax.f32 %v890, %v892
        %v939 = vmax.f32 %v891, %v893
        %v940 = vmax.f32 %v894, %v896
        %v941 = vmax.f32 %v895, %v897
        %v942 = vmax.f32 %v898, %v900
        %v943 = vmax.f32 %v899, %v901
        %v944 = vmax.f32 %v902, %v904
        %v945 = vmax.f32 %v903, %v905
        %v946 = vmax.f32 %v906, %v908
        %v947 = vmax.f32 %v907, %v909
        %v956 = vrot.slane %v932, 1
        %v957 = vrot.slane %v934, 1
        %v958 = vrot.slane %v936, 1
        %v959 = vrot.slane %v938, 1
        %v960 = vrot.slane %v940, 1
        %v961 = vrot.slane %v942, 1
        %v962 = vrot.slane %v944, 1
        %v963 = vrot.slane %v946, 1
        %v972 = vmax.f32 %v932, %v956
        %v973 = vmax.f32 %v934, %v957
        %v974 = vmax.f32 %v936, %v958
        %v975 = vmax.f32 %v938, %v959
        %v976 = vmax.f32 %v940, %v960
        %v977 = vmax.f32 %v942, %v961
        %v978 = vmax.f32 %v944, %v962
        %v979 = vmax.f32 %v946, %v963
        %s980 = scalar_lea.vmem [#allocation2], 16
        %vm981 = vcmask 253952
        %982 = vst.msk [vmem:[%s980 + $0x1] sm:$0x1] %vm981, %v972
        %983 = vst.msk [vmem:[%s980 + $0x11] sm:$0x1] %vm981, %v973
        %984 = vst.msk [vmem:[%s980 + $0x21] sm:$0x1] %vm981, %v974
        %985 = vst.msk [vmem:[%s980 + $0x31] sm:$0x1] %vm981, %v975
        %986 = vst.msk [vmem:[%s980 + $0x41] sm:$0x1] %vm981, %v976
        %987 = vst.msk [vmem:[%s980 + $0x51] sm:$0x1] %vm981, %v977
        %988 = vst.msk [vmem:[%s980 + $0x61] sm:$0x1] %vm981, %v978
        %989 = vst.msk [vmem:[%s980 + $0x71] sm:$0x1] %vm981, %v979
        %vm990 = vcmask 256002
        %991 = vst.msk [vmem:[%s980] sm:$0x4] %vm990, %v972
        %992 = vst.msk [vmem:[%s980 + $0x10] sm:$0x4] %vm990, %v973
        %993 = vst.msk [vmem:[%s980 + $0x20] sm:$0x4] %vm990, %v974
        %994 = vst.msk [vmem:[%s980 + $0x30] sm:$0x4] %vm990, %v975
        %995 = vst.msk [vmem:[%s980 + $0x40] sm:$0x4] %vm990, %v976
        %996 = vst.msk [vmem:[%s980 + $0x50] sm:$0x4] %vm990, %v977
        %997 = vst.msk [vmem:[%s980 + $0x60] sm:$0x4] %vm990, %v978
        %998 = vst.msk [vmem:[%s980 + $0x70] sm:$0x4] %vm990, %v979
        %vm999 = vcmask 258052
        %1000 = vst.msk [vmem:[%s980 - $0x1] sm:$0x10] %vm999, %v972
        %1001 = vst.msk [vmem:[%s980 + $0xf] sm:$0x10] %vm999, %v973
        %1002 = vst.msk [vmem:[%s980 + $0x1f] sm:$0x10] %vm999, %v974
        %1003 = vst.msk [vmem:[%s980 + $0x2f] sm:$0x10] %vm999, %v975
        %1004 = vst.msk [vmem:[%s980 + $0x3f] sm:$0x10] %vm999, %v976
        %1005 = vst.msk [vmem:[%s980 + $0x4f] sm:$0x10] %vm999, %v977
        %1006 = vst.msk [vmem:[%s980 + $0x5f] sm:$0x10] %vm999, %v978
        %1007 = vst.msk [vmem:[%s980 + $0x6f] sm:$0x10] %vm999, %v979
        %vm1008 = vcmask 260102
        %1009 = vst.msk [vmem:[%s980 - $0x2] sm:$0x40] %vm1008, %v972
        %1010 = vst.msk [vmem:[%s980 + $0xe] sm:$0x40] %vm1008, %v973
        %1011 = vst.msk [vmem:[%s980 + $0x1e] sm:$0x40] %vm1008, %v974
        %1012 = vst.msk [vmem:[%s980 + $0x2e] sm:$0x40] %vm1008, %v975
        %1013 = vst.msk [vmem:[%s980 + $0x3e] sm:$0x40] %vm1008, %v976
        %1014 = vst.msk [vmem:[%s980 + $0x4e] sm:$0x40] %vm1008, %v977
        %1015 = vst.msk [vmem:[%s980 + $0x5e] sm:$0x40] %vm1008, %v978
        %1016 = vst.msk [vmem:[%s980 + $0x6e] sm:$0x40] %vm1008, %v979
        %v1025 = vrot.slane %v933, 1
        %v1026 = vrot.slane %v935, 1
        %v1027 = vrot.slane %v937, 1
        %v1028 = vrot.slane %v939, 1
        %v1029 = vrot.slane %v941, 1
        %v1030 = vrot.slane %v943, 1
        %v1031 = vrot.slane %v945, 1
        %v1032 = vrot.slane %v947, 1
        %v1041 = vmax.f32 %v933, %v1025
        %v1042 = vmax.f32 %v935, %v1026
        %v1043 = vmax.f32 %v937, %v1027
        %v1044 = vmax.f32 %v939, %v1028
        %v1045 = vmax.f32 %v941, %v1029
        %v1046 = vmax.f32 %v943, %v1030
        %v1047 = vmax.f32 %v945, %v1031
        %v1048 = vmax.f32 %v947, %v1032
        %1049 = vst.msk [vmem:[%s980 + $0x5] sm:$0x1] %vm981, %v1041
        %1050 = vst.msk [vmem:[%s980 + $0x15] sm:$0x1] %vm981, %v1042
        %1051 = vst.msk [vmem:[%s980 + $0x25] sm:$0x1] %vm981, %v1043
        %1052 = vst.msk [vmem:[%s980 + $0x35] sm:$0x1] %vm981, %v1044
        %1053 = vst.msk [vmem:[%s980 + $0x45] sm:$0x1] %vm981, %v1045
        %1054 = vst.msk [vmem:[%s980 + $0x55] sm:$0x1] %vm981, %v1046
        %1055 = vst.msk [vmem:[%s980 + $0x65] sm:$0x1] %vm981, %v1047
        %1056 = vst.msk [vmem:[%s980 + $0x75] sm:$0x1] %vm981, %v1048
        %1057 = vst.msk [vmem:[%s980 + $0x4] sm:$0x4] %vm990, %v1041
        %1058 = vst.msk [vmem:[%s980 + $0x14] sm:$0x4] %vm990, %v1042
        %1059 = vst.msk [vmem:[%s980 + $0x24] sm:$0x4] %vm990, %v1043
        %1060 = vst.msk [vmem:[%s980 + $0x34] sm:$0x4] %vm990, %v1044
        %1061 = vst.msk [vmem:[%s980 + $0x44] sm:$0x4] %vm990, %v1045
        %1062 = vst.msk [vmem:[%s980 + $0x54] sm:$0x4] %vm990, %v1046
        %1063 = vst.msk [vmem:[%s980 + $0x64] sm:$0x4] %vm990, %v1047
        %1064 = vst.msk [vmem:[%s980 + $0x74] sm:$0x4] %vm990, %v1048
        %1065 = vst.msk [vmem:[%s980 + $0x3] sm:$0x10] %vm999, %v1041
        %1066 = vst.msk [vmem:[%s980 + $0x13] sm:$0x10] %vm999, %v1042
        %1067 = vst.msk [vmem:[%s980 + $0x23] sm:$0x10] %vm999, %v1043
        %1068 = vst.msk [vmem:[%s980 + $0x33] sm:$0x10] %vm999, %v1044
        %1069 = vst.msk [vmem:[%s980 + $0x43] sm:$0x10] %vm999, %v1045
        %1070 = vst.msk [vmem:[%s980 + $0x53] sm:$0x10] %vm999, %v1046
        %1071 = vst.msk [vmem:[%s980 + $0x63] sm:$0x10] %vm999, %v1047
        %1072 = vst.msk [vmem:[%s980 + $0x73] sm:$0x10] %vm999, %v1048
        %1073 = vst.msk [vmem:[%s980 + $0x2] sm:$0x40] %vm1008, %v1041
        %1074 = vst.msk [vmem:[%s980 + $0x12] sm:$0x40] %vm1008, %v1042
        %1075 = vst.msk [vmem:[%s980 + $0x22] sm:$0x40] %vm1008, %v1043
        %1076 = vst.msk [vmem:[%s980 + $0x32] sm:$0x40] %vm1008, %v1044
        %1077 = vst.msk [vmem:[%s980 + $0x42] sm:$0x40] %vm1008, %v1045
        %1078 = vst.msk [vmem:[%s980 + $0x52] sm:$0x40] %vm1008, %v1046
        %1079 = vst.msk [vmem:[%s980 + $0x62] sm:$0x40] %vm1008, %v1047
        %1080 = vst.msk [vmem:[%s980 + $0x72] sm:$0x40] %vm1008, %v1048
        %v1081 = vld [vmem:[#allocation2] sm:$0xff]
        %v1082 = vld [vmem:[#allocation2 + $0x10] sm:$0xff]
        %v1083 = vld [vmem:[#allocation2 + $0x20] sm:$0xff]
        %v1084 = vld [vmem:[#allocation2 + $0x30] sm:$0xff]
        %v1085 = vld [vmem:[#allocation2 + $0x40] sm:$0xff]
        %v1086 = vld [vmem:[#allocation2 + $0x50] sm:$0xff]
        %v1087 = vld [vmem:[#allocation2 + $0x60] sm:$0xff]
        %v1088 = vld [vmem:[#allocation2 + $0x70] sm:$0xff]
        %1089 = vst.msk [vmem:[#allocation3] sm:$0xff] %vm910, %v1081
        %1090 = vst.msk [vmem:[#allocation3 + $0x18] sm:$0xff] %vm910, %v1082
        %1091 = vst.msk [vmem:[#allocation3 + $0x30] sm:$0xff] %vm910, %v1083
        %1092 = vst.msk [vmem:[#allocation3 + $0x48] sm:$0xff] %vm910, %v1084
        %1093 = vst.msk [vmem:[#allocation3 + $0x60] sm:$0xff] %vm910, %v1085
        %1094 = vst.msk [vmem:[#allocation3 + $0x78] sm:$0xff] %vm910, %v1086
        %1095 = vst.msk [vmem:[#allocation3 + $0x90] sm:$0xff] %vm910, %v1087
        %1096 = vst.msk [vmem:[#allocation3 + $0xa8] sm:$0xff] %vm910, %v1088
        %v1097 = vld [vmem:[#allocation2 + $0x1] sm:$0xff]
        %v1098 = vld [vmem:[#allocation2 + $0x11] sm:$0xff]
        %v1099 = vld [vmem:[#allocation2 + $0x21] sm:$0xff]
        %v1100 = vld [vmem:[#allocation2 + $0x31] sm:$0xff]
        %v1101 = vld [vmem:[#allocation2 + $0x41] sm:$0xff]
        %v1102 = vld [vmem:[#allocation2 + $0x51] sm:$0xff]
        %v1103 = vld [vmem:[#allocation2 + $0x61] sm:$0xff]
        %v1104 = vld [vmem:[#allocation2 + $0x71] sm:$0xff]
        %1113 = vrot.lane.b32.xlu0 %v1097, 32
        %v1114 = vpop.permute.xlu0 %1113
        %1115 = vrot.lane.b32.xlu0 %v1098, 32
        %v1116 = vpop.permute.xlu0 %1115
        %1117 = vrot.lane.b32.xlu0 %v1099, 32
        %v1118 = vpop.permute.xlu0 %1117
        %1119 = vrot.lane.b32.xlu0 %v1100, 32
        %v1120 = vpop.permute.xlu0 %1119
        %1121 = vrot.lane.b32.xlu0 %v1101, 32
        %v1122 = vpop.permute.xlu0 %1121
        %1123 = vrot.lane.b32.xlu0 %v1102, 32
        %v1124 = vpop.permute.xlu0 %1123
        %1125 = vrot.lane.b32.xlu0 %v1103, 32
        %v1126 = vpop.permute.xlu0 %1125
        %1127 = vrot.lane.b32.xlu0 %v1104, 32
        %v1128 = vpop.permute.xlu0 %1127
        %vm1137 = vcmask 523520
        %1138 = vst.msk [vmem:[#allocation3] sm:$0xff] %vm1137, %v1114
        %1139 = vst.msk [vmem:[#allocation3 + $0x18] sm:$0xff] %vm1137, %v1116
        %1140 = vst.msk [vmem:[#allocation3 + $0x30] sm:$0xff] %vm1137, %v1118
        %1141 = vst.msk [vmem:[#allocation3 + $0x48] sm:$0xff] %vm1137, %v1120
        %1142 = vst.msk [vmem:[#allocation3 + $0x60] sm:$0xff] %vm1137, %v1122
        %1143 = vst.msk [vmem:[#allocation3 + $0x78] sm:$0xff] %vm1137, %v1124
        %1144 = vst.msk [vmem:[#allocation3 + $0x90] sm:$0xff] %vm1137, %v1126
        %1145 = vst.msk [vmem:[#allocation3 + $0xa8] sm:$0xff] %vm1137, %v1128
        %v1146 = vld [vmem:[#allocation2 + $0x2] sm:$0xff]
        %v1147 = vld [vmem:[#allocation2 + $0x12] sm:$0xff]
        %v1148 = vld [vmem:[#allocation2 + $0x22] sm:$0xff]
        %v1149 = vld [vmem:[#allocation2 + $0x32] sm:$0xff]
        %v1150 = vld [vmem:[#allocation2 + $0x42] sm:$0xff]
        %v1151 = vld [vmem:[#allocation2 + $0x52] sm:$0xff]
        %v1152 = vld [vmem:[#allocation2 + $0x62] sm:$0xff]
        %v1153 = vld [vmem:[#allocation2 + $0x72] sm:$0xff]
        %1162 = vrot.lane.b32.xlu0 %v1146, 64
        %v1163 = vpop.permute.xlu0 %1162
        %1164 = vrot.lane.b32.xlu0 %v1147, 64
        %v1165 = vpop.permute.xlu0 %1164
        %1166 = vrot.lane.b32.xlu0 %v1148, 64
        %v1167 = vpop.permute.xlu0 %1166
        %1168 = vrot.lane.b32.xlu0 %v1149, 64
        %v1169 = vpop.permute.xlu0 %1168
        %1170 = vrot.lane.b32.xlu0 %v1150, 64
        %v1171 = vpop.permute.xlu0 %1170
        %1172 = vrot.lane.b32.xlu0 %v1151, 64
        %v1173 = vpop.permute.xlu0 %1172
        %1174 = vrot.lane.b32.xlu0 %v1152, 64
        %v1175 = vpop.permute.xlu0 %1174
        %1176 = vrot.lane.b32.xlu0 %v1153, 64
        %v1177 = vpop.permute.xlu0 %1176
        %vm1186 = vcmask 785920
        %1187 = vst.msk [vmem:[#allocation3] sm:$0xff] %vm1186, %v1163
        %1188 = vst.msk [vmem:[#allocation3 + $0x18] sm:$0xff] %vm1186, %v1165
        %1189 = vst.msk [vmem:[#allocation3 + $0x30] sm:$0xff] %vm1186, %v1167
        %1190 = vst.msk [vmem:[#allocation3 + $0x48] sm:$0xff] %vm1186, %v1169
        %1191 = vst.msk [vmem:[#allocation3 + $0x60] sm:$0xff] %vm1186, %v1171
        %1192 = vst.msk [vmem:[#allocation3 + $0x78] sm:$0xff] %vm1186, %v1173
        %1193 = vst.msk [vmem:[#allocation3 + $0x90] sm:$0xff] %vm1186, %v1175
        %1194 = vst.msk [vmem:[#allocation3 + $0xa8] sm:$0xff] %vm1186, %v1177
        %v1195 = vld [vmem:[%s980] sm:$0xff]
        %v1196 = vld [vmem:[%s980 + $0x10] sm:$0xff]
        %v1197 = vld [vmem:[%s980 + $0x20] sm:$0xff]
        %v1198 = vld [vmem:[%s980 + $0x30] sm:$0xff]
        %v1199 = vld [vmem:[%s980 + $0x40] sm:$0xff]
        %v1200 = vld [vmem:[%s980 + $0x50] sm:$0xff]
        %v1201 = vld [vmem:[%s980 + $0x60] sm:$0xff]
        %v1202 = vld [vmem:[%s980 + $0x70] sm:$0xff]
        %1211 = vrot.lane.b32.xlu0 %v1195, 96
        %v1212 = vpop.permute.xlu0 %1211
        %1213 = vrot.lane.b32.xlu0 %v1196, 96
        %v1214 = vpop.permute.xlu0 %1213
        %1215 = vrot.lane.b32.xlu0 %v1197, 96
        %v1216 = vpop.permute.xlu0 %1215
        %1217 = vrot.lane.b32.xlu0 %v1198, 96
        %v1218 = vpop.permute.xlu0 %1217
        %1219 = vrot.lane.b32.xlu0 %v1199, 96
        %v1220 = vpop.permute.xlu0 %1219
        %1221 = vrot.lane.b32.xlu0 %v1200, 96
        %v1222 = vpop.permute.xlu0 %1221
        %1223 = vrot.lane.b32.xlu0 %v1201, 96
        %v1224 = vpop.permute.xlu0 %1223
        %1225 = vrot.lane.b32.xlu0 %v1202, 96
        %v1226 = vpop.permute.xlu0 %1225
        %vm1235 = vcmask 1048320
        %1236 = vst.msk [vmem:[#allocation3] sm:$0xff] %vm1235, %v1212
        %1237 = vst.msk [vmem:[#allocation3 + $0x18] sm:$0xff] %vm1235, %v1214
        %1238 = vst.msk [vmem:[#allocation3 + $0x30] sm:$0xff] %vm1235, %v1216
        %1239 = vst.msk [vmem:[#allocation3 + $0x48] sm:$0xff] %vm1235, %v1218
        %1240 = vst.msk [vmem:[#allocation3 + $0x60] sm:$0xff] %vm1235, %v1220
        %1241 = vst.msk [vmem:[#allocation3 + $0x78] sm:$0xff] %vm1235, %v1222
        %1242 = vst.msk [vmem:[#allocation3 + $0x90] sm:$0xff] %vm1235, %v1224
        %1243 = vst.msk [vmem:[#allocation3 + $0xa8] sm:$0xff] %vm1235, %v1226
        %v1244 = vld [vmem:[%s980 + $0x1] sm:$0xff]
        %v1245 = vld [vmem:[%s980 + $0x11] sm:$0xff]
        %v1246 = vld [vmem:[%s980 + $0x21] sm:$0xff]
        %v1247 = vld [vmem:[%s980 + $0x31] sm:$0xff]
        %v1248 = vld [vmem:[%s980 + $0x41] sm:$0xff]
        %v1249 = vld [vmem:[%s980 + $0x51] sm:$0xff]
        %v1250 = vld [vmem:[%s980 + $0x61] sm:$0xff]
        %v1251 = vld [vmem:[%s980 + $0x71] sm:$0xff]
        %1252 = vst.msk [vmem:[#allocation3 + $0x8] sm:$0xff] %vm910, %v1244
        %1253 = vst.msk [vmem:[#allocation3 + $0x20] sm:$0xff] %vm910, %v1245
        %1254 = vst.msk [vmem:[#allocation3 + $0x38] sm:$0xff] %vm910, %v1246
        %1255 = vst.msk [vmem:[#allocation3 + $0x50] sm:$0xff] %vm910, %v1247
        %1256 = vst.msk [vmem:[#allocation3 + $0x68] sm:$0xff] %vm910, %v1248
        %1257 = vst.msk [vmem:[#allocation3 + $0x80] sm:$0xff] %vm910, %v1249
        %1258 = vst.msk [vmem:[#allocation3 + $0x98] sm:$0xff] %vm910, %v1250
        %1259 = vst.msk [vmem:[#allocation3 + $0xb0] sm:$0xff] %vm910, %v1251
        %v1260 = vld [vmem:[%s980 + $0x2] sm:$0xff]
        %v1261 = vld [vmem:[%s980 + $0x12] sm:$0xff]
        %v1262 = vld [vmem:[%s980 + $0x22] sm:$0xff]
        %v1263 = vld [vmem:[%s980 + $0x32] sm:$0xff]
        %v1264 = vld [vmem:[%s980 + $0x42] sm:$0xff]
        %v1265 = vld [vmem:[%s980 + $0x52] sm:$0xff]
        %v1266 = vld [vmem:[%s980 + $0x62] sm:$0xff]
        %v1267 = vld [vmem:[%s980 + $0x72] sm:$0xff]
        %1276 = vrot.lane.b32.xlu0 %v1260, 32
        %v1277 = vpop.permute.xlu0 %1276
        %1278 = vrot.lane.b32.xlu0 %v1261, 32
        %v1279 = vpop.permute.xlu0 %1278
        %1280 = vrot.lane.b32.xlu0 %v1262, 32
        %v1281 = vpop.permute.xlu0 %1280
        %1282 = vrot.lane.b32.xlu0 %v1263, 32
        %v1283 = vpop.permute.xlu0 %1282
        %1284 = vrot.lane.b32.xlu0 %v1264, 32
        %v1285 = vpop.permute.xlu0 %1284
        %1286 = vrot.lane.b32.xlu0 %v1265, 32
        %v1287 = vpop.permute.xlu0 %1286
        %1288 = vrot.lane.b32.xlu0 %v1266, 32
        %v1289 = vpop.permute.xlu0 %1288
        %1290 = vrot.lane.b32.xlu0 %v1267, 32
        %v1291 = vpop.permute.xlu0 %1290
        %1300 = vst.msk [vmem:[#allocation3 + $0x8] sm:$0xff] %vm1137, %v1277
        %1301 = vst.msk [vmem:[#allocation3 + $0x20] sm:$0xff] %vm1137, %v1279
        %1302 = vst.msk [vmem:[#allocation3 + $0x38] sm:$0xff] %vm1137, %v1281
        %1303 = vst.msk [vmem:[#allocation3 + $0x50] sm:$0xff] %vm1137, %v1283
        %1304 = vst.msk [vmem:[#allocation3 + $0x68] sm:$0xff] %vm1137, %v1285
        %1305 = vst.msk [vmem:[#allocation3 + $0x80] sm:$0xff] %vm1137, %v1287
        %1306 = vst.msk [vmem:[#allocation3 + $0x98] sm:$0xff] %vm1137, %v1289
        %1307 = vst.msk [vmem:[#allocation3 + $0xb0] sm:$0xff] %vm1137, %v1291
        %s1308 = scalar_lea.vmem [#allocation2], 32
        %v1309 = vld [vmem:[%s1308] sm:$0xff]
        %v1310 = vld [vmem:[%s1308 + $0x10] sm:$0xff]
        %v1311 = vld [vmem:[%s1308 + $0x20] sm:$0xff]
        %v1312 = vld [vmem:[%s1308 + $0x30] sm:$0xff]
        %v1313 = vld [vmem:[%s1308 + $0x40] sm:$0xff]
        %v1314 = vld [vmem:[%s1308 + $0x50] sm:$0xff]
        %v1315 = vld [vmem:[%s1308 + $0x60] sm:$0xff]
        %v1316 = vld [vmem:[%s1308 + $0x70] sm:$0xff]
        %1325 = vrot.lane.b32.xlu0 %v1309, 64
        %v1326 = vpop.permute.xlu0 %1325
        %1327 = vrot.lane.b32.xlu0 %v1310, 64
        %v1328 = vpop.permute.xlu0 %1327
        %1329 = vrot.lane.b32.xlu0 %v1311, 64
        %v1330 = vpop.permute.xlu0 %1329
        %1331 = vrot.lane.b32.xlu0 %v1312, 64
        %v1332 = vpop.permute.xlu0 %1331
        %1333 = vrot.lane.b32.xlu0 %v1313, 64
        %v1334 = vpop.permute.xlu0 %1333
        %1335 = vrot.lane.b32.xlu0 %v1314, 64
        %v1336 = vpop.permute.xlu0 %1335
        %1337 = vrot.lane.b32.xlu0 %v1315, 64
        %v1338 = vpop.permute.xlu0 %1337
        %1339 = vrot.lane.b32.xlu0 %v1316, 64
        %v1340 = vpop.permute.xlu0 %1339
        %1349 = vst.msk [vmem:[#allocation3 + $0x8] sm:$0xff] %vm1186, %v1326
        %1350 = vst.msk [vmem:[#allocation3 + $0x20] sm:$0xff] %vm1186, %v1328
        %1351 = vst.msk [vmem:[#allocation3 + $0x38] sm:$0xff] %vm1186, %v1330
        %1352 = vst.msk [vmem:[#allocation3 + $0x50] sm:$0xff] %vm1186, %v1332
        %1353 = vst.msk [vmem:[#allocation3 + $0x68] sm:$0xff] %vm1186, %v1334
        %1354 = vst.msk [vmem:[#allocation3 + $0x80] sm:$0xff] %vm1186, %v1336
        %1355 = vst.msk [vmem:[#allocation3 + $0x98] sm:$0xff] %vm1186, %v1338
        %1356 = vst.msk [vmem:[#allocation3 + $0xb0] sm:$0xff] %vm1186, %v1340
        %v1357 = vld [vmem:[%s1308 + $0x1] sm:$0xff]
        %v1358 = vld [vmem:[%s1308 + $0x11] sm:$0xff]
        %v1359 = vld [vmem:[%s1308 + $0x21] sm:$0xff]
        %v1360 = vld [vmem:[%s1308 + $0x31] sm:$0xff]
        %v1361 = vld [vmem:[%s1308 + $0x41] sm:$0xff]
        %v1362 = vld [vmem:[%s1308 + $0x51] sm:$0xff]
        %v1363 = vld [vmem:[%s1308 + $0x61] sm:$0xff]
        %v1364 = vld [vmem:[%s1308 + $0x71] sm:$0xff]
        %1373 = vrot.lane.b32.xlu0 %v1357, 96
        %v1374 = vpop.permute.xlu0 %1373
        %1375 = vrot.lane.b32.xlu0 %v1358, 96
        %v1376 = vpop.permute.xlu0 %1375
        %1377 = vrot.lane.b32.xlu0 %v1359, 96
        %v1378 = vpop.permute.xlu0 %1377
        %1379 = vrot.lane.b32.xlu0 %v1360, 96
        %v1380 = vpop.permute.xlu0 %1379
        %1381 = vrot.lane.b32.xlu0 %v1361, 96
        %v1382 = vpop.permute.xlu0 %1381
        %1383 = vrot.lane.b32.xlu0 %v1362, 96
        %v1384 = vpop.permute.xlu0 %1383
        %1385 = vrot.lane.b32.xlu0 %v1363, 96
        %v1386 = vpop.permute.xlu0 %1385
        %1387 = vrot.lane.b32.xlu0 %v1364, 96
        %v1388 = vpop.permute.xlu0 %1387
        %1397 = vst.msk [vmem:[#allocation3 + $0x8] sm:$0xff] %vm1235, %v1374
        %1398 = vst.msk [vmem:[#allocation3 + $0x20] sm:$0xff] %vm1235, %v1376
        %1399 = vst.msk [vmem:[#allocation3 + $0x38] sm:$0xff] %vm1235, %v1378
        %1400 = vst.msk [vmem:[#allocation3 + $0x50] sm:$0xff] %vm1235, %v1380
        %1401 = vst.msk [vmem:[#allocation3 + $0x68] sm:$0xff] %vm1235, %v1382
        %1402 = vst.msk [vmem:[#allocation3 + $0x80] sm:$0xff] %vm1235, %v1384
        %1403 = vst.msk [vmem:[#allocation3 + $0x98] sm:$0xff] %vm1235, %v1386
        %1404 = vst.msk [vmem:[#allocation3 + $0xb0] sm:$0xff] %vm1235, %v1388
        %v1405 = vld [vmem:[%s1308 + $0x2] sm:$0xff]
        %v1406 = vld [vmem:[%s1308 + $0x12] sm:$0xff]
        %v1407 = vld [vmem:[%s1308 + $0x22] sm:$0xff]
        %v1408 = vld [vmem:[%s1308 + $0x32] sm:$0xff]
        %v1409 = vld [vmem:[%s1308 + $0x42] sm:$0xff]
        %v1410 = vld [vmem:[%s1308 + $0x52] sm:$0xff]
        %v1411 = vld [vmem:[%s1308 + $0x62] sm:$0xff]
        %v1412 = vld [vmem:[%s1308 + $0x72] sm:$0xff]
        %1413 = vst.msk [vmem:[#allocation3 + $0x10] sm:$0xff] %vm910, %v1405
        %1414 = vst.msk [vmem:[#allocation3 + $0x28] sm:$0xff] %vm910, %v1406
        %1415 = vst.msk [vmem:[#allocation3 + $0x40] sm:$0xff] %vm910, %v1407
        %1416 = vst.msk [vmem:[#allocation3 + $0x58] sm:$0xff] %vm910, %v1408
        %1417 = vst.msk [vmem:[#allocation3 + $0x70] sm:$0xff] %vm910, %v1409
        %1418 = vst.msk [vmem:[#allocation3 + $0x88] sm:$0xff] %vm910, %v1410
        %1419 = vst.msk [vmem:[#allocation3 + $0xa0] sm:$0xff] %vm910, %v1411
        %1420 = vst.msk [vmem:[#allocation3 + $0xb8] sm:$0xff] %vm910, %v1412
        %v1421 = vld [vmem:[#allocation3] sm:$0xff]
        %v1422 = vld [vmem:[#allocation3 + $0x8] sm:$0xff]
        %v1423 = vld [vmem:[#allocation3 + $0x10] sm:$0xff]
        %v1424 = vld [vmem:[#allocation3 + $0x18] sm:$0xff]
        %v1425 = vld [vmem:[#allocation3 + $0x20] sm:$0xff]
        %v1426 = vld [vmem:[#allocation3 + $0x28] sm:$0xff]
        %v1427 = vld [vmem:[#allocation3 + $0x30] sm:$0xff]
        %v1428 = vld [vmem:[#allocation3 + $0x38] sm:$0xff]
        %v1429 = vld [vmem:[#allocation3 + $0x40] sm:$0xff]
        %v1430 = vld [vmem:[#allocation3 + $0x48] sm:$0xff]
        %v1431 = vld [vmem:[#allocation3 + $0x50] sm:$0xff]
        %v1432 = vld [vmem:[#allocation3 + $0x58] sm:$0xff]
        %v1433 = vld [vmem:[#allocation3 + $0x60] sm:$0xff]
        %v1434 = vld [vmem:[#allocation3 + $0x68] sm:$0xff]
        %v1435 = vld [vmem:[#allocation3 + $0x70] sm:$0xff]
        %v1436 = vld [vmem:[#allocation3 + $0x78] sm:$0xff]
        %v1437 = vld [vmem:[#allocation3 + $0x80] sm:$0xff]
        %v1438 = vld [vmem:[#allocation3 + $0x88] sm:$0xff]
        %v1439 = vld [vmem:[#allocation3 + $0x90] sm:$0xff]
        %v1440 = vld [vmem:[#allocation3 + $0x98] sm:$0xff]
        %v1441 = vld [vmem:[#allocation3 + $0xa0] sm:$0xff]
        %v1442 = vld [vmem:[#allocation3 + $0xa8] sm:$0xff]
        %v1443 = vld [vmem:[#allocation3 + $0xb0] sm:$0xff]
        %v1444 = vld [vmem:[#allocation3 + $0xb8] sm:$0xff]
        %v1445 = vpack.c.bf16 %v1424, %v1421
        %v1446 = vpack.c.bf16 %v1425, %v1422
        %v1447 = vpack.c.bf16 %v1426, %v1423
        %v1448 = vpack.c.bf16 %v1430, %v1427
        %v1449 = vpack.c.bf16 %v1431, %v1428
        %v1450 = vpack.c.bf16 %v1432, %v1429
        %v1451 = vpack.c.bf16 %v1436, %v1433
        %v1452 = vpack.c.bf16 %v1437, %v1434
        %v1453 = vpack.c.bf16 %v1438, %v1435
        %v1454 = vpack.c.bf16 %v1442, %v1439
        %v1455 = vpack.c.bf16 %v1443, %v1440
        %v1456 = vpack.c.bf16 %v1444, %v1441
        %v1457 = vld [vmem:[%s3] sm:$0xf]
        %v1458 = vld [vmem:[%s3 + $0x4] sm:$0xf]
        %v1459 = vld [vmem:[%s3 + $0x8] sm:$0xf]
        %v1460 = vld [vmem:[%s3 + $0xc] sm:$0xf]
        %v1461 = vld [vmem:[%s3 + $0x10] sm:$0xf]
        %v1462 = vld [vmem:[%s3 + $0x14] sm:$0xf]
        %v1463 = vld [vmem:[%s3 + $0x18] sm:$0xf]
        %v1464 = vld [vmem:[%s3 + $0x1c] sm:$0xf]
        %v1465 = vld [vmem:[%s3 + $0x20] sm:$0xf]
        %v1466 = vld [vmem:[%s3 + $0x24] sm:$0xf]
        %v1467 = vld [vmem:[%s3 + $0x28] sm:$0xf]
        %v1468 = vld [vmem:[%s3 + $0x2c] sm:$0xf]
        %v1469 = vld [vmem:[%s3 + $0x30] sm:$0xf]
        %v1470 = vld [vmem:[%s3 + $0x34] sm:$0xf]
        %v1471 = vld [vmem:[%s3 + $0x38] sm:$0xf]
        %v1472 = vld [vmem:[%s3 + $0x3c] sm:$0xf]
        %v1473 = vld [vmem:[%s3 + $0x40] sm:$0xf]
        %v1474 = vld [vmem:[%s3 + $0x44] sm:$0xf]
        %v1475 = vld [vmem:[%s3 + $0x48] sm:$0xf]
        %v1476 = vld [vmem:[%s3 + $0x4c] sm:$0xf]
        %v1477 = vld [vmem:[%s3 + $0x50] sm:$0xf]
        %v1478 = vld [vmem:[%s3 + $0x54] sm:$0xf]
        %v1479 = vld [vmem:[%s3 + $0x58] sm:$0xf]
        %v1480 = vld [vmem:[%s3 + $0x5c] sm:$0xf]
        %v1481 = vld [vmem:[%s3 + $0x60] sm:$0xf]
        %v1482 = vld [vmem:[%s3 + $0x64] sm:$0xf]
        %v1483 = vld [vmem:[%s3 + $0x68] sm:$0xf]
        %v1484 = vld [vmem:[%s3 + $0x6c] sm:$0xf]
        %v1485 = vld [vmem:[%s3 + $0x70] sm:$0xf]
        %v1486 = vld [vmem:[%s3 + $0x74] sm:$0xf]
        %v1487 = vld [vmem:[%s3 + $0x78] sm:$0xf]
        %v1488 = vld [vmem:[%s3 + $0x7c] sm:$0xf]
        %v1489 = vld [vmem:[%s3 + $0x80] sm:$0xf]
        %v1490 = vld [vmem:[%s3 + $0x84] sm:$0xf]
        %v1491 = vld [vmem:[%s3 + $0x88] sm:$0xf]
        %v1492 = vld [vmem:[%s3 + $0x8c] sm:$0xf]
        %v1493 = vld [vmem:[%s4] sm:$0x7]
        %v1494 = vlaneseq
        %v1495 = vshrl.u32 %v1494, 7
        %v1496 = vsub.s32 0, %v1495
        %v1497 = vrot.slane %v1493, %v1496
        %v1534 = vunpack.c.l.b16 %v1457
        %v1535 = vunpack.c.l.b16 %v1458
        %v1536 = vunpack.c.l.b16 %v1459
        %v1537 = vunpack.c.l.b16 %v1460
        %v1538 = vunpack.c.l.b16 %v1461
        %v1539 = vunpack.c.l.b16 %v1462
        %v1540 = vunpack.c.l.b16 %v1463
        %v1541 = vunpack.c.l.b16 %v1464
        %v1542 = vunpack.c.l.b16 %v1465
        %v1543 = vunpack.c.l.b16 %v1466
        %v1544 = vunpack.c.l.b16 %v1467
        %v1545 = vunpack.c.l.b16 %v1468
        %v1546 = vunpack.c.l.b16 %v1469
        %v1547 = vunpack.c.l.b16 %v1470
        %v1548 = vunpack.c.l.b16 %v1471
        %v1549 = vunpack.c.l.b16 %v1472
        %v1550 = vunpack.c.l.b16 %v1473
        %v1551 = vunpack.c.l.b16 %v1474
        %v1552 = vunpack.c.l.b16 %v1475
        %v1553 = vunpack.c.l.b16 %v1476
        %v1554 = vunpack.c.l.b16 %v1477
        %v1555 = vunpack.c.l.b16 %v1478
        %v1556 = vunpack.c.l.b16 %v1479
        %v1557 = vunpack.c.l.b16 %v1480
        %v1558 = vunpack.c.l.b16 %v1481
        %v1559 = vunpack.c.l.b16 %v1482
        %v1560 = vunpack.c.l.b16 %v1483
        %v1561 = vunpack.c.l.b16 %v1484
        %v1562 = vunpack.c.l.b16 %v1485
        %v1563 = vunpack.c.l.b16 %v1486
        %v1564 = vunpack.c.l.b16 %v1487
        %v1565 = vunpack.c.l.b16 %v1488
        %v1566 = vunpack.c.l.b16 %v1489
        %v1567 = vunpack.c.l.b16 %v1490
        %v1568 = vunpack.c.l.b16 %v1491
        %v1569 = vunpack.c.l.b16 %v1492
        %v1570 = vpack.c.b16 %v1535, %v1534
        %v1571 = vpack.c.b16 %v1537, %v1536
        %v1572 = vpack.c.b16 %v1539, %v1538
        %v1573 = vpack.c.b16 %v1541, %v1540
        %v1574 = vpack.c.b16 %v1543, %v1542
        %v1575 = vpack.c.b16 %v1545, %v1544
        %v1576 = vpack.c.b16 %v1547, %v1546
        %v1577 = vpack.c.b16 %v1549, %v1548
        %v1578 = vpack.c.b16 %v1551, %v1550
        %v1579 = vpack.c.b16 %v1553, %v1552
        %v1580 = vpack.c.b16 %v1555, %v1554
        %v1581 = vpack.c.b16 %v1557, %v1556
        %v1582 = vpack.c.b16 %v1559, %v1558
        %v1583 = vpack.c.b16 %v1561, %v1560
        %v1584 = vpack.c.b16 %v1563, %v1562
        %v1585 = vpack.c.b16 %v1565, %v1564
        %v1586 = vpack.c.b16 %v1567, %v1566
        %v1587 = vpack.c.b16 %v1569, %v1568
        %v1607 = vsel %vm910, %v1447, 0
        %v1610 = vsel %vm910, %v1450, 0
        %v1613 = vsel %vm910, %v1453, 0
        %v1616 = vsel %vm910, %v1456, 0
        %1618 = vmatprep.subr.bf16.mxu0 0
        %1619 = vmatpush1.bf16.msra.mxu0 %v1570
        %1620 = vmatprep.subr.bf16.mxu0 0
        %1621 = vmatpush1.bf16.msra.mxu0 %v1571
        %1622 = vmatprep.subr.bf16.mxu0 0
        %1623 = vmatpush1.bf16.msra.mxu0 %v1572
        %1624 = vmatprep.subr.bf16.mxu0 0
        %1625 = vmatpush1.bf16.msra.mxu0 %v1573
        %1626 = vmatprep.subr.bf16.mxu0 0
        %1627 = vmatpush1.bf16.msra.mxu0 %v1574
        %1628 = vmatprep.subr.bf16.mxu0 0
        %1629 = vmatpush1.bf16.msra.mxu0 %v1575
        %1630 = vmatprep.subr.bf16.mxu0 0
        %1631 = vmatpush1.bf16.msra.mxu0 %v1576
        %1632 = vmatprep.subr.bf16.mxu0 0
        %1633 = vmatpush1.bf16.msra.mxu0 %v1577
        %1634 = vmatprep.subr.bf16.mxu0 0
        %1635 = vmatpush1.bf16.msra.mxu0 %v1578
        %1636 = vmatprep.subr.bf16.mxu0 0
        %1637 = vmatpush1.bf16.msra.mxu0 %v1579
        %1638 = vmatprep.subr.bf16.mxu0 0
        %1639 = vmatpush1.bf16.msra.mxu0 %v1580
        %1640 = vmatprep.subr.bf16.mxu0 0
        %1641 = vmatpush1.bf16.msra.mxu0 %v1581
        %1642 = vmatprep.subr.bf16.mxu0 0
        %1643 = vmatpush1.bf16.msra.mxu0 %v1582
        %1644 = vmatprep.subr.bf16.mxu0 0
        %1645 = vmatpush1.bf16.msra.mxu0 %v1583
        %1646 = vmatprep.subr.bf16.mxu0 0
        %1647 = vmatpush1.bf16.msra.mxu0 %v1584
        %1648 = vmatprep.subr.bf16.mxu0 0
        %1649 = vmatpush1.bf16.msra.mxu0 %v1585
        %1650 = vmatprep.mubr.bf16.mxu0 %v1446
        %1651 = vmatmul.mubr.bf16.gmra.mrb[0].mxu0 %v1445
        %v1652 = vpop.f32.mrb[0].mxu0
        %v1653 = vadd.f32 %v1497, %v1652
        %v1654 = vpop.f32.mrb[0].mxu0
        %v1655 = vpop.f32.mrb[0].mxu0
        %v1656 = vadd.f32 %v1497, %v1655
        %v1657 = vpop.f32.mrb[0].mxu0
        %1658 = vmatprep.mubr.bf16.mxu0 %v1449
        %1659 = vmatmul.mubr.bf16.gmra.mrb[0].mxu0 %v1448
        %v1660 = vpop.f32.mrb[0].mxu0
        %v1661 = vadd.f32 %v1497, %v1660
        %v1662 = vpop.f32.mrb[0].mxu0
        %v1663 = vpop.f32.mrb[0].mxu0
        %v1664 = vadd.f32 %v1497, %v1663
        %v1665 = vpop.f32.mrb[0].mxu0
        %1666 = vmatprep.mubr.bf16.mxu0 %v1452
        %1667 = vmatmul.mubr.bf16.gmra.mrb[0].mxu0 %v1451
        %v1668 = vpop.f32.mrb[0].mxu0
        %v1669 = vadd.f32 %v1497, %v1668
        %v1670 = vpop.f32.mrb[0].mxu0
        %v1671 = vpop.f32.mrb[0].mxu0
        %v1672 = vadd.f32 %v1497, %v1671
        %v1673 = vpop.f32.mrb[0].mxu0
        %1674 = vmatprep.mubr.bf16.mxu0 %v1455
        %1675 = vmatmul.mubr.bf16.gmra.mrb[0].mxu0 %v1454
        %v1676 = vpop.f32.mrb[0].mxu0
        %v1677 = vadd.f32 %v1497, %v1676
        %v1678 = vpop.f32.mrb[0].mxu0
        %v1679 = vpop.f32.mrb[0].mxu0
        %v1680 = vadd.f32 %v1497, %v1679
        %v1681 = vpop.f32.mrb[0].mxu0
        %1682 = vdwg.mxu0
        %1683 = vmatprep.subr.bf16.mxu0 0
        %1684 = vmatpush1.bf16.msra.mxu0 %v1586
        %1685 = vmatprep.subr.bf16.mxu0 0
        %1686 = vmatpush1.bf16.msra.mxu0 %v1587
        %1687 = vmatprep.subr.bf16.mxu0 0
        %1688 = vmatpush1.bf16.msra.mxu0 0
        %1689 = vmatprep.subr.bf16.mxu0 0
        %1690 = vmatpush1.bf16.msra.mxu0 0
        %1691 = vmatprep.subr.bf16.mxu0 0
        %1692 = vmatpush1.bf16.msra.mxu0 0
        %1693 = vmatprep.subr.bf16.mxu0 0
        %1694 = vmatpush1.bf16.msra.mxu0 0
        %1695 = vmatprep.subr.bf16.mxu0 0
        %1696 = vmatpush1.bf16.msra.mxu0 0
        %1697 = vmatprep.subr.bf16.mxu0 0
        %1698 = vmatpush1.bf16.msra.mxu0 0
        %1699 = vmatprep.subr.bf16.mxu0 0
        %1700 = vmatpush1.bf16.msra.mxu0 0
        %1701 = vmatprep.subr.bf16.mxu0 0
        %1702 = vmatpush1.bf16.msra.mxu0 0
        %1703 = vmatprep.subr.bf16.mxu0 0
        %1704 = vmatpush1.bf16.msra.mxu0 0
        %1705 = vmatprep.subr.bf16.mxu0 0
        %1706 = vmatpush1.bf16.msra.mxu0 0
        %1707 = vmatprep.subr.bf16.mxu0 0
        %1708 = vmatpush1.bf16.msra.mxu0 0
        %1709 = vmatprep.subr.bf16.mxu0 0
        %1710 = vmatpush1.bf16.msra.mxu0 0
        %1711 = vmatprep.subr.bf16.mxu0 0
        %1712 = vmatpush1.bf16.msra.mxu0 0
        %1713 = vmatprep.subr.bf16.mxu0 0
        %1714 = vmatpush1.bf16.msra.mxu0 0
        %1715 = vmatprep.mubr.bf16.mxu0 0
        %1716 = vmatmul.mubr.bf16.gmra.mrb[0].mxu0 %v1607
        %v1717 = vpop.f32.mrb[0].mxu0
        %v1718 = vadd.f32 %v1653, %v1717
        %v1719 = vpop.f32.mrb[0].mxu0
        %v1720 = vpop.f32.mrb[0].mxu0
        %v1721 = vadd.f32 %v1656, %v1720
        %v1722 = vpop.f32.mrb[0].mxu0
        %1723 = vmatprep.mubr.bf16.mxu0 0
        %1724 = vmatmul.mubr.bf16.gmra.mrb[0].mxu0 %v1610
        %v1725 = vpop.f32.mrb[0].mxu0
        %v1726 = vadd.f32 %v1661, %v1725
        %v1727 = vpop.f32.mrb[0].mxu0
        %v1728 = vpop.f32.mrb[0].mxu0
        %v1729 = vadd.f32 %v1664, %v1728
        %v1730 = vpop.f32.mrb[0].mxu0
        %1731 = vmatprep.mubr.bf16.mxu0 0
        %1732 = vmatmul.mubr.bf16.gmra.mrb[0].mxu0 %v1613
        %v1733 = vpop.f32.mrb[0].mxu0
        %v1734 = vadd.f32 %v1669, %v1733
        %v1735 = vpop.f32.mrb[0].mxu0
        %v1736 = vpop.f32.mrb[0].mxu0
        %v1737 = vadd.f32 %v1672, %v1736
        %v1738 = vpop.f32.mrb[0].mxu0
        %1739 = vmatprep.mubr.bf16.mxu0 0
        %1740 = vmatmul.mubr.bf16.gmra.mrb[0].mxu0 %v1616
        %v1741 = vpop.f32.mrb[0].mxu0
        %v1742 = vadd.f32 %v1677, %v1741
        %v1743 = vpop.f32.mrb[0].mxu0
        %v1744 = vpop.f32.mrb[0].mxu0
        %v1745 = vadd.f32 %v1680, %v1744
        %v1746 = vpop.f32.mrb[0].mxu0
        %1747 = vdwg.mxu0
        %v1748 = vmax.f32 %v1718, 0.0
        %v1749 = vmax.f32 %v1721, 0.0
        %v1750 = vmax.f32 %v1726, 0.0
        %v1751 = vmax.f32 %v1729, 0.0
        %v1752 = vmax.f32 %v1734, 0.0
        %v1753 = vmax.f32 %v1737, 0.0
        %v1754 = vmax.f32 %v1742, 0.0
        %v1755 = vmax.f32 %v1745, 0.0
        %v1756 = vlaneseq
        %v1757 = vshrl.u32 %v1756, 7
        %v1758 = vsub.s32 1, %v1757
        %v1759 = vrot.slane %v1493, %v1758
        %v1760 = vmul.f32 %v1748, %v1759
        %v1761 = vmul.f32 %v1749, %v1759
        %v1762 = vmul.f32 %v1750, %v1759
        %v1763 = vmul.f32 %v1751, %v1759
        %v1764 = vmul.f32 %v1752, %v1759
        %v1765 = vmul.f32 %v1753, %v1759
        %v1766 = vmul.f32 %v1754, %v1759
        %v1767 = vmul.f32 %v1755, %v1759
        %v1768 = vlaneseq
        %v1769 = vshrl.u32 %v1768, 7
        %v1770 = vsub.s32 2, %v1769
        %v1771 = vrot.slane %v1493, %v1770
        %v1772 = vadd.f32 %v1760, %v1771
        %v1773 = vadd.f32 %v1761, %v1771
        %v1774 = vadd.f32 %v1762, %v1771
        %v1775 = vadd.f32 %v1763, %v1771
        %v1776 = vadd.f32 %v1764, %v1771
        %v1777 = vadd.f32 %v1765, %v1771
        %v1778 = vadd.f32 %v1766, %v1771
        %v1779 = vadd.f32 %v1767, %v1771
        %vm1780 = vcmask 521216
        %1781 = vst.msk [vmem:[#allocation4] sm:$0x3f] %vm1780, 0.0
        %1782 = vst.msk [vmem:[#allocation4 + $0x8] sm:$0x3f] %vm1780, 0.0
        %1783 = vst.msk [vmem:[#allocation4 + $0x10] sm:$0x3f] %vm1780, 0.0
        %1784 = vst.msk [vmem:[#allocation4 + $0x18] sm:$0x3f] %vm1780, 0.0
        %1785 = vst.msk [vmem:[#allocation4 + $0x20] sm:$0x3f] %vm1780, 0.0
        %1786 = vst.msk [vmem:[#allocation4 + $0x28] sm:$0x3f] %vm1780, 0.0
        %v1787 = vmax.f32 %v1772, %v1773
        %v1788 = vmax.f32 %v1774, %v1775
        %v1789 = vmax.f32 %v1776, %v1777
        %v1790 = vmax.f32 %v1778, %v1779
        %v1795 = vrot.slane %v1787, 1
        %v1796 = vrot.slane %v1788, 1
        %v1797 = vrot.slane %v1789, 1
        %v1798 = vrot.slane %v1790, 1
        %v1803 = vmax.f32 %v1787, %v1795
        %v1804 = vmax.f32 %v1788, %v1796
        %v1805 = vmax.f32 %v1789, %v1797
        %v1806 = vmax.f32 %v1790, %v1798
        %s1807 = scalar_lea.vmem [#allocation4], 8
        %vm1808 = vcmask 516096
        %1809 = vst.msk [vmem:[%s1807 + $0x1] sm:$0x1] %vm1808, %v1803
        %1810 = vst.msk [vmem:[%s1807 + $0x9] sm:$0x1] %vm1808, %v1804
        %1811 = vst.msk [vmem:[%s1807 + $0x11] sm:$0x1] %vm1808, %v1805
        %1812 = vst.msk [vmem:[%s1807 + $0x19] sm:$0x1] %vm1808, %v1806
        %vm1813 = vcmask 518146
        %1814 = vst.msk [vmem:[%s1807] sm:$0x4] %vm1813, %v1803
        %1815 = vst.msk [vmem:[%s1807 + $0x8] sm:$0x4] %vm1813, %v1804
        %1816 = vst.msk [vmem:[%s1807 + $0x10] sm:$0x4] %vm1813, %v1805
        %1817 = vst.msk [vmem:[%s1807 + $0x18] sm:$0x4] %vm1813, %v1806
        %vm1818 = vcmask 520196
        %1819 = vst.msk [vmem:[%s1807 - $0x1] sm:$0x10] %vm1818, %v1803
        %1820 = vst.msk [vmem:[%s1807 + $0x7] sm:$0x10] %vm1818, %v1804
        %1821 = vst.msk [vmem:[%s1807 + $0xf] sm:$0x10] %vm1818, %v1805
        %1822 = vst.msk [vmem:[%s1807 + $0x17] sm:$0x10] %vm1818, %v1806
        %vm1823 = vcmask 522246
        %1824 = vst.msk [vmem:[%s1807 - $0x2] sm:$0x40] %vm1823, %v1803
        %1825 = vst.msk [vmem:[%s1807 + $0x6] sm:$0x40] %vm1823, %v1804
        %1826 = vst.msk [vmem:[%s1807 + $0xe] sm:$0x40] %vm1823, %v1805
        %1827 = vst.msk [vmem:[%s1807 + $0x16] sm:$0x40] %vm1823, %v1806
        %v1828 = vld [vmem:[#allocation4] sm:$0xf]
        %vm1829 = vcmask 519168
        %1830 = vst.msk [vmem:[#allocation5] sm:$0xf] %vm1829, %v1828
        %v1831 = vld [vmem:[%s1807] sm:$0xf]
        %v1833 = vrot.slane %v1831, 4
        %vm1835 = vcmask 523268
        %1836 = vst.msk [vmem:[#allocation5] sm:$0xf0] %vm1835, %v1833
        %s1837 = scalar_lea.vmem [#allocation4], 16
        %v1838 = vld [vmem:[%s1837] sm:$0xf]
        %1839 = vst.msk [vmem:[#allocation5 + $0x28] sm:$0xf] %vm1829, %v1838
        %s1840 = scalar_lea.vmem [#allocation4], 24
        %v1841 = vld [vmem:[%s1840] sm:$0xf]
        %v1843 = vrot.slane %v1841, 4
        %1845 = vst.msk [vmem:[#allocation5 + $0x28] sm:$0xf0] %vm1835, %v1843
        %v1846 = vld [vmem:[#allocation4 + $0x1] sm:$0xf]
        %1848 = vrot.lane.b32.xlu0 %v1846, 64
        %v1849 = vpop.permute.xlu0 %1848
        %vm1851 = vcmask 1043968
        %1852 = vst.msk [vmem:[#allocation5] sm:$0xf] %vm1851, %v1849
        %v1853 = vld [vmem:[%s1807 + $0x1] sm:$0xf]
        %v1855 = vrot.slane %v1853, 4
        %1856 = vrot.lane.b32.xlu0 %v1855, 64
        %v1857 = vpop.permute.xlu0 %1856
        %vm1859 = vcmask 1048068
        %1860 = vst.msk [vmem:[#allocation5] sm:$0xf0] %vm1859, %v1857
        %v1861 = vld [vmem:[%s1837 + $0x1] sm:$0xf]
        %1863 = vrot.lane.b32.xlu0 %v1861, 64
        %v1864 = vpop.permute.xlu0 %1863
        %1866 = vst.msk [vmem:[#allocation5 + $0x28] sm:$0xf] %vm1851, %v1864
        %v1867 = vld [vmem:[%s1840 + $0x1] sm:$0xf]
        %v1869 = vrot.slane %v1867, 4
        %1870 = vrot.lane.b32.xlu0 %v1869, 64
        %v1871 = vpop.permute.xlu0 %1870
        %1873 = vst.msk [vmem:[#allocation5 + $0x28] sm:$0xf0] %vm1859, %v1871
        %v1874 = vld [vmem:[#allocation4 + $0x2] sm:$0xf]
        %1875 = vst.msk [vmem:[#allocation5 + $0x8] sm:$0xf] %vm1829, %v1874
        %v1876 = vld [vmem:[%s1807 + $0x2] sm:$0xf]
        %v1878 = vrot.slane %v1876, 4
        %1880 = vst.msk [vmem:[#allocation5 + $0x8] sm:$0xf0] %vm1835, %v1878
        %v1881 = vld [vmem:[%s1837 + $0x2] sm:$0xf]
        %1882 = vst.msk [vmem:[#allocation5 + $0x30] sm:$0xf] %vm1829, %v1881
        %v1883 = vld [vmem:[%s1840 + $0x2] sm:$0xf]
        %v1885 = vrot.slane %v1883, 4
        %1887 = vst.msk [vmem:[#allocation5 + $0x30] sm:$0xf0] %vm1835, %v1885
        %v1888 = vld [vmem:[%s1807] sm:$0xf]
        %1890 = vrot.lane.b32.xlu0 %v1888, 64
        %v1891 = vpop.permute.xlu0 %1890
        %1893 = vst.msk [vmem:[#allocation5 + $0x8] sm:$0xf] %vm1851, %v1891
        %v1894 = vld [vmem:[%s1837] sm:$0xf]
        %v1896 = vrot.slane %v1894, 4
        %1897 = vrot.lane.b32.xlu0 %v1896, 64
        %v1898 = vpop.permute.xlu0 %1897
        %1900 = vst.msk [vmem:[#allocation5 + $0x8] sm:$0xf0] %vm1859, %v1898
        %v1901 = vld [vmem:[%s1840] sm:$0xf]
        %1903 = vrot.lane.b32.xlu0 %v1901, 64
        %v1904 = vpop.permute.xlu0 %1903
        %1906 = vst.msk [vmem:[#allocation5 + $0x30] sm:$0xf] %vm1851, %v1904
        %s1907 = scalar_lea.vmem [#allocation4], 32
        %v1908 = vld [vmem:[%s1907] sm:$0xf]
        %v1910 = vrot.slane %v1908, 4
        %1911 = vrot.lane.b32.xlu0 %v1910, 64
        %v1912 = vpop.permute.xlu0 %1911
        %1914 = vst.msk [vmem:[#allocation5 + $0x30] sm:$0xf0] %vm1859, %v1912
        %v1915 = vld [vmem:[%s1807 + $0x1] sm:$0xf]
        %1916 = vst.msk [vmem:[#allocation5 + $0x10] sm:$0xf] %vm1829, %v1915
        %v1917 = vld [vmem:[%s1837 + $0x1] sm:$0xf]
        %v1919 = vrot.slane %v1917, 4
        %1921 = vst.msk [vmem:[#allocation5 + $0x10] sm:$0xf0] %vm1835, %v1919
        %v1922 = vld [vmem:[%s1840 + $0x1] sm:$0xf]
        %1923 = vst.msk [vmem:[#allocation5 + $0x38] sm:$0xf] %vm1829, %v1922
        %v1924 = vld [vmem:[%s1907 + $0x1] sm:$0xf]
        %v1926 = vrot.slane %v1924, 4
        %1928 = vst.msk [vmem:[#allocation5 + $0x38] sm:$0xf0] %vm1835, %v1926
        %v1929 = vld [vmem:[%s1807 + $0x2] sm:$0xf]
        %1931 = vrot.lane.b32.xlu0 %v1929, 64
        %v1932 = vpop.permute.xlu0 %1931
        %1934 = vst.msk [vmem:[#allocation5 + $0x10] sm:$0xf] %vm1851, %v1932
        %v1935 = vld [vmem:[%s1837 + $0x2] sm:$0xf]
        %v1937 = vrot.slane %v1935, 4
        %1938 = vrot.lane.b32.xlu0 %v1937, 64
        %v1939 = vpop.permute.xlu0 %1938
        %1941 = vst.msk [vmem:[#allocation5 + $0x10] sm:$0xf0] %vm1859, %v1939
        %v1942 = vld [vmem:[%s1840 + $0x2] sm:$0xf]
        %1944 = vrot.lane.b32.xlu0 %v1942, 64
        %v1945 = vpop.permute.xlu0 %1944
        %1947 = vst.msk [vmem:[#allocation5 + $0x38] sm:$0xf] %vm1851, %v1945
        %v1948 = vld [vmem:[%s1907 + $0x2] sm:$0xf]
        %v1950 = vrot.slane %v1948, 4
        %1951 = vrot.lane.b32.xlu0 %v1950, 64
        %v1952 = vpop.permute.xlu0 %1951
        %1954 = vst.msk [vmem:[#allocation5 + $0x38] sm:$0xf0] %vm1859, %v1952
        %v1955 = vld [vmem:[%s1837] sm:$0xf]
        %1956 = vst.msk [vmem:[#allocation5 + $0x18] sm:$0xf] %vm1829, %v1955
        %v1957 = vld [vmem:[%s1840] sm:$0xf]
        %v1959 = vrot.slane %v1957, 4
        %1961 = vst.msk [vmem:[#allocation5 + $0x18] sm:$0xf0] %vm1835, %v1959
        %v1962 = vld [vmem:[%s1907] sm:$0xf]
        %1963 = vst.msk [vmem:[#allocation5 + $0x40] sm:$0xf] %vm1829, %v1962
        %s1964 = scalar_lea.vmem [#allocation4], 40
        %v1965 = vld [vmem:[%s1964] sm:$0xf]
        %v1967 = vrot.slane %v1965, 4
        %1969 = vst.msk [vmem:[#allocation5 + $0x40] sm:$0xf0] %vm1835, %v1967
        %v1970 = vld [vmem:[%s1837 + $0x1] sm:$0xf]
        %1972 = vrot.lane.b32.xlu0 %v1970, 64
        %v1973 = vpop.permute.xlu0 %1972
        %1975 = vst.msk [vmem:[#allocation5 + $0x18] sm:$0xf] %vm1851, %v1973
        %v1976 = vld [vmem:[%s1840 + $0x1] sm:$0xf]
        %v1978 = vrot.slane %v1976, 4
        %1979 = vrot.lane.b32.xlu0 %v1978, 64
        %v1980 = vpop.permute.xlu0 %1979
        %1982 = vst.msk [vmem:[#allocation5 + $0x18] sm:$0xf0] %vm1859, %v1980
        %v1983 = vld [vmem:[%s1907 + $0x1] sm:$0xf]
        %1985 = vrot.lane.b32.xlu0 %v1983, 64
        %v1986 = vpop.permute.xlu0 %1985
        %1988 = vst.msk [vmem:[#allocation5 + $0x40] sm:$0xf] %vm1851, %v1986
        %v1989 = vld [vmem:[%s1964 + $0x1] sm:$0xf]
        %v1991 = vrot.slane %v1989, 4
        %1992 = vrot.lane.b32.xlu0 %v1991, 64
        %v1993 = vpop.permute.xlu0 %1992
        %1995 = vst.msk [vmem:[#allocation5 + $0x40] sm:$0xf0] %vm1859, %v1993
        %v1996 = vld [vmem:[%s1837 + $0x2] sm:$0xf]
        %1997 = vst.msk [vmem:[#allocation5 + $0x20] sm:$0xf] %vm1829, %v1996
        %v1998 = vld [vmem:[%s1840 + $0x2] sm:$0xf]
        %v2000 = vrot.slane %v1998, 4
        %2002 = vst.msk [vmem:[#allocation5 + $0x20] sm:$0xf0] %vm1835, %v2000
        %v2003 = vld [vmem:[%s1907 + $0x2] sm:$0xf]
        %2004 = vst.msk [vmem:[#allocation5 + $0x48] sm:$0xf] %vm1829, %v2003
        %v2005 = vld [vmem:[%s1964 + $0x2] sm:$0xf]
        %v2007 = vrot.slane %v2005, 4
        %2009 = vst.msk [vmem:[#allocation5 + $0x48] sm:$0xf0] %vm1835, %v2007
        %v2010 = vld [vmem:[#allocation5] sm:$0xff]
        %v2011 = vld [vmem:[#allocation5 + $0x8] sm:$0xff]
        %v2012 = vld [vmem:[#allocation5 + $0x10] sm:$0xff]
        %v2013 = vld [vmem:[#allocation5 + $0x18] sm:$0xff]
        %v2014 = vld [vmem:[#allocation5 + $0x20] sm:$0xff]
        %v2015 = vld [vmem:[#allocation5 + $0x28] sm:$0xff]
        %v2016 = vld [vmem:[#allocation5 + $0x30] sm:$0xff]
        %v2017 = vld [vmem:[#allocation5 + $0x38] sm:$0xff]
        %v2018 = vld [vmem:[#allocation5 + $0x40] sm:$0xff]
        %v2019 = vld [vmem:[#allocation5 + $0x48] sm:$0xff]
        %v2020 = vpack.c.bf16 %v2015, %v2010
        %v2021 = vpack.c.bf16 %v2016, %v2011
        %v2022 = vpack.c.bf16 %v2017, %v2012
        %v2023 = vpack.c.bf16 %v2018, %v2013
        %v2024 = vpack.c.bf16 %v2019, %v2014
        %v2025 = vld [vmem:[%s5] sm:$0xf]
        %v2026 = vld [vmem:[%s5 + $0x4] sm:$0xf]
        %v2027 = vld [vmem:[%s5 + $0x8] sm:$0xf]
        %v2028 = vld [vmem:[%s5 + $0xc] sm:$0xf]
        %v2029 = vld [vmem:[%s5 + $0x10] sm:$0xf]
        %v2030 = vld [vmem:[%s5 + $0x14] sm:$0xf]
        %v2031 = vld [vmem:[%s5 + $0x18] sm:$0xf]
        %v2032 = vld [vmem:[%s5 + $0x1c] sm:$0xf]
        %v2033 = vld [vmem:[%s5 + $0x20] sm:$0xf]
        %v2034 = vld [vmem:[%s5 + $0x24] sm:$0xf]
        %v2035 = vld [vmem:[%s5 + $0x28] sm:$0xf]
        %v2036 = vld [vmem:[%s5 + $0x2c] sm:$0xf]
        %v2037 = vld [vmem:[%s5 + $0x30] sm:$0xf]
        %v2038 = vld [vmem:[%s5 + $0x34] sm:$0xf]
        %v2039 = vld [vmem:[%s5 + $0x38] sm:$0xf]
        %v2040 = vld [vmem:[%s5 + $0x3c] sm:$0xf]
        %v2041 = vld [vmem:[%s5 + $0x40] sm:$0xf]
        %v2042 = vld [vmem:[%s5 + $0x44] sm:$0xf]
        %v2043 = vld [vmem:[%s5 + $0x48] sm:$0xf]
        %v2044 = vld [vmem:[%s5 + $0x4c] sm:$0xf]
        %v2045 = vld [vmem:[%s5 + $0x50] sm:$0xf]
        %v2046 = vld [vmem:[%s5 + $0x54] sm:$0xf]
        %v2047 = vld [vmem:[%s5 + $0x58] sm:$0xf]
        %v2048 = vld [vmem:[%s5 + $0x5c] sm:$0xf]
        %v2049 = vld [vmem:[%s5 + $0x60] sm:$0xf]
        %v2050 = vld [vmem:[%s5 + $0x64] sm:$0xf]
        %v2051 = vld [vmem:[%s5 + $0x68] sm:$0xf]
        %v2052 = vld [vmem:[%s5 + $0x6c] sm:$0xf]
        %v2053 = vld [vmem:[%s5 + $0x70] sm:$0xf]
        %v2054 = vld [vmem:[%s5 + $0x74] sm:$0xf]
        %v2055 = vld [vmem:[%s5 + $0x78] sm:$0xf]
        %v2056 = vld [vmem:[%s5 + $0x7c] sm:$0xf]
        %v2057 = vld [vmem:[%s5 + $0x80] sm:$0xf]
        %v2058 = vld [vmem:[%s5 + $0x84] sm:$0xf]
        %v2059 = vld [vmem:[%s5 + $0x88] sm:$0xf]
        %v2060 = vld [vmem:[%s5 + $0x8c] sm:$0xf]
        %v2061 = vld [vmem:[%s5 + $0x90] sm:$0xf]
        %v2062 = vld [vmem:[%s5 + $0x94] sm:$0xf]
        %v2063 = vld [vmem:[%s5 + $0x98] sm:$0xf]
        %v2064 = vld [vmem:[%s5 + $0x9c] sm:$0xf]
        %v2065 = vld [vmem:[%s5 + $0xa0] sm:$0xf]
        %v2066 = vld [vmem:[%s5 + $0xa4] sm:$0xf]
        %v2067 = vld [vmem:[%s5 + $0xa8] sm:$0xf]
        %v2068 = vld [vmem:[%s5 + $0xac] sm:$0xf]
        %v2069 = vld [vmem:[%s5 + $0xb0] sm:$0xf]
        %v2070 = vld [vmem:[%s5 + $0xb4] sm:$0xf]
        %v2071 = vld [vmem:[%s5 + $0xb8] sm:$0xf]
        %v2072 = vld [vmem:[%s5 + $0xbc] sm:$0xf]
        %v2073 = vld [vmem:[%s5 + $0xc0] sm:$0xf]
        %v2074 = vld [vmem:[%s5 + $0xc4] sm:$0xf]
        %v2075 = vld [vmem:[%s5 + $0xc8] sm:$0xf]
        %v2076 = vld [vmem:[%s5 + $0xcc] sm:$0xf]
        %v2077 = vld [vmem:[%s5 + $0xd0] sm:$0xf]
        %v2078 = vld [vmem:[%s5 + $0xd4] sm:$0xf]
        %v2079 = vld [vmem:[%s5 + $0xd8] sm:$0xf]
        %v2080 = vld [vmem:[%s5 + $0xdc] sm:$0xf]
        %v2081 = vld [vmem:[%s5 + $0xe0] sm:$0xf]
        %v2082 = vld [vmem:[%s5 + $0xe4] sm:$0xf]
        %v2083 = vld [vmem:[%s5 + $0xe8] sm:$0xf]
        %v2084 = vld [vmem:[%s5 + $0xec] sm:$0xf]
        %v2085 = vld [vmem:[%s5 + $0xf0] sm:$0xf]
        %v2086 = vld [vmem:[%s5 + $0xf4] sm:$0xf]
        %v2087 = vld [vmem:[%s5 + $0xf8] sm:$0xf]
        %v2088 = vld [vmem:[%s5 + $0xfc] sm:$0xf]
        %v2089 = vld [vmem:[%s5 + $0x100] sm:$0xf]
        %v2090 = vld [vmem:[%s5 + $0x104] sm:$0xf]
        %v2091 = vld [vmem:[%s5 + $0x108] sm:$0xf]
        %v2092 = vld [vmem:[%s5 + $0x10c] sm:$0xf]
        %v2093 = vld [vmem:[%s5 + $0x110] sm:$0xf]
        %v2094 = vld [vmem:[%s5 + $0x114] sm:$0xf]
        %v2095 = vld [vmem:[%s5 + $0x118] sm:$0xf]
        %v2096 = vld [vmem:[%s5 + $0x11c] sm:$0xf]
        %v2097 = vld [vmem:[%s6] sm:$0x7]
        %v2098 = vlaneseq
        %v2099 = vshrl.u32 %v2098, 7
        %v2100 = vsub.s32 0, %v2099
        %v2101 = vrot.slane %v2097, %v2100
        %v2174 = vunpack.c.l.b16 %v2025
        %v2175 = vunpack.c.l.b16 %v2026
        %v2176 = vunpack.c.l.b16 %v2027
        %v2177 = vunpack.c.l.b16 %v2028
        %v2178 = vunpack.c.l.b16 %v2029
        %v2179 = vunpack.c.l.b16 %v2030
        %v2180 = vunpack.c.l.b16 %v2031
        %v2181 = vunpack.c.l.b16 %v2032
        %v2182 = vunpack.c.l.b16 %v2033
        %v2183 = vunpack.c.l.b16 %v2034
        %v2184 = vunpack.c.l.b16 %v2035
        %v2185 = vunpack.c.l.b16 %v2036
        %v2186 = vunpack.c.l.b16 %v2037
        %v2187 = vunpack.c.l.b16 %v2038
        %v2188 = vunpack.c.l.b16 %v2039
        %v2189 = vunpack.c.l.b16 %v2040
        %v2190 = vunpack.c.l.b16 %v2041
        %v2191 = vunpack.c.l.b16 %v2042
        %v2192 = vunpack.c.l.b16 %v2043
        %v2193 = vunpack.c.l.b16 %v2044
        %v2194 = vunpack.c.l.b16 %v2045
        %v2195 = vunpack.c.l.b16 %v2046
        %v2196 = vunpack.c.l.b16 %v2047
        %v2197 = vunpack.c.l.b16 %v2048
        %v2198 = vunpack.c.l.b16 %v2049
        %v2199 = vunpack.c.l.b16 %v2050
        %v2200 = vunpack.c.l.b16 %v2051
        %v2201 = vunpack.c.l.b16 %v2052
        %v2202 = vunpack.c.l.b16 %v2053
        %v2203 = vunpack.c.l.b16 %v2054
        %v2204 = vunpack.c.l.b16 %v2055
        %v2205 = vunpack.c.l.b16 %v2056
        %v2206 = vunpack.c.l.b16 %v2057
        %v2207 = vunpack.c.l.b16 %v2058
        %v2208 = vunpack.c.l.b16 %v2059
        %v2209 = vunpack.c.l.b16 %v2060
        %v2210 = vunpack.c.l.b16 %v2061
        %v2211 = vunpack.c.l.b16 %v2062
        %v2212 = vunpack.c.l.b16 %v2063
        %v2213 = vunpack.c.l.b16 %v2064
        %v2214 = vunpack.c.l.b16 %v2065
        %v2215 = vunpack.c.l.b16 %v2066
        %v2216 = vunpack.c.l.b16 %v2067
        %v2217 = vunpack.c.l.b16 %v2068
        %v2218 = vunpack.c.l.b16 %v2069
        %v2219 = vunpack.c.l.b16 %v2070
        %v2220 = vunpack.c.l.b16 %v2071
        %v2221 = vunpack.c.l.b16 %v2072
        %v2222 = vunpack.c.l.b16 %v2073
        %v2223 = vunpack.c.l.b16 %v2074
        %v2224 = vunpack.c.l.b16 %v2075
        %v2225 = vunpack.c.l.b16 %v2076
        %v2226 = vunpack.c.l.b16 %v2077
        %v2227 = vunpack.c.l.b16 %v2078
        %v2228 = vunpack.c.l.b16 %v2079
        %v2229 = vunpack.c.l.b16 %v2080
        %v2230 = vunpack.c.l.b16 %v2081
        %v2231 = vunpack.c.l.b16 %v2082
        %v2232 = vunpack.c.l.b16 %v2083
        %v2233 = vunpack.c.l.b16 %v2084
        %v2234 = vunpack.c.l.b16 %v2085
        %v2235 = vunpack.c.l.b16 %v2086
        %v2236 = vunpack.c.l.b16 %v2087
        %v2237 = vunpack.c.l.b16 %v2088
        %v2238 = vunpack.c.l.b16 %v2089
        %v2239 = vunpack.c.l.b16 %v2090
        %v2240 = vunpack.c.l.b16 %v2091
        %v2241 = vunpack.c.l.b16 %v2092
        %v2242 = vunpack.c.l.b16 %v2093
        %v2243 = vunpack.c.l.b16 %v2094
        %v2244 = vunpack.c.l.b16 %v2095
        %v2245 = vunpack.c.l.b16 %v2096
        %v2246 = vpack.c.b16 %v2175, %v2174
        %v2247 = vpack.c.b16 %v2177, %v2176
        %v2248 = vpack.c.b16 %v2179, %v2178
        %v2249 = vpack.c.b16 %v2181, %v2180
        %v2250 = vpack.c.b16 %v2183, %v2182
        %v2251 = vpack.c.b16 %v2185, %v2184
        %v2252 = vpack.c.b16 %v2187, %v2186
        %v2253 = vpack.c.b16 %v2189, %v2188
        %v2254 = vpack.c.b16 %v2191, %v2190
        %v2255 = vpack.c.b16 %v2193, %v2192
        %v2256 = vpack.c.b16 %v2195, %v2194
        %v2257 = vpack.c.b16 %v2197, %v2196
        %v2258 = vpack.c.b16 %v2199, %v2198
        %v2259 = vpack.c.b16 %v2201, %v2200
        %v2260 = vpack.c.b16 %v2203, %v2202
        %v2261 = vpack.c.b16 %v2205, %v2204
        %v2262 = vpack.c.b16 %v2207, %v2206
        %v2263 = vpack.c.b16 %v2209, %v2208
        %v2264 = vpack.c.b16 %v2211, %v2210
        %v2265 = vpack.c.b16 %v2213, %v2212
        %v2266 = vpack.c.b16 %v2215, %v2214
        %v2267 = vpack.c.b16 %v2217, %v2216
        %v2268 = vpack.c.b16 %v2219, %v2218
        %v2269 = vpack.c.b16 %v2221, %v2220
        %v2270 = vpack.c.b16 %v2223, %v2222
        %v2271 = vpack.c.b16 %v2225, %v2224
        %v2272 = vpack.c.b16 %v2227, %v2226
        %v2273 = vpack.c.b16 %v2229, %v2228
        %v2274 = vpack.c.b16 %v2231, %v2230
        %v2275 = vpack.c.b16 %v2233, %v2232
        %v2276 = vpack.c.b16 %v2235, %v2234
        %v2277 = vpack.c.b16 %v2237, %v2236
        %v2278 = vpack.c.b16 %v2239, %v2238
        %v2279 = vpack.c.b16 %v2241, %v2240
        %v2280 = vpack.c.b16 %v2243, %v2242
        %v2281 = vpack.c.b16 %v2245, %v2244
        %vm2318 = vcmask 523264
        %v2320 = vsel %vm2318, %v2024, 0
        %2322 = vmatprep.subr.bf16.mxu0 0
        %2323 = vmatpush1.bf16.msra.mxu0 %v2246
        %2324 = vmatprep.subr.bf16.mxu0 0
        %2325 = vmatpush1.bf16.msra.mxu0 %v2247
        %2326 = vmatprep.subr.bf16.mxu0 0
        %2327 = vmatpush1.bf16.msra.mxu0 %v2248
        %2328 = vmatprep.subr.bf16.mxu0 0
        %2329 = vmatpush1.bf16.msra.mxu0 %v2249
        %2330 = vmatprep.subr.bf16.mxu0 0
        %2331 = vmatpush1.bf16.msra.mxu0 %v2250
        %2332 = vmatprep.subr.bf16.mxu0 0
        %2333 = vmatpush1.bf16.msra.mxu0 %v2251
        %2334 = vmatprep.subr.bf16.mxu0 0
        %2335 = vmatpush1.bf16.msra.mxu0 %v2252
        %2336 = vmatprep.subr.bf16.mxu0 0
        %2337 = vmatpush1.bf16.msra.mxu0 %v2253
        %2338 = vmatprep.subr.bf16.mxu0 0
        %2339 = vmatpush1.bf16.msra.mxu0 %v2254
        %2340 = vmatprep.subr.bf16.mxu0 0
        %2341 = vmatpush1.bf16.msra.mxu0 %v2255
        %2342 = vmatprep.subr.bf16.mxu0 0
        %2343 = vmatpush1.bf16.msra.mxu0 %v2256
        %2344 = vmatprep.subr.bf16.mxu0 0
        %2345 = vmatpush1.bf16.msra.mxu0 %v2257
        %2346 = vmatprep.subr.bf16.mxu0 0
        %2347 = vmatpush1.bf16.msra.mxu0 %v2258
        %2348 = vmatprep.subr.bf16.mxu0 0
        %2349 = vmatpush1.bf16.msra.mxu0 %v2259
        %2350 = vmatprep.subr.bf16.mxu0 0
        %2351 = vmatpush1.bf16.msra.mxu0 %v2260
        %2352 = vmatprep.subr.bf16.mxu0 0
        %2353 = vmatpush1.bf16.msra.mxu0 %v2261
        %2354 = vmatprep.mubr.bf16.mxu0 %v2021
        %2355 = vmatmul.mubr.bf16.gmra.mrb[0].mxu0 %v2020
        %v2356 = vpop.f32.mrb[0].mxu0
        %v2357 = vadd.f32 %v2101, %v2356
        %v2358 = vpop.f32.mrb[0].mxu0
        %v2359 = vpop.f32.mrb[0].mxu0
        %v2360 = vadd.f32 %v2101, %v2359
        %v2361 = vpop.f32.mrb[0].mxu0
        %2362 = vdwg.mxu0
        %2363 = vmatprep.subr.bf16.mxu0 0
        %2364 = vmatpush1.bf16.msra.mxu0 %v2262
        %2365 = vmatprep.subr.bf16.mxu0 0
        %2366 = vmatpush1.bf16.msra.mxu0 %v2263
        %2367 = vmatprep.subr.bf16.mxu0 0
        %2368 = vmatpush1.bf16.msra.mxu0 %v2264
        %2369 = vmatprep.subr.bf16.mxu0 0
        %2370 = vmatpush1.bf16.msra.mxu0 %v2265
        %2371 = vmatprep.subr.bf16.mxu0 0
        %2372 = vmatpush1.bf16.msra.mxu0 %v2266
        %2373 = vmatprep.subr.bf16.mxu0 0
        %2374 = vmatpush1.bf16.msra.mxu0 %v2267
        %2375 = vmatprep.subr.bf16.mxu0 0
        %2376 = vmatpush1.bf16.msra.mxu0 %v2268
        %2377 = vmatprep.subr.bf16.mxu0 0
        %2378 = vmatpush1.bf16.msra.mxu0 %v2269
        %2379 = vmatprep.subr.bf16.mxu0 0
        %2380 = vmatpush1.bf16.msra.mxu0 %v2270
        %2381 = vmatprep.subr.bf16.mxu0 0
        %2382 = vmatpush1.bf16.msra.mxu0 %v2271
        %2383 = vmatprep.subr.bf16.mxu0 0
        %2384 = vmatpush1.bf16.msra.mxu0 %v2272
        %2385 = vmatprep.subr.bf16.mxu0 0
        %2386 = vmatpush1.bf16.msra.mxu0 %v2273
        %2387 = vmatprep.subr.bf16.mxu0 0
        %2388 = vmatpush1.bf16.msra.mxu0 %v2274
        %2389 = vmatprep.subr.bf16.mxu0 0
        %2390 = vmatpush1.bf16.msra.mxu0 %v2275
        %2391 = vmatprep.subr.bf16.mxu0 0
        %2392 = vmatpush1.bf16.msra.mxu0 %v2276
        %2393 = vmatprep.subr.bf16.mxu0 0
        %2394 = vmatpush1.bf16.msra.mxu0 %v2277
        %2395 = vmatprep.mubr.bf16.mxu0 %v2023
        %2396 = vmatmul.mubr.bf16.gmra.mrb[0].mxu0 %v2022
        %v2397 = vpop.f32.mrb[0].mxu0
        %v2398 = vadd.f32 %v2357, %v2397
        %v2399 = vpop.f32.mrb[0].mxu0
        %v2400 = vpop.f32.mrb[0].mxu0
        %v2401 = vadd.f32 %v2360, %v2400
        %v2402 = vpop.f32.mrb[0].mxu0
        %2403 = vdwg.mxu0
        %2404 = vmatprep.subr.bf16.mxu0 0
        %2405 = vmatpush1.bf16.msra.mxu0 %v2278
        %2406 = vmatprep.subr.bf16.mxu0 0
        %2407 = vmatpush1.bf16.msra.mxu0 %v2279
        %2408 = vmatprep.subr.bf16.mxu0 0
        %2409 = vmatpush1.bf16.msra.mxu0 %v2280
        %2410 = vmatprep.subr.bf16.mxu0 0
        %2411 = vmatpush1.bf16.msra.mxu0 %v2281
        %2412 = vmatprep.subr.bf16.mxu0 0
        %2413 = vmatpush1.bf16.msra.mxu0 0
        %2414 = vmatprep.subr.bf16.mxu0 0
        %2415 = vmatpush1.bf16.msra.mxu0 0
        %2416 = vmatprep.subr.bf16.mxu0 0
        %2417 = vmatpush1.bf16.msra.mxu0 0
        %2418 = vmatprep.subr.bf16.mxu0 0
        %2419 = vmatpush1.bf16.msra.mxu0 0
        %2420 = vmatprep.subr.bf16.mxu0 0
        %2421 = vmatpush1.bf16.msra.mxu0 0
        %2422 = vmatprep.subr.bf16.mxu0 0
        %2423 = vmatpush1.bf16.msra.mxu0 0
        %2424 = vmatprep.subr.bf16.mxu0 0
        %2425 = vmatpush1.bf16.msra.mxu0 0
        %2426 = vmatprep.subr.bf16.mxu0 0
        %2427 = vmatpush1.bf16.msra.mxu0 0
        %2428 = vmatprep.subr.bf16.mxu0 0
        %2429 = vmatpush1.bf16.msra.mxu0 0
        %2430 = vmatprep.subr.bf16.mxu0 0
        %2431 = vmatpush1.bf16.msra.mxu0 0
        %2432 = vmatprep.subr.bf16.mxu0 0
        %2433 = vmatpush1.bf16.msra.mxu0 0
        %2434 = vmatprep.subr.bf16.mxu0 0
        %2435 = vmatpush1.bf16.msra.mxu0 0
        %2436 = vmatprep.mubr.bf16.mxu0 0
        %2437 = vmatmul.mubr.bf16.gmra.mrb[0].mxu0 %v2320
        %v2438 = vpop.f32.mrb[0].mxu0
        %v2439 = vadd.f32 %v2398, %v2438
        %v2440 = vpop.f32.mrb[0].mxu0
        %v2441 = vpop.f32.mrb[0].mxu0
        %v2442 = vadd.f32 %v2401, %v2441
        %v2443 = vpop.f32.mrb[0].mxu0
        %2444 = vdwg.mxu0
        %v2445 = vmax.f32 %v2439, 0.0
        %v2446 = vmax.f32 %v2442, 0.0
        %v2447 = vlaneseq
        %v2448 = vshrl.u32 %v2447, 7
        %v2449 = vsub.s32 1, %v2448
        %v2450 = vrot.slane %v2097, %v2449
        %v2451 = vmul.f32 %v2445, %v2450
        %v2452 = vmul.f32 %v2446, %v2450
        %v2453 = vlaneseq
        %v2454 = vshrl.u32 %v2453, 7
        %v2455 = vsub.s32 2, %v2454
        %v2456 = vrot.slane %v2097, %v2455
        %v2457 = vadd.f32 %v2451, %v2456
        %v2458 = vadd.f32 %v2452, %v2456
        %v2459 = vld [vmem:[%s7] sm:$0x1]
        %v2461 = vlaneseq
        %v2462 = vshrl.u32 %v2461, 7
        %v2463 = vsub.s32 0, %v2462
        %v2464 = vrot.slane %v2459, %v2463
        %v2466 = vmul.f32 %v2457, %v2464
        %v2467 = vmul.f32 %v2458, %v2464
        %2468 = vadd.xlane.f32.xlu0 %v2466
        %v2469 = vpop.xlane.xlu0 %2468
        %2470 = vadd.xlane.f32.xlu0 %v2467
        %v2471 = vpop.xlane.xlu0 %2470
        %v2472 = vld [vmem:[#allocation7] sm:$0x1]
        %v2474 = vlaneseq
        %v2475 = vshrl.u32 %v2474, 7
        %v2476 = vsub.s32 0, %v2475
        %v2477 = vrot.slane %v2472, %v2476
        %v2479 = vadd.f32 %v2469, %v2477
        %v2480 = vadd.f32 %v2471, %v2477
        %v2481 = vxor.u32 %v2479, 2147483648
        %v2482 = vxor.u32 %v2480, 2147483648
        %v2483 = vmul.f32 %v2481, 1.442695
        %v2484 = vpow.pop %v2483
        %v2485 = vmul.f32 %v2482, 1.442695
        %v2486 = vpow.pop %v2485
        %v2487 = vadd.f32 %v2484, 1.0
        %v2488 = vadd.f32 %v2486, 1.0
        %v2489 = vrcp.pop %v2487
        %v2490 = vmul.f32 1.0, %v2489
        %v2491 = vrcp.pop %v2488
        %v2492 = vmul.f32 1.0, %v2491
        %2494 = vset.pattern.permute.xlu0 0
        %2495 = vperm.xlu0 %2494, %v2490
        %v2496 = vpop.permute.xlu0 %2495
        %2499 = vset.pattern.permute.xlu0 0
        %2500 = vperm.xlu0 %2499, %v2492
        %v2501 = vpop.permute.xlu0 %2500
        %v2503 = vmul.f32 %v2457, %v2496
        %v2504 = vmul.f32 %v2458, %v2501
        %v2505 = vpack.c.bf16 %v2503, %v2503
        %vm2506 = vcmask 1040384
        %vm2507 = vsmask.f32 256
        %vm2508 = vmand %vm2506, %vm2507
        %v2509 = vld [vmem:[#allocation6] sm:$0x1]
        %v2510 = vsel %vm2508, %v2505, %v2509
        %2511 = vst [vmem:[#allocation6] sm:$0x1] %v2510
        %v2514 = vunpack.c.l.s4 1966171168
        %v2515 = vunpack.c.0.s8 %v2514
        %v2516 = vlaneseq
        %v2517 = vshrl.u32 %v2516, 7
        %v2518 = vsub.s32 %v2515, %v2517
        %v2519 = vrot.slane %v2505, %v2518
        %v2521 = vunpack.c.l.s4 1966171168
        %v2522 = vunpack.c.0.s8 %v2521
        %v2523 = vlaneseq
        %v2524 = vshrl.u32 %v2523, 7
        %v2525 = vsub.s32 %v2522, %v2524
        %v2526 = vrot.slane %v2519, %v2525
        %v2528 = vshrl.u32 %v2526, 16
        %v2530 = vrot.slane %v2528, 7
        %v2531 = vrot.slane %v2530, 1
        %v2533 = vld [vmem:[#allocation6 + $0x1] sm:$0x1]
        %v2534 = vsel %vm2508, %v2531, %v2533
        %2535 = vst [vmem:[#allocation6 + $0x1] sm:$0x1] %v2534
        %v2536 = vcombine.high %v2519, %v2519
        %v2538 = vunpack.c.l.s4 1966171168
        %v2539 = vunpack.c.0.s8 %v2538
        %v2540 = vlaneseq
        %v2541 = vshrl.u32 %v2540, 7
        %v2542 = vsub.s32 %v2539, %v2541
        %v2543 = vrot.slane %v2536, %v2542
        %v2545 = vld [vmem:[#allocation6 + $0x2] sm:$0x1]
        %v2546 = vsel %vm2508, %v2543, %v2545
        %2547 = vst [vmem:[#allocation6 + $0x2] sm:$0x1] %v2546
        %v2549 = vshrl.u32 %v2543, 16
        %v2551 = vrot.slane %v2549, 7
        %v2552 = vrot.slane %v2551, 1
        %v2554 = vld [vmem:[#allocation6 + $0x3] sm:$0x1]
        %v2555 = vsel %vm2508, %v2552, %v2554
        %2556 = vst [vmem:[#allocation6 + $0x3] sm:$0x1] %v2555
        %v2557 = vcombine.high %v2526, %v2526
        %v2559 = vld [vmem:[#allocation6 + $0x4] sm:$0x1]
        %v2560 = vsel %vm2508, %v2557, %v2559
        %2561 = vst [vmem:[#allocation6 + $0x4] sm:$0x1] %v2560
        %v2563 = vshrl.u32 %v2557, 16
        %v2565 = vrot.slane %v2563, 7
        %v2566 = vrot.slane %v2565, 1
        %v2568 = vld [vmem:[#allocation6 + $0x5] sm:$0x1]
        %v2569 = vsel %vm2508, %v2566, %v2568
        %2570 = vst [vmem:[#allocation6 + $0x5] sm:$0x1] %v2569
        %v2571 = vcombine.high %v2543, %v2543
        %v2573 = vld [vmem:[#allocation6 + $0x6] sm:$0x1]
        %v2574 = vsel %vm2508, %v2571, %v2573
        %2575 = vst [vmem:[#allocation6 + $0x6] sm:$0x1] %v2574
        %v2577 = vshrl.u32 %v2571, 16
        %v2579 = vrot.slane %v2577, 7
        %v2580 = vrot.slane %v2579, 1
        %v2582 = vld [vmem:[#allocation6 + $0x7] sm:$0x1]
        %v2583 = vsel %vm2508, %v2580, %v2582
        %2584 = vst [vmem:[#allocation6 + $0x7] sm:$0x1] %v2583
        %v2585 = vpack.c.bf16 %v2504, %v2504
        %v2586 = vld [vmem:[#allocation6 + $0x8] sm:$0x1]
        %v2587 = vsel %vm2508, %v2585, %v2586
        %2588 = vst [vmem:[#allocation6 + $0x8] sm:$0x1] %v2587
        %v2591 = vunpack.c.l.s4 1966171168
        %v2592 = vunpack.c.0.s8 %v2591
        %v2593 = vlaneseq
        %v2594 = vshrl.u32 %v2593, 7
        %v2595 = vsub.s32 %v2592, %v2594
        %v2596 = vrot.slane %v2585, %v2595
        %v2598 = vunpack.c.l.s4 1966171168
        %v2599 = vunpack.c.0.s8 %v2598
        %v2600 = vlaneseq
        %v2601 = vshrl.u32 %v2600, 7
        %v2602 = vsub.s32 %v2599, %v2601
        %v2603 = vrot.slane %v2596, %v2602
        %v2605 = vshrl.u32 %v2603, 16
        %v2607 = vrot.slane %v2605, 7
        %v2608 = vrot.slane %v2607, 1
        %v2610 = vld [vmem:[#allocation6 + $0x9] sm:$0x1]
        %v2611 = vsel %vm2508, %v2608, %v2610
        %2612 = vst [vmem:[#allocation6 + $0x9] sm:$0x1] %v2611
        %v2613 = vcombine.high %v2596, %v2596
        %v2615 = vunpack.c.l.s4 1966171168
        %v2616 = vunpack.c.0.s8 %v2615
        %v2617 = vlaneseq
        %v2618 = vshrl.u32 %v2617, 7
        %v2619 = vsub.s32 %v2616, %v2618
        %v2620 = vrot.slane %v2613, %v2619
        %v2622 = vld [vmem:[#allocation6 + $0xa] sm:$0x1]
        %v2623 = vsel %vm2508, %v2620, %v2622
        %2624 = vst [vmem:[#allocation6 + $0xa] sm:$0x1] %v2623
        %v2626 = vshrl.u32 %v2620, 16
        %v2628 = vrot.slane %v2626, 7
        %v2629 = vrot.slane %v2628, 1
        %v2631 = vld [vmem:[#allocation6 + $0xb] sm:$0x1]
        %v2632 = vsel %vm2508, %v2629, %v2631
        %2633 = vst [vmem:[#allocation6 + $0xb] sm:$0x1] %v2632
        %v2634 = vcombine.high %v2603, %v2603
        %v2636 = vld [vmem:[#allocation6 + $0xc] sm:$0x1]
        %v2637 = vsel %vm2508, %v2634, %v2636
        %2638 = vst [vmem:[#allocation6 + $0xc] sm:$0x1] %v2637
        %v2640 = vshrl.u32 %v2634, 16
        %v2642 = vrot.slane %v2640, 7
        %v2643 = vrot.slane %v2642, 1
        %v2645 = vld [vmem:[#allocation6 + $0xd] sm:$0x1]
        %v2646 = vsel %vm2508, %v2643, %v2645
        %2647 = vst [vmem:[#allocation6 + $0xd] sm:$0x1] %v2646
        %v2648 = vcombine.high %v2620, %v2620
        %v2650 = vld [vmem:[#allocation6 + $0xe] sm:$0x1]
        %v2651 = vsel %vm2508, %v2648, %v2650
        %2652 = vst [vmem:[#allocation6 + $0xe] sm:$0x1] %v2651
        %v2654 = vshrl.u32 %v2648, 16
        %v2656 = vrot.slane %v2654, 7
        %v2657 = vrot.slane %v2656, 1
        %v2659 = vld [vmem:[#allocation6 + $0xf] sm:$0x1]
        %v2660 = vsel %vm2508, %v2657, %v2659
        %2661 = vst [vmem:[#allocation6 + $0xf] sm:$0x1] %v2660
        %v2662 = vld [vmem:[#allocation6] sm:$0xff]
        %v2663 = vld [vmem:[#allocation6 + $0x8] sm:$0xff]
        %v2664 = vld [vmem:[%s9] sm:$0xff]
        %v2665 = vld [vmem:[%s9 + $0x8] sm:$0xff]
        %v2666 = vld [vmem:[%s9 + $0x10] sm:$0xff]
        %v2667 = vld [vmem:[%s9 + $0x18] sm:$0xff]
        %v2668 = vld [vmem:[%s9 + $0x20] sm:$0xff]
        %v2669 = vld [vmem:[%s9 + $0x28] sm:$0xff]
        %v2670 = vld [vmem:[%s9 + $0x30] sm:$0xff]
        %v2671 = vld [vmem:[%s9 + $0x38] sm:$0xff]
        %v2672 = vld [vmem:[%s9 + $0x40] sm:$0xff]
        %v2673 = vld [vmem:[%s9 + $0x48] sm:$0xff]
        %v2674 = vld [vmem:[%s9 + $0x50] sm:$0xff]
        %v2675 = vld [vmem:[%s9 + $0x58] sm:$0xff]
        %v2676 = vld [vmem:[%s9 + $0x60] sm:$0xff]
        %v2677 = vld [vmem:[%s9 + $0x68] sm:$0xff]
        %v2678 = vld [vmem:[%s9 + $0x70] sm:$0xff]
        %v2679 = vld [vmem:[%s9 + $0x78] sm:$0xff]
        %v2680 = vld [vmem:[%s9 + $0x80] sm:$0xff]
        %v2681 = vld [vmem:[%s9 + $0x88] sm:$0xff]
        %v2682 = vld [vmem:[%s9 + $0x90] sm:$0xff]
        %v2683 = vld [vmem:[%s9 + $0x98] sm:$0xff]
        %v2684 = vld [vmem:[%s9 + $0xa0] sm:$0xff]
        %v2685 = vld [vmem:[%s9 + $0xa8] sm:$0xff]
        %v2686 = vld [vmem:[%s9 + $0xb0] sm:$0xff]
        %v2687 = vld [vmem:[%s9 + $0xb8] sm:$0xff]
        %v2688 = vld [vmem:[%s9 + $0xc0] sm:$0xff]
        %v2689 = vld [vmem:[%s9 + $0xc8] sm:$0xff]
        %v2690 = vld [vmem:[%s9 + $0xd0] sm:$0xff]
        %v2691 = vld [vmem:[%s9 + $0xd8] sm:$0xff]
        %v2692 = vld [vmem:[%s9 + $0xe0] sm:$0xff]
        %v2693 = vld [vmem:[%s9 + $0xe8] sm:$0xff]
        %v2694 = vld [vmem:[%s9 + $0xf0] sm:$0xff]
        %v2695 = vld [vmem:[%s9 + $0xf8] sm:$0xff]
        %v2696 = vld [vmem:[%s9 + $0x100] sm:$0xff]
        %v2697 = vld [vmem:[%s9 + $0x108] sm:$0xff]
        %v2698 = vld [vmem:[%s9 + $0x110] sm:$0xff]
        %v2699 = vld [vmem:[%s9 + $0x118] sm:$0xff]
        %v2700 = vld [vmem:[%s9 + $0x120] sm:$0xff]
        %v2701 = vld [vmem:[%s9 + $0x128] sm:$0xff]
        %v2702 = vld [vmem:[%s9 + $0x130] sm:$0xff]
        %v2703 = vld [vmem:[%s9 + $0x138] sm:$0xff]
        %v2704 = vld [vmem:[%s9 + $0x140] sm:$0xff]
        %v2705 = vld [vmem:[%s9 + $0x148] sm:$0xff]
        %v2706 = vld [vmem:[%s9 + $0x150] sm:$0xff]
        %v2707 = vld [vmem:[%s9 + $0x158] sm:$0xff]
        %v2708 = vld [vmem:[%s9 + $0x160] sm:$0xff]
        %v2709 = vld [vmem:[%s9 + $0x168] sm:$0xff]
        %v2710 = vld [vmem:[%s9 + $0x170] sm:$0xff]
        %v2711 = vld [vmem:[%s9 + $0x178] sm:$0xff]
        %v2712 = vld [vmem:[%s9 + $0x180] sm:$0xff]
        %v2713 = vld [vmem:[%s9 + $0x188] sm:$0xff]
        %v2714 = vld [vmem:[%s9 + $0x190] sm:$0xff]
        %v2715 = vld [vmem:[%s9 + $0x198] sm:$0xff]
        %v2716 = vld [vmem:[%s9 + $0x1a0] sm:$0xff]
        %v2717 = vld [vmem:[%s9 + $0x1a8] sm:$0xff]
        %v2718 = vld [vmem:[%s9 + $0x1b0] sm:$0xff]
        %v2719 = vld [vmem:[%s9 + $0x1b8] sm:$0xff]
        %v2720 = vld [vmem:[%s9 + $0x1c0] sm:$0xff]
        %v2721 = vld [vmem:[%s9 + $0x1c8] sm:$0xff]
        %v2722 = vld [vmem:[%s9 + $0x1d0] sm:$0xff]
        %v2723 = vld [vmem:[%s9 + $0x1d8] sm:$0xff]
        %v2724 = vld [vmem:[%s9 + $0x1e0] sm:$0xff]
        %v2725 = vld [vmem:[%s9 + $0x1e8] sm:$0xff]
        %v2726 = vld [vmem:[%s9 + $0x1f0] sm:$0xff]
        %v2727 = vld [vmem:[%s9 + $0x1f8] sm:$0xff]
        %v2728 = vld [vmem:[%s9 + $0x200] sm:$0xff]
        %v2729 = vld [vmem:[%s9 + $0x208] sm:$0xff]
        %v2730 = vld [vmem:[%s9 + $0x210] sm:$0xff]
        %v2731 = vld [vmem:[%s9 + $0x218] sm:$0xff]
        %v2732 = vld [vmem:[%s9 + $0x220] sm:$0xff]
        %v2733 = vld [vmem:[%s9 + $0x228] sm:$0xff]
        %v2734 = vld [vmem:[%s9 + $0x230] sm:$0xff]
        %v2735 = vld [vmem:[%s9 + $0x238] sm:$0xff]
        %v2736 = vld [vmem:[%s9 + $0x240] sm:$0xff]
        %v2737 = vld [vmem:[%s9 + $0x248] sm:$0xff]
        %v2738 = vld [vmem:[%s9 + $0x250] sm:$0xff]
        %v2739 = vld [vmem:[%s9 + $0x258] sm:$0xff]
        %v2740 = vld [vmem:[%s9 + $0x260] sm:$0xff]
        %v2741 = vld [vmem:[%s9 + $0x268] sm:$0xff]
        %v2742 = vld [vmem:[%s9 + $0x270] sm:$0xff]
        %v2743 = vld [vmem:[%s9 + $0x278] sm:$0xff]
        %v2744 = vld [vmem:[%s9 + $0x280] sm:$0xff]
        %v2745 = vld [vmem:[%s9 + $0x288] sm:$0xff]
        %v2746 = vld [vmem:[%s9 + $0x290] sm:$0xff]
        %v2747 = vld [vmem:[%s9 + $0x298] sm:$0xff]
        %v2748 = vld [vmem:[%s9 + $0x2a0] sm:$0xff]
        %v2749 = vld [vmem:[%s9 + $0x2a8] sm:$0xff]
        %v2750 = vld [vmem:[%s9 + $0x2b0] sm:$0xff]
        %v2751 = vld [vmem:[%s9 + $0x2b8] sm:$0xff]
        %v2752 = vld [vmem:[%s9 + $0x2c0] sm:$0xff]
        %v2753 = vld [vmem:[%s9 + $0x2c8] sm:$0xff]
        %v2754 = vld [vmem:[%s9 + $0x2d0] sm:$0xff]
        %v2755 = vld [vmem:[%s9 + $0x2d8] sm:$0xff]
        %v2756 = vld [vmem:[%s9 + $0x2e0] sm:$0xff]
        %v2757 = vld [vmem:[%s9 + $0x2e8] sm:$0xff]
        %v2758 = vld [vmem:[%s9 + $0x2f0] sm:$0xff]
        %v2759 = vld [vmem:[%s9 + $0x2f8] sm:$0xff]
        %v2760 = vld [vmem:[%s9 + $0x300] sm:$0xff]
        %v2761 = vld [vmem:[%s9 + $0x308] sm:$0xff]
        %v2762 = vld [vmem:[%s9 + $0x310] sm:$0xff]
        %v2763 = vld [vmem:[%s9 + $0x318] sm:$0xff]
        %v2764 = vld [vmem:[%s9 + $0x320] sm:$0xff]
        %v2765 = vld [vmem:[%s9 + $0x328] sm:$0xff]
        %v2766 = vld [vmem:[%s9 + $0x330] sm:$0xff]
        %v2767 = vld [vmem:[%s9 + $0x338] sm:$0xff]
        %v2768 = vld [vmem:[%s9 + $0x340] sm:$0xff]
        %v2769 = vld [vmem:[%s9 + $0x348] sm:$0xff]
        %v2770 = vld [vmem:[%s9 + $0x350] sm:$0xff]
        %v2771 = vld [vmem:[%s9 + $0x358] sm:$0xff]
        %v2772 = vld [vmem:[%s9 + $0x360] sm:$0xff]
        %v2773 = vld [vmem:[%s9 + $0x368] sm:$0xff]
        %v2774 = vld [vmem:[%s9 + $0x370] sm:$0xff]
        %v2775 = vld [vmem:[%s9 + $0x378] sm:$0xff]
        %v2776 = vld [vmem:[%s9 + $0x380] sm:$0xff]
        %v2777 = vld [vmem:[%s9 + $0x388] sm:$0xff]
        %v2778 = vld [vmem:[%s9 + $0x390] sm:$0xff]
        %v2779 = vld [vmem:[%s9 + $0x398] sm:$0xff]
        %v2780 = vld [vmem:[%s9 + $0x3a0] sm:$0xff]
        %v2781 = vld [vmem:[%s9 + $0x3a8] sm:$0xff]
        %v2782 = vld [vmem:[%s9 + $0x3b0] sm:$0xff]
        %v2783 = vld [vmem:[%s9 + $0x3b8] sm:$0xff]
        %v2784 = vld [vmem:[%s9 + $0x3c0] sm:$0xff]
        %v2785 = vld [vmem:[%s9 + $0x3c8] sm:$0xff]
        %v2786 = vld [vmem:[%s9 + $0x3d0] sm:$0xff]
        %v2787 = vld [vmem:[%s9 + $0x3d8] sm:$0xff]
        %v2788 = vld [vmem:[%s9 + $0x3e0] sm:$0xff]
        %v2789 = vld [vmem:[%s9 + $0x3e8] sm:$0xff]
        %v2790 = vld [vmem:[%s9 + $0x3f0] sm:$0xff]
        %v2791 = vld [vmem:[%s9 + $0x3f8] sm:$0xff]
        %v2792 = vld [vmem:[%s9 + $0x400] sm:$0xff]
        %v2793 = vld [vmem:[%s9 + $0x408] sm:$0xff]
        %v2794 = vld [vmem:[%s9 + $0x410] sm:$0xff]
        %v2795 = vld [vmem:[%s9 + $0x418] sm:$0xff]
        %v2796 = vld [vmem:[%s9 + $0x420] sm:$0xff]
        %v2797 = vld [vmem:[%s9 + $0x428] sm:$0xff]
        %v2798 = vld [vmem:[%s9 + $0x430] sm:$0xff]
        %v2799 = vld [vmem:[%s9 + $0x438] sm:$0xff]
        %v2800 = vld [vmem:[%s9 + $0x440] sm:$0xff]
        %v2801 = vld [vmem:[%s9 + $0x448] sm:$0xff]
        %v2802 = vld [vmem:[%s9 + $0x450] sm:$0xff]
        %v2803 = vld [vmem:[%s9 + $0x458] sm:$0xff]
        %v2804 = vld [vmem:[%s9 + $0x460] sm:$0xff]
        %v2805 = vld [vmem:[%s9 + $0x468] sm:$0xff]
        %v2806 = vld [vmem:[%s9 + $0x470] sm:$0xff]
        %v2807 = vld [vmem:[%s9 + $0x478] sm:$0xff]
        %v2808 = vld [vmem:[%s9 + $0x480] sm:$0xff]
        %v2809 = vld [vmem:[%s9 + $0x488] sm:$0xff]
        %v2810 = vld [vmem:[%s9 + $0x490] sm:$0xff]
        %v2811 = vld [vmem:[%s9 + $0x498] sm:$0xff]
        %v2812 = vld [vmem:[%s9 + $0x4a0] sm:$0xff]
        %v2813 = vld [vmem:[%s9 + $0x4a8] sm:$0xff]
        %v2814 = vld [vmem:[%s9 + $0x4b0] sm:$0xff]
        %v2815 = vld [vmem:[%s9 + $0x4b8] sm:$0xff]
        %v2816 = vld [vmem:[%s9 + $0x4c0] sm:$0xff]
        %v2817 = vld [vmem:[%s9 + $0x4c8] sm:$0xff]
        %v2818 = vld [vmem:[%s9 + $0x4d0] sm:$0xff]
        %v2819 = vld [vmem:[%s9 + $0x4d8] sm:$0xff]
        %v2820 = vld [vmem:[%s9 + $0x4e0] sm:$0xff]
        %v2821 = vld [vmem:[%s9 + $0x4e8] sm:$0xff]
        %v2822 = vld [vmem:[%s9 + $0x4f0] sm:$0xff]
        %v2823 = vld [vmem:[%s9 + $0x4f8] sm:$0xff]
        %v2824 = vld [vmem:[%s9 + $0x500] sm:$0xff]
        %v2825 = vld [vmem:[%s9 + $0x508] sm:$0xff]
        %v2826 = vld [vmem:[%s9 + $0x510] sm:$0xff]
        %v2827 = vld [vmem:[%s9 + $0x518] sm:$0xff]
        %v2828 = vld [vmem:[%s9 + $0x520] sm:$0xff]
        %v2829 = vld [vmem:[%s9 + $0x528] sm:$0xff]
        %v2830 = vld [vmem:[%s9 + $0x530] sm:$0xff]
        %v2831 = vld [vmem:[%s9 + $0x538] sm:$0xff]
        %v2832 = vld [vmem:[%s9 + $0x540] sm:$0xff]
        %v2833 = vld [vmem:[%s9 + $0x548] sm:$0xff]
        %v2834 = vld [vmem:[%s9 + $0x550] sm:$0xff]
        %v2835 = vld [vmem:[%s9 + $0x558] sm:$0xff]
        %v2836 = vld [vmem:[%s9 + $0x560] sm:$0xff]
        %v2837 = vld [vmem:[%s9 + $0x568] sm:$0xff]
        %v2838 = vld [vmem:[%s9 + $0x570] sm:$0xff]
        %v2839 = vld [vmem:[%s9 + $0x578] sm:$0xff]
        %v2840 = vld [vmem:[%s9 + $0x580] sm:$0xff]
        %v2841 = vld [vmem:[%s9 + $0x588] sm:$0xff]
        %v2842 = vld [vmem:[%s9 + $0x590] sm:$0xff]
        %v2843 = vld [vmem:[%s9 + $0x598] sm:$0xff]
        %v2844 = vld [vmem:[%s9 + $0x5a0] sm:$0xff]
        %v2845 = vld [vmem:[%s9 + $0x5a8] sm:$0xff]
        %v2846 = vld [vmem:[%s9 + $0x5b0] sm:$0xff]
        %v2847 = vld [vmem:[%s9 + $0x5b8] sm:$0xff]
        %v2848 = vld [vmem:[%s9 + $0x5c0] sm:$0xff]
        %v2849 = vld [vmem:[%s9 + $0x5c8] sm:$0xff]
        %v2850 = vld [vmem:[%s9 + $0x5d0] sm:$0xff]
        %v2851 = vld [vmem:[%s9 + $0x5d8] sm:$0xff]
        %v2852 = vld [vmem:[%s9 + $0x5e0] sm:$0xff]
        %v2853 = vld [vmem:[%s9 + $0x5e8] sm:$0xff]
        %v2854 = vld [vmem:[%s9 + $0x5f0] sm:$0xff]
        %v2855 = vld [vmem:[%s9 + $0x5f8] sm:$0xff]
        %v2856 = vld [vmem:[%s9 + $0x600] sm:$0xff]
        %v2857 = vld [vmem:[%s9 + $0x608] sm:$0xff]
        %v2858 = vld [vmem:[%s9 + $0x610] sm:$0xff]
        %v2859 = vld [vmem:[%s9 + $0x618] sm:$0xff]
        %v2860 = vld [vmem:[%s9 + $0x620] sm:$0xff]
        %v2861 = vld [vmem:[%s9 + $0x628] sm:$0xff]
        %v2862 = vld [vmem:[%s9 + $0x630] sm:$0xff]
        %v2863 = vld [vmem:[%s9 + $0x638] sm:$0xff]
        %v2864 = vld [vmem:[%s9 + $0x640] sm:$0xff]
        %v2865 = vld [vmem:[%s9 + $0x648] sm:$0xff]
        %v2866 = vld [vmem:[%s9 + $0x650] sm:$0xff]
        %v2867 = vld [vmem:[%s9 + $0x658] sm:$0xff]
        %v2868 = vld [vmem:[%s9 + $0x660] sm:$0xff]
        %v2869 = vld [vmem:[%s9 + $0x668] sm:$0xff]
        %v2870 = vld [vmem:[%s9 + $0x670] sm:$0xff]
        %v2871 = vld [vmem:[%s9 + $0x678] sm:$0xff]
        %v2872 = vld [vmem:[%s9 + $0x680] sm:$0xff]
        %v2873 = vld [vmem:[%s9 + $0x688] sm:$0xff]
        %v2874 = vld [vmem:[%s9 + $0x690] sm:$0xff]
        %v2875 = vld [vmem:[%s9 + $0x698] sm:$0xff]
        %v2876 = vld [vmem:[%s9 + $0x6a0] sm:$0xff]
        %v2877 = vld [vmem:[%s9 + $0x6a8] sm:$0xff]
        %v2878 = vld [vmem:[%s9 + $0x6b0] sm:$0xff]
        %v2879 = vld [vmem:[%s9 + $0x6b8] sm:$0xff]
        %v2880 = vld [vmem:[%s9 + $0x6c0] sm:$0xff]
        %v2881 = vld [vmem:[%s9 + $0x6c8] sm:$0xff]
        %v2882 = vld [vmem:[%s9 + $0x6d0] sm:$0xff]
        %v2883 = vld [vmem:[%s9 + $0x6d8] sm:$0xff]
        %v2884 = vld [vmem:[%s9 + $0x6e0] sm:$0xff]
        %v2885 = vld [vmem:[%s9 + $0x6e8] sm:$0xff]
        %v2886 = vld [vmem:[%s9 + $0x6f0] sm:$0xff]
        %v2887 = vld [vmem:[%s9 + $0x6f8] sm:$0xff]
        %v2888 = vld [vmem:[%s9 + $0x700] sm:$0xff]
        %v2889 = vld [vmem:[%s9 + $0x708] sm:$0xff]
        %v2890 = vld [vmem:[%s9 + $0x710] sm:$0xff]
        %v2891 = vld [vmem:[%s9 + $0x718] sm:$0xff]
        %v2892 = vld [vmem:[%s9 + $0x720] sm:$0xff]
        %v2893 = vld [vmem:[%s9 + $0x728] sm:$0xff]
        %v2894 = vld [vmem:[%s9 + $0x730] sm:$0xff]
        %v2895 = vld [vmem:[%s9 + $0x738] sm:$0xff]
        %v2896 = vld [vmem:[%s9 + $0x740] sm:$0xff]
        %v2897 = vld [vmem:[%s9 + $0x748] sm:$0xff]
        %v2898 = vld [vmem:[%s9 + $0x750] sm:$0xff]
        %v2899 = vld [vmem:[%s9 + $0x758] sm:$0xff]
        %v2900 = vld [vmem:[%s9 + $0x760] sm:$0xff]
        %v2901 = vld [vmem:[%s9 + $0x768] sm:$0xff]
        %v2902 = vld [vmem:[%s9 + $0x770] sm:$0xff]
        %v2903 = vld [vmem:[%s9 + $0x778] sm:$0xff]
        %v2904 = vld [vmem:[%s9 + $0x780] sm:$0xff]
        %v2905 = vld [vmem:[%s9 + $0x788] sm:$0xff]
        %v2906 = vld [vmem:[%s9 + $0x790] sm:$0xff]
        %v2907 = vld [vmem:[%s9 + $0x798] sm:$0xff]
        %v2908 = vld [vmem:[%s9 + $0x7a0] sm:$0xff]
        %v2909 = vld [vmem:[%s9 + $0x7a8] sm:$0xff]
        %v2910 = vld [vmem:[%s9 + $0x7b0] sm:$0xff]
        %v2911 = vld [vmem:[%s9 + $0x7b8] sm:$0xff]
        %v2912 = vld [vmem:[%s9 + $0x7c0] sm:$0xff]
        %v2913 = vld [vmem:[%s9 + $0x7c8] sm:$0xff]
        %v2914 = vld [vmem:[%s9 + $0x7d0] sm:$0xff]
        %v2915 = vld [vmem:[%s9 + $0x7d8] sm:$0xff]
        %v2916 = vld [vmem:[%s9 + $0x7e0] sm:$0xff]
        %v2917 = vld [vmem:[%s9 + $0x7e8] sm:$0xff]
        %v2918 = vld [vmem:[%s9 + $0x7f0] sm:$0xff]
        %v2919 = vld [vmem:[%s9 + $0x7f8] sm:$0xff]
        %v2920 = vld [vmem:[%s10] sm:$0x3]
        %v2923 = vcombine.high %v2662, %v2662
        %v2925 = vunpack.c.l.s4 1966171168
        %v2926 = vunpack.c.0.s8 %v2925
        %v2927 = vlaneseq
        %v2928 = vshrl.u32 %v2927, 7
        %v2929 = vsub.s32 %v2926, %v2928
        %v2930 = vrot.slane %v2662, %v2929
        %v2932 = vunpack.c.l.s4 1966171168
        %v2933 = vunpack.c.0.s8 %v2932
        %v2934 = vlaneseq
        %v2935 = vshrl.u32 %v2934, 7
        %v2936 = vsub.s32 %v2933, %v2935
        %v2937 = vrot.slane %v2923, %v2936
        %v2938 = vcombine.high %v2930, %v2930
        %v2939 = vcombine.high %v2937, %v2937
        %v2941 = vunpack.c.l.s4 1966171168
        %v2942 = vunpack.c.0.s8 %v2941
        %v2943 = vlaneseq
        %v2944 = vshrl.u32 %v2943, 7
        %v2945 = vsub.s32 %v2942, %v2944
        %v2946 = vrot.slane %v2930, %v2945
        %v2948 = vunpack.c.l.s4 1966171168
        %v2949 = vunpack.c.0.s8 %v2948
        %v2950 = vlaneseq
        %v2951 = vshrl.u32 %v2950, 7
        %v2952 = vsub.s32 %v2949, %v2951
        %v2953 = vrot.slane %v2937, %v2952
        %v2955 = vunpack.c.l.s4 1966171168
        %v2956 = vunpack.c.0.s8 %v2955
        %v2957 = vlaneseq
        %v2958 = vshrl.u32 %v2957, 7
        %v2959 = vsub.s32 %v2956, %v2958
        %v2960 = vrot.slane %v2938, %v2959
        %v2962 = vunpack.c.l.s4 1966171168
        %v2963 = vunpack.c.0.s8 %v2962
        %v2964 = vlaneseq
        %v2965 = vshrl.u32 %v2964, 7
        %v2966 = vsub.s32 %v2963, %v2965
        %v2967 = vrot.slane %v2939, %v2966
        %v2968 = vcombine.high %v2946, %v2946
        %v2969 = vcombine.high %v2953, %v2953
        %v2970 = vcombine.high %v2960, %v2960
        %v2971 = vcombine.high %v2967, %v2967
        %v2972 = vcombine.high %v2663, %v2663
        %v2974 = vunpack.c.l.s4 1966171168
        %v2975 = vunpack.c.0.s8 %v2974
        %v2976 = vlaneseq
        %v2977 = vshrl.u32 %v2976, 7
        %v2978 = vsub.s32 %v2975, %v2977
        %v2979 = vrot.slane %v2663, %v2978
        %v2981 = vunpack.c.l.s4 1966171168
        %v2982 = vunpack.c.0.s8 %v2981
        %v2983 = vlaneseq
        %v2984 = vshrl.u32 %v2983, 7
        %v2985 = vsub.s32 %v2982, %v2984
        %v2986 = vrot.slane %v2972, %v2985
        %v2987 = vcombine.high %v2979, %v2979
        %v2988 = vcombine.high %v2986, %v2986
        %v2990 = vunpack.c.l.s4 1966171168
        %v2991 = vunpack.c.0.s8 %v2990
        %v2992 = vlaneseq
        %v2993 = vshrl.u32 %v2992, 7
        %v2994 = vsub.s32 %v2991, %v2993
        %v2995 = vrot.slane %v2979, %v2994
        %v2997 = vunpack.c.l.s4 1966171168
        %v2998 = vunpack.c.0.s8 %v2997
        %v2999 = vlaneseq
        %v3000 = vshrl.u32 %v2999, 7
        %v3001 = vsub.s32 %v2998, %v3000
        %v3002 = vrot.slane %v2986, %v3001
        %v3004 = vunpack.c.l.s4 1966171168
        %v3005 = vunpack.c.0.s8 %v3004
        %v3006 = vlaneseq
        %v3007 = vshrl.u32 %v3006, 7
        %v3008 = vsub.s32 %v3005, %v3007
        %v3009 = vrot.slane %v2987, %v3008
        %v3011 = vunpack.c.l.s4 1966171168
        %v3012 = vunpack.c.0.s8 %v3011
        %v3013 = vlaneseq
        %v3014 = vshrl.u32 %v3013, 7
        %v3015 = vsub.s32 %v3012, %v3014
        %v3016 = vrot.slane %v2988, %v3015
        %v3017 = vcombine.high %v2995, %v2995
        %v3018 = vcombine.high %v3002, %v3002
        %v3019 = vcombine.high %v3009, %v3009
        %v3020 = vcombine.high %v3016, %v3016
        %v3293 = vunpack.c.l.b16 %v2664
        %v3294 = vunpack.c.h.b16 %v2664
        %v3295 = vunpack.c.l.b16 %v2665
        %v3296 = vunpack.c.h.b16 %v2665
        %v3297 = vunpack.c.l.b16 %v2666
        %v3298 = vunpack.c.h.b16 %v2666
        %v3299 = vunpack.c.l.b16 %v2667
        %v3300 = vunpack.c.h.b16 %v2667
        %v3301 = vunpack.c.l.b16 %v2668
        %v3302 = vunpack.c.h.b16 %v2668
        %v3303 = vunpack.c.l.b16 %v2669
        %v3304 = vunpack.c.h.b16 %v2669
        %v3305 = vunpack.c.l.b16 %v2670
        %v3306 = vunpack.c.h.b16 %v2670
        %v3307 = vunpack.c.l.b16 %v2671
        %v3308 = vunpack.c.h.b16 %v2671
        %v3309 = vunpack.c.l.b16 %v2672
        %v3310 = vunpack.c.h.b16 %v2672
        %v3311 = vunpack.c.l.b16 %v2673
        %v3312 = vunpack.c.h.b16 %v2673
        %v3313 = vunpack.c.l.b16 %v2674
        %v3314 = vunpack.c.h.b16 %v2674
        %v3315 = vunpack.c.l.b16 %v2675
        %v3316 = vunpack.c.h.b16 %v2675
        %v3317 = vunpack.c.l.b16 %v2676
        %v3318 = vunpack.c.h.b16 %v2676
        %v3319 = vunpack.c.l.b16 %v2677
        %v3320 = vunpack.c.h.b16 %v2677
        %v3321 = vunpack.c.l.b16 %v2678
        %v3322 = vunpack.c.h.b16 %v2678
        %v3323 = vunpack.c.l.b16 %v2679
        %v3324 = vunpack.c.h.b16 %v2679
        %v3325 = vunpack.c.l.b16 %v2680
        %v3326 = vunpack.c.h.b16 %v2680
        %v3327 = vunpack.c.l.b16 %v2681
        %v3328 = vunpack.c.h.b16 %v2681
        %v3329 = vunpack.c.l.b16 %v2682
        %v3330 = vunpack.c.h.b16 %v2682
        %v3331 = vunpack.c.l.b16 %v2683
        %v3332 = vunpack.c.h.b16 %v2683
        %v3333 = vunpack.c.l.b16 %v2684
        %v3334 = vunpack.c.h.b16 %v2684
        %v3335 = vunpack.c.l.b16 %v2685
        %v3336 = vunpack.c.h.b16 %v2685
        %v3337 = vunpack.c.l.b16 %v2686
        %v3338 = vunpack.c.h.b16 %v2686
        %v3339 = vunpack.c.l.b16 %v2687
        %v3340 = vunpack.c.h.b16 %v2687
        %v3341 = vunpack.c.l.b16 %v2688
        %v3342 = vunpack.c.h.b16 %v2688
        %v3343 = vunpack.c.l.b16 %v2689
        %v3344 = vunpack.c.h.b16 %v2689
        %v3345 = vunpack.c.l.b16 %v2690
        %v3346 = vunpack.c.h.b16 %v2690
        %v3347 = vunpack.c.l.b16 %v2691
        %v3348 = vunpack.c.h.b16 %v2691
        %v3349 = vunpack.c.l.b16 %v2692
        %v3350 = vunpack.c.h.b16 %v2692
        %v3351 = vunpack.c.l.b16 %v2693
        %v3352 = vunpack.c.h.b16 %v2693
        %v3353 = vunpack.c.l.b16 %v2694
        %v3354 = vunpack.c.h.b16 %v2694
        %v3355 = vunpack.c.l.b16 %v2695
        %v3356 = vunpack.c.h.b16 %v2695
        %v3357 = vunpack.c.l.b16 %v2696
        %v3358 = vunpack.c.h.b16 %v2696
        %v3359 = vunpack.c.l.b16 %v2697
        %v3360 = vunpack.c.h.b16 %v2697
        %v3361 = vunpack.c.l.b16 %v2698
        %v3362 = vunpack.c.h.b16 %v2698
        %v3363 = vunpack.c.l.b16 %v2699
        %v3364 = vunpack.c.h.b16 %v2699
        %v3365 = vunpack.c.l.b16 %v2700
        %v3366 = vunpack.c.h.b16 %v2700
        %v3367 = vunpack.c.l.b16 %v2701
        %v3368 = vunpack.c.h.b16 %v2701
        %v3369 = vunpack.c.l.b16 %v2702
        %v3370 = vunpack.c.h.b16 %v2702
        %v3371 = vunpack.c.l.b16 %v2703
        %v3372 = vunpack.c.h.b16 %v2703
        %v3373 = vunpack.c.l.b16 %v2704
        %v3374 = vunpack.c.h.b16 %v2704
        %v3375 = vunpack.c.l.b16 %v2705
        %v3376 = vunpack.c.h.b16 %v2705
        %v3377 = vunpack.c.l.b16 %v2706
        %v3378 = vunpack.c.h.b16 %v2706
        %v3379 = vunpack.c.l.b16 %v2707
        %v3380 = vunpack.c.h.b16 %v2707
        %v3381 = vunpack.c.l.b16 %v2708
        %v3382 = vunpack.c.h.b16 %v2708
        %v3383 = vunpack.c.l.b16 %v2709
        %v3384 = vunpack.c.h.b16 %v2709
        %v3385 = vunpack.c.l.b16 %v2710
        %v3386 = vunpack.c.h.b16 %v2710
        %v3387 = vunpack.c.l.b16 %v2711
        %v3388 = vunpack.c.h.b16 %v2711
        %v3389 = vunpack.c.l.b16 %v2712
        %v3390 = vunpack.c.h.b16 %v2712
        %v3391 = vunpack.c.l.b16 %v2713
        %v3392 = vunpack.c.h.b16 %v2713
        %v3393 = vunpack.c.l.b16 %v2714
        %v3394 = vunpack.c.h.b16 %v2714
        %v3395 = vunpack.c.l.b16 %v2715
        %v3396 = vunpack.c.h.b16 %v2715
        %v3397 = vunpack.c.l.b16 %v2716
        %v3398 = vunpack.c.h.b16 %v2716
        %v3399 = vunpack.c.l.b16 %v2717
        %v3400 = vunpack.c.h.b16 %v2717
        %v3401 = vunpack.c.l.b16 %v2718
        %v3402 = vunpack.c.h.b16 %v2718
        %v3403 = vunpack.c.l.b16 %v2719
        %v3404 = vunpack.c.h.b16 %v2719
        %v3405 = vunpack.c.l.b16 %v2720
        %v3406 = vunpack.c.h.b16 %v2720
        %v3407 = vunpack.c.l.b16 %v2721
        %v3408 = vunpack.c.h.b16 %v2721
        %v3409 = vunpack.c.l.b16 %v2722
        %v3410 = vunpack.c.h.b16 %v2722
        %v3411 = vunpack.c.l.b16 %v2723
        %v3412 = vunpack.c.h.b16 %v2723
        %v3413 = vunpack.c.l.b16 %v2724
        %v3414 = vunpack.c.h.b16 %v2724
        %v3415 = vunpack.c.l.b16 %v2725
        %v3416 = vunpack.c.h.b16 %v2725
        %v3417 = vunpack.c.l.b16 %v2726
        %v3418 = vunpack.c.h.b16 %v2726
        %v3419 = vunpack.c.l.b16 %v2727
        %v3420 = vunpack.c.h.b16 %v2727
        %v3421 = vunpack.c.l.b16 %v2728
        %v3422 = vunpack.c.h.b16 %v2728
        %v3423 = vunpack.c.l.b16 %v2729
        %v3424 = vunpack.c.h.b16 %v2729
        %v3425 = vunpack.c.l.b16 %v2730
        %v3426 = vunpack.c.h.b16 %v2730
        %v3427 = vunpack.c.l.b16 %v2731
        %v3428 = vunpack.c.h.b16 %v2731
        %v3429 = vunpack.c.l.b16 %v2732
        %v3430 = vunpack.c.h.b16 %v2732
        %v3431 = vunpack.c.l.b16 %v2733
        %v3432 = vunpack.c.h.b16 %v2733
        %v3433 = vunpack.c.l.b16 %v2734
        %v3434 = vunpack.c.h.b16 %v2734
        %v3435 = vunpack.c.l.b16 %v2735
        %v3436 = vunpack.c.h.b16 %v2735
        %v3437 = vunpack.c.l.b16 %v2736
        %v3438 = vunpack.c.h.b16 %v2736
        %v3439 = vunpack.c.l.b16 %v2737
        %v3440 = vunpack.c.h.b16 %v2737
        %v3441 = vunpack.c.l.b16 %v2738
        %v3442 = vunpack.c.h.b16 %v2738
        %v3443 = vunpack.c.l.b16 %v2739
        %v3444 = vunpack.c.h.b16 %v2739
        %v3445 = vunpack.c.l.b16 %v2740
        %v3446 = vunpack.c.h.b16 %v2740
        %v3447 = vunpack.c.l.b16 %v2741
        %v3448 = vunpack.c.h.b16 %v2741
        %v3449 = vunpack.c.l.b16 %v2742
        %v3450 = vunpack.c.h.b16 %v2742
        %v3451 = vunpack.c.l.b16 %v2743
        %v3452 = vunpack.c.h.b16 %v2743
        %v3453 = vunpack.c.l.b16 %v2744
        %v3454 = vunpack.c.h.b16 %v2744
        %v3455 = vunpack.c.l.b16 %v2745
        %v3456 = vunpack.c.h.b16 %v2745
        %v3457 = vunpack.c.l.b16 %v2746
        %v3458 = vunpack.c.h.b16 %v2746
        %v3459 = vunpack.c.l.b16 %v2747
        %v3460 = vunpack.c.h.b16 %v2747
        %v3461 = vunpack.c.l.b16 %v2748
        %v3462 = vunpack.c.h.b16 %v2748
        %v3463 = vunpack.c.l.b16 %v2749
        %v3464 = vunpack.c.h.b16 %v2749
        %v3465 = vunpack.c.l.b16 %v2750
        %v3466 = vunpack.c.h.b16 %v2750
        %v3467 = vunpack.c.l.b16 %v2751
        %v3468 = vunpack.c.h.b16 %v2751
        %v3469 = vunpack.c.l.b16 %v2752
        %v3470 = vunpack.c.h.b16 %v2752
        %v3471 = vunpack.c.l.b16 %v2753
        %v3472 = vunpack.c.h.b16 %v2753
        %v3473 = vunpack.c.l.b16 %v2754
        %v3474 = vunpack.c.h.b16 %v2754
        %v3475 = vunpack.c.l.b16 %v2755
        %v3476 = vunpack.c.h.b16 %v2755
        %v3477 = vunpack.c.l.b16 %v2756
        %v3478 = vunpack.c.h.b16 %v2756
        %v3479 = vunpack.c.l.b16 %v2757
        %v3480 = vunpack.c.h.b16 %v2757
        %v3481 = vunpack.c.l.b16 %v2758
        %v3482 = vunpack.c.h.b16 %v2758
        %v3483 = vunpack.c.l.b16 %v2759
        %v3484 = vunpack.c.h.b16 %v2759
        %v3485 = vunpack.c.l.b16 %v2760
        %v3486 = vunpack.c.h.b16 %v2760
        %v3487 = vunpack.c.l.b16 %v2761
        %v3488 = vunpack.c.h.b16 %v2761
        %v3489 = vunpack.c.l.b16 %v2762
        %v3490 = vunpack.c.h.b16 %v2762
        %v3491 = vunpack.c.l.b16 %v2763
        %v3492 = vunpack.c.h.b16 %v2763
        %v3493 = vunpack.c.l.b16 %v2764
        %v3494 = vunpack.c.h.b16 %v2764
        %v3495 = vunpack.c.l.b16 %v2765
        %v3496 = vunpack.c.h.b16 %v2765
        %v3497 = vunpack.c.l.b16 %v2766
        %v3498 = vunpack.c.h.b16 %v2766
        %v3499 = vunpack.c.l.b16 %v2767
        %v3500 = vunpack.c.h.b16 %v2767
        %v3501 = vunpack.c.l.b16 %v2768
        %v3502 = vunpack.c.h.b16 %v2768
        %v3503 = vunpack.c.l.b16 %v2769
        %v3504 = vunpack.c.h.b16 %v2769
        %v3505 = vunpack.c.l.b16 %v2770
        %v3506 = vunpack.c.h.b16 %v2770
        %v3507 = vunpack.c.l.b16 %v2771
        %v3508 = vunpack.c.h.b16 %v2771
        %v3509 = vunpack.c.l.b16 %v2772
        %v3510 = vunpack.c.h.b16 %v2772
        %v3511 = vunpack.c.l.b16 %v2773
        %v3512 = vunpack.c.h.b16 %v2773
        %v3513 = vunpack.c.l.b16 %v2774
        %v3514 = vunpack.c.h.b16 %v2774
        %v3515 = vunpack.c.l.b16 %v2775
        %v3516 = vunpack.c.h.b16 %v2775
        %v3517 = vunpack.c.l.b16 %v2776
        %v3518 = vunpack.c.h.b16 %v2776
        %v3519 = vunpack.c.l.b16 %v2777
        %v3520 = vunpack.c.h.b16 %v2777
        %v3521 = vunpack.c.l.b16 %v2778
        %v3522 = vunpack.c.h.b16 %v2778
        %v3523 = vunpack.c.l.b16 %v2779
        %v3524 = vunpack.c.h.b16 %v2779
        %v3525 = vunpack.c.l.b16 %v2780
        %v3526 = vunpack.c.h.b16 %v2780
        %v3527 = vunpack.c.l.b16 %v2781
        %v3528 = vunpack.c.h.b16 %v2781
        %v3529 = vunpack.c.l.b16 %v2782
        %v3530 = vunpack.c.h.b16 %v2782
        %v3531 = vunpack.c.l.b16 %v2783
        %v3532 = vunpack.c.h.b16 %v2783
        %v3533 = vunpack.c.l.b16 %v2784
        %v3534 = vunpack.c.h.b16 %v2784
        %v3535 = vunpack.c.l.b16 %v2785
        %v3536 = vunpack.c.h.b16 %v2785
        %v3537 = vunpack.c.l.b16 %v2786
        %v3538 = vunpack.c.h.b16 %v2786
        %v3539 = vunpack.c.l.b16 %v2787
        %v3540 = vunpack.c.h.b16 %v2787
        %v3541 = vunpack.c.l.b16 %v2788
        %v3542 = vunpack.c.h.b16 %v2788
        %v3543 = vunpack.c.l.b16 %v2789
        %v3544 = vunpack.c.h.b16 %v2789
        %v3545 = vunpack.c.l.b16 %v2790
        %v3546 = vunpack.c.h.b16 %v2790
        %v3547 = vunpack.c.l.b16 %v2791
        %v3548 = vunpack.c.h.b16 %v2791
        %v3549 = vunpack.c.l.b16 %v2792
        %v3550 = vunpack.c.h.b16 %v2792
        %v3551 = vunpack.c.l.b16 %v2793
        %v3552 = vunpack.c.h.b16 %v2793
        %v3553 = vunpack.c.l.b16 %v2794
        %v3554 = vunpack.c.h.b16 %v2794
        %v3555 = vunpack.c.l.b16 %v2795
        %v3556 = vunpack.c.h.b16 %v2795
        %v3557 = vunpack.c.l.b16 %v2796
        %v3558 = vunpack.c.h.b16 %v2796
        %v3559 = vunpack.c.l.b16 %v2797
        %v3560 = vunpack.c.h.b16 %v2797
        %v3561 = vunpack.c.l.b16 %v2798
        %v3562 = vunpack.c.h.b16 %v2798
        %v3563 = vunpack.c.l.b16 %v2799
        %v3564 = vunpack.c.h.b16 %v2799
        %v3565 = vunpack.c.l.b16 %v2800
        %v3566 = vunpack.c.h.b16 %v2800
        %v3567 = vunpack.c.l.b16 %v2801
        %v3568 = vunpack.c.h.b16 %v2801
        %v3569 = vunpack.c.l.b16 %v2802
        %v3570 = vunpack.c.h.b16 %v2802
        %v3571 = vunpack.c.l.b16 %v2803
        %v3572 = vunpack.c.h.b16 %v2803
        %v3573 = vunpack.c.l.b16 %v2804
        %v3574 = vunpack.c.h.b16 %v2804
        %v3575 = vunpack.c.l.b16 %v2805
        %v3576 = vunpack.c.h.b16 %v2805
        %v3577 = vunpack.c.l.b16 %v2806
        %v3578 = vunpack.c.h.b16 %v2806
        %v3579 = vunpack.c.l.b16 %v2807
        %v3580 = vunpack.c.h.b16 %v2807
        %v3581 = vunpack.c.l.b16 %v2808
        %v3582 = vunpack.c.h.b16 %v2808
        %v3583 = vunpack.c.l.b16 %v2809
        %v3584 = vunpack.c.h.b16 %v2809
        %v3585 = vunpack.c.l.b16 %v2810
        %v3586 = vunpack.c.h.b16 %v2810
        %v3587 = vunpack.c.l.b16 %v2811
        %v3588 = vunpack.c.h.b16 %v2811
        %v3589 = vunpack.c.l.b16 %v2812
        %v3590 = vunpack.c.h.b16 %v2812
        %v3591 = vunpack.c.l.b16 %v2813
        %v3592 = vunpack.c.h.b16 %v2813
        %v3593 = vunpack.c.l.b16 %v2814
        %v3594 = vunpack.c.h.b16 %v2814
        %v3595 = vunpack.c.l.b16 %v2815
        %v3596 = vunpack.c.h.b16 %v2815
        %v3597 = vunpack.c.l.b16 %v2816
        %v3598 = vunpack.c.h.b16 %v2816
        %v3599 = vunpack.c.l.b16 %v2817
        %v3600 = vunpack.c.h.b16 %v2817
        %v3601 = vunpack.c.l.b16 %v2818
        %v3602 = vunpack.c.h.b16 %v2818
        %v3603 = vunpack.c.l.b16 %v2819
        %v3604 = vunpack.c.h.b16 %v2819
        %v3605 = vunpack.c.l.b16 %v2820
        %v3606 = vunpack.c.h.b16 %v2820
        %v3607 = vunpack.c.l.b16 %v2821
        %v3608 = vunpack.c.h.b16 %v2821
        %v3609 = vunpack.c.l.b16 %v2822
        %v3610 = vunpack.c.h.b16 %v2822
        %v3611 = vunpack.c.l.b16 %v2823
        %v3612 = vunpack.c.h.b16 %v2823
        %v3613 = vunpack.c.l.b16 %v2824
        %v3614 = vunpack.c.h.b16 %v2824
        %v3615 = vunpack.c.l.b16 %v2825
        %v3616 = vunpack.c.h.b16 %v2825
        %v3617 = vunpack.c.l.b16 %v2826
        %v3618 = vunpack.c.h.b16 %v2826
        %v3619 = vunpack.c.l.b16 %v2827
        %v3620 = vunpack.c.h.b16 %v2827
        %v3621 = vunpack.c.l.b16 %v2828
        %v3622 = vunpack.c.h.b16 %v2828
        %v3623 = vunpack.c.l.b16 %v2829
        %v3624 = vunpack.c.h.b16 %v2829
        %v3625 = vunpack.c.l.b16 %v2830
        %v3626 = vunpack.c.h.b16 %v2830
        %v3627 = vunpack.c.l.b16 %v2831
        %v3628 = vunpack.c.h.b16 %v2831
        %v3629 = vunpack.c.l.b16 %v2832
        %v3630 = vunpack.c.h.b16 %v2832
        %v3631 = vunpack.c.l.b16 %v2833
        %v3632 = vunpack.c.h.b16 %v2833
        %v3633 = vunpack.c.l.b16 %v2834
        %v3634 = vunpack.c.h.b16 %v2834
        %v3635 = vunpack.c.l.b16 %v2835
        %v3636 = vunpack.c.h.b16 %v2835
        %v3637 = vunpack.c.l.b16 %v2836
        %v3638 = vunpack.c.h.b16 %v2836
        %v3639 = vunpack.c.l.b16 %v2837
        %v3640 = vunpack.c.h.b16 %v2837
        %v3641 = vunpack.c.l.b16 %v2838
        %v3642 = vunpack.c.h.b16 %v2838
        %v3643 = vunpack.c.l.b16 %v2839
        %v3644 = vunpack.c.h.b16 %v2839
        %v3645 = vunpack.c.l.b16 %v2840
        %v3646 = vunpack.c.h.b16 %v2840
        %v3647 = vunpack.c.l.b16 %v2841
        %v3648 = vunpack.c.h.b16 %v2841
        %v3649 = vunpack.c.l.b16 %v2842
        %v3650 = vunpack.c.h.b16 %v2842
        %v3651 = vunpack.c.l.b16 %v2843
        %v3652 = vunpack.c.h.b16 %v2843
        %v3653 = vunpack.c.l.b16 %v2844
        %v3654 = vunpack.c.h.b16 %v2844
        %v3655 = vunpack.c.l.b16 %v2845
        %v3656 = vunpack.c.h.b16 %v2845
        %v3657 = vunpack.c.l.b16 %v2846
        %v3658 = vunpack.c.h.b16 %v2846
        %v3659 = vunpack.c.l.b16 %v2847
        %v3660 = vunpack.c.h.b16 %v2847
        %v3661 = vunpack.c.l.b16 %v2848
        %v3662 = vunpack.c.h.b16 %v2848
        %v3663 = vunpack.c.l.b16 %v2849
        %v3664 = vunpack.c.h.b16 %v2849
        %v3665 = vunpack.c.l.b16 %v2850
        %v3666 = vunpack.c.h.b16 %v2850
        %v3667 = vunpack.c.l.b16 %v2851
        %v3668 = vunpack.c.h.b16 %v2851
        %v3669 = vunpack.c.l.b16 %v2852
        %v3670 = vunpack.c.h.b16 %v2852
        %v3671 = vunpack.c.l.b16 %v2853
        %v3672 = vunpack.c.h.b16 %v2853
        %v3673 = vunpack.c.l.b16 %v2854
        %v3674 = vunpack.c.h.b16 %v2854
        %v3675 = vunpack.c.l.b16 %v2855
        %v3676 = vunpack.c.h.b16 %v2855
        %v3677 = vunpack.c.l.b16 %v2856
        %v3678 = vunpack.c.h.b16 %v2856
        %v3679 = vunpack.c.l.b16 %v2857
        %v3680 = vunpack.c.h.b16 %v2857
        %v3681 = vunpack.c.l.b16 %v2858
        %v3682 = vunpack.c.h.b16 %v2858
        %v3683 = vunpack.c.l.b16 %v2859
        %v3684 = vunpack.c.h.b16 %v2859
        %v3685 = vunpack.c.l.b16 %v2860
        %v3686 = vunpack.c.h.b16 %v2860
        %v3687 = vunpack.c.l.b16 %v2861
        %v3688 = vunpack.c.h.b16 %v2861
        %v3689 = vunpack.c.l.b16 %v2862
        %v3690 = vunpack.c.h.b16 %v2862
        %v3691 = vunpack.c.l.b16 %v2863
        %v3692 = vunpack.c.h.b16 %v2863
        %v3693 = vunpack.c.l.b16 %v2864
        %v3694 = vunpack.c.h.b16 %v2864
        %v3695 = vunpack.c.l.b16 %v2865
        %v3696 = vunpack.c.h.b16 %v2865
        %v3697 = vunpack.c.l.b16 %v2866
        %v3698 = vunpack.c.h.b16 %v2866
        %v3699 = vunpack.c.l.b16 %v2867
        %v3700 = vunpack.c.h.b16 %v2867
        %v3701 = vunpack.c.l.b16 %v2868
        %v3702 = vunpack.c.h.b16 %v2868
        %v3703 = vunpack.c.l.b16 %v2869
        %v3704 = vunpack.c.h.b16 %v2869
        %v3705 = vunpack.c.l.b16 %v2870
        %v3706 = vunpack.c.h.b16 %v2870
        %v3707 = vunpack.c.l.b16 %v2871
        %v3708 = vunpack.c.h.b16 %v2871
        %v3709 = vunpack.c.l.b16 %v2872
        %v3710 = vunpack.c.h.b16 %v2872
        %v3711 = vunpack.c.l.b16 %v2873
        %v3712 = vunpack.c.h.b16 %v2873
        %v3713 = vunpack.c.l.b16 %v2874
        %v3714 = vunpack.c.h.b16 %v2874
        %v3715 = vunpack.c.l.b16 %v2875
        %v3716 = vunpack.c.h.b16 %v2875
        %v3717 = vunpack.c.l.b16 %v2876
        %v3718 = vunpack.c.h.b16 %v2876
        %v3719 = vunpack.c.l.b16 %v2877
        %v3720 = vunpack.c.h.b16 %v2877
        %v3721 = vunpack.c.l.b16 %v2878
        %v3722 = vunpack.c.h.b16 %v2878
        %v3723 = vunpack.c.l.b16 %v2879
        %v3724 = vunpack.c.h.b16 %v2879
        %v3725 = vunpack.c.l.b16 %v2880
        %v3726 = vunpack.c.h.b16 %v2880
        %v3727 = vunpack.c.l.b16 %v2881
        %v3728 = vunpack.c.h.b16 %v2881
        %v3729 = vunpack.c.l.b16 %v2882
        %v3730 = vunpack.c.h.b16 %v2882
        %v3731 = vunpack.c.l.b16 %v2883
        %v3732 = vunpack.c.h.b16 %v2883
        %v3733 = vunpack.c.l.b16 %v2884
        %v3734 = vunpack.c.h.b16 %v2884
        %v3735 = vunpack.c.l.b16 %v2885
        %v3736 = vunpack.c.h.b16 %v2885
        %v3737 = vunpack.c.l.b16 %v2886
        %v3738 = vunpack.c.h.b16 %v2886
        %v3739 = vunpack.c.l.b16 %v2887
        %v3740 = vunpack.c.h.b16 %v2887
        %v3741 = vunpack.c.l.b16 %v2888
        %v3742 = vunpack.c.h.b16 %v2888
        %v3743 = vunpack.c.l.b16 %v2889
        %v3744 = vunpack.c.h.b16 %v2889
        %v3745 = vunpack.c.l.b16 %v2890
        %v3746 = vunpack.c.h.b16 %v2890
        %v3747 = vunpack.c.l.b16 %v2891
        %v3748 = vunpack.c.h.b16 %v2891
        %v3749 = vunpack.c.l.b16 %v2892
        %v3750 = vunpack.c.h.b16 %v2892
        %v3751 = vunpack.c.l.b16 %v2893
        %v3752 = vunpack.c.h.b16 %v2893
        %v3753 = vunpack.c.l.b16 %v2894
        %v3754 = vunpack.c.h.b16 %v2894
        %v3755 = vunpack.c.l.b16 %v2895
        %v3756 = vunpack.c.h.b16 %v2895
        %v3757 = vunpack.c.l.b16 %v2896
        %v3758 = vunpack.c.h.b16 %v2896
        %v3759 = vunpack.c.l.b16 %v2897
        %v3760 = vunpack.c.h.b16 %v2897
        %v3761 = vunpack.c.l.b16 %v2898
        %v3762 = vunpack.c.h.b16 %v2898
        %v3763 = vunpack.c.l.b16 %v2899
        %v3764 = vunpack.c.h.b16 %v2899
        %v3765 = vunpack.c.l.b16 %v2900
        %v3766 = vunpack.c.h.b16 %v2900
        %v3767 = vunpack.c.l.b16 %v2901
        %v3768 = vunpack.c.h.b16 %v2901
        %v3769 = vunpack.c.l.b16 %v2902
        %v3770 = vunpack.c.h.b16 %v2902
        %v3771 = vunpack.c.l.b16 %v2903
        %v3772 = vunpack.c.h.b16 %v2903
        %v3773 = vunpack.c.l.b16 %v2904
        %v3774 = vunpack.c.h.b16 %v2904
        %v3775 = vunpack.c.l.b16 %v2905
        %v3776 = vunpack.c.h.b16 %v2905
        %v3777 = vunpack.c.l.b16 %v2906
        %v3778 = vunpack.c.h.b16 %v2906
        %v3779 = vunpack.c.l.b16 %v2907
        %v3780 = vunpack.c.h.b16 %v2907
        %v3781 = vunpack.c.l.b16 %v2908
        %v3782 = vunpack.c.h.b16 %v2908
        %v3783 = vunpack.c.l.b16 %v2909
        %v3784 = vunpack.c.h.b16 %v2909
        %v3785 = vunpack.c.l.b16 %v2910
        %v3786 = vunpack.c.h.b16 %v2910
        %v3787 = vunpack.c.l.b16 %v2911
        %v3788 = vunpack.c.h.b16 %v2911
        %v3789 = vunpack.c.l.b16 %v2912
        %v3790 = vunpack.c.h.b16 %v2912
        %v3791 = vunpack.c.l.b16 %v2913
        %v3792 = vunpack.c.h.b16 %v2913
        %v3793 = vunpack.c.l.b16 %v2914
        %v3794 = vunpack.c.h.b16 %v2914
        %v3795 = vunpack.c.l.b16 %v2915
        %v3796 = vunpack.c.h.b16 %v2915
        %v3797 = vunpack.c.l.b16 %v2916
        %v3798 = vunpack.c.h.b16 %v2916
        %v3799 = vunpack.c.l.b16 %v2917
        %v3800 = vunpack.c.h.b16 %v2917
        %v3801 = vunpack.c.l.b16 %v2918
        %v3802 = vunpack.c.h.b16 %v2918
        %v3803 = vunpack.c.l.b16 %v2919
        %v3804 = vunpack.c.h.b16 %v2919
        %v3805 = vpack.c.b16 %v3295, %v3293
        %v3806 = vpack.c.b16 %v3296, %v3294
        %v3807 = vpack.c.b16 %v3299, %v3297
        %v3808 = vpack.c.b16 %v3300, %v3298
        %v3809 = vpack.c.b16 %v3303, %v3301
        %v3810 = vpack.c.b16 %v3304, %v3302
        %v3811 = vpack.c.b16 %v3307, %v3305
        %v3812 = vpack.c.b16 %v3308, %v3306
        %v3813 = vpack.c.b16 %v3311, %v3309
        %v3814 = vpack.c.b16 %v3312, %v3310
        %v3815 = vpack.c.b16 %v3315, %v3313
        %v3816 = vpack.c.b16 %v3316, %v3314
        %v3817 = vpack.c.b16 %v3319, %v3317
        %v3818 = vpack.c.b16 %v3320, %v3318
        %v3819 = vpack.c.b16 %v3323, %v3321
        %v3820 = vpack.c.b16 %v3324, %v3322
        %v3821 = vpack.c.b16 %v3327, %v3325
        %v3822 = vpack.c.b16 %v3328, %v3326
        %v3823 = vpack.c.b16 %v3331, %v3329
        %v3824 = vpack.c.b16 %v3332, %v3330
        %v3825 = vpack.c.b16 %v3335, %v3333
        %v3826 = vpack.c.b16 %v3336, %v3334
        %v3827 = vpack.c.b16 %v3339, %v3337
        %v3828 = vpack.c.b16 %v3340, %v3338
        %v3829 = vpack.c.b16 %v3343, %v3341
        %v3830 = vpack.c.b16 %v3344, %v3342
        %v3831 = vpack.c.b16 %v3347, %v3345
        %v3832 = vpack.c.b16 %v3348, %v3346
        %v3833 = vpack.c.b16 %v3351, %v3349
        %v3834 = vpack.c.b16 %v3352, %v3350
        %v3835 = vpack.c.b16 %v3355, %v3353
        %v3836 = vpack.c.b16 %v3356, %v3354
        %v3837 = vpack.c.b16 %v3359, %v3357
        %v3838 = vpack.c.b16 %v3360, %v3358
        %v3839 = vpack.c.b16 %v3363, %v3361
        %v3840 = vpack.c.b16 %v3364, %v3362
        %v3841 = vpack.c.b16 %v3367, %v3365
        %v3842 = vpack.c.b16 %v3368, %v3366
        %v3843 = vpack.c.b16 %v3371, %v3369
        %v3844 = vpack.c.b16 %v3372, %v3370
        %v3845 = vpack.c.b16 %v3375, %v3373
        %v3846 = vpack.c.b16 %v3376, %v3374
        %v3847 = vpack.c.b16 %v3379, %v3377
        %v3848 = vpack.c.b16 %v3380, %v3378
        %v3849 = vpack.c.b16 %v3383, %v3381
        %v3850 = vpack.c.b16 %v3384, %v3382
        %v3851 = vpack.c.b16 %v3387, %v3385
        %v3852 = vpack.c.b16 %v3388, %v3386
        %v3853 = vpack.c.b16 %v3391, %v3389
        %v3854 = vpack.c.b16 %v3392, %v3390
        %v3855 = vpack.c.b16 %v3395, %v3393
        %v3856 = vpack.c.b16 %v3396, %v3394
        %v3857 = vpack.c.b16 %v3399, %v3397
        %v3858 = vpack.c.b16 %v3400, %v3398
        %v3859 = vpack.c.b16 %v3403, %v3401
        %v3860 = vpack.c.b16 %v3404, %v3402
        %v3861 = vpack.c.b16 %v3407, %v3405
        %v3862 = vpack.c.b16 %v3408, %v3406
        %v3863 = vpack.c.b16 %v3411, %v3409
        %v3864 = vpack.c.b16 %v3412, %v3410
        %v3865 = vpack.c.b16 %v3415, %v3413
        %v3866 = vpack.c.b16 %v3416, %v3414
        %v3867 = vpack.c.b16 %v3419, %v3417
        %v3868 = vpack.c.b16 %v3420, %v3418
        %v3869 = vpack.c.b16 %v3423, %v3421
        %v3870 = vpack.c.b16 %v3424, %v3422
        %v3871 = vpack.c.b16 %v3427, %v3425
        %v3872 = vpack.c.b16 %v3428, %v3426
        %v3873 = vpack.c.b16 %v3431, %v3429
        %v3874 = vpack.c.b16 %v3432, %v3430
        %v3875 = vpack.c.b16 %v3435, %v3433
        %v3876 = vpack.c.b16 %v3436, %v3434
        %v3877 = vpack.c.b16 %v3439, %v3437
        %v3878 = vpack.c.b16 %v3440, %v3438
        %v3879 = vpack.c.b16 %v3443, %v3441
        %v3880 = vpack.c.b16 %v3444, %v3442
        %v3881 = vpack.c.b16 %v3447, %v3445
        %v3882 = vpack.c.b16 %v3448, %v3446
        %v3883 = vpack.c.b16 %v3451, %v3449
        %v3884 = vpack.c.b16 %v3452, %v3450
        %v3885 = vpack.c.b16 %v3455, %v3453
        %v3886 = vpack.c.b16 %v3456, %v3454
        %v3887 = vpack.c.b16 %v3459, %v3457
        %v3888 = vpack.c.b16 %v3460, %v3458
        %v3889 = vpack.c.b16 %v3463, %v3461
        %v3890 = vpack.c.b16 %v3464, %v3462
        %v3891 = vpack.c.b16 %v3467, %v3465
        %v3892 = vpack.c.b16 %v3468, %v3466
        %v3893 = vpack.c.b16 %v3471, %v3469
        %v3894 = vpack.c.b16 %v3472, %v3470
        %v3895 = vpack.c.b16 %v3475, %v3473
        %v3896 = vpack.c.b16 %v3476, %v3474
        %v3897 = vpack.c.b16 %v3479, %v3477
        %v3898 = vpack.c.b16 %v3480, %v3478
        %v3899 = vpack.c.b16 %v3483, %v3481
        %v3900 = vpack.c.b16 %v3484, %v3482
        %v3901 = vpack.c.b16 %v3487, %v3485
        %v3902 = vpack.c.b16 %v3488, %v3486
        %v3903 = vpack.c.b16 %v3491, %v3489
        %v3904 = vpack.c.b16 %v3492, %v3490
        %v3905 = vpack.c.b16 %v3495, %v3493
        %v3906 = vpack.c.b16 %v3496, %v3494
        %v3907 = vpack.c.b16 %v3499, %v3497
        %v3908 = vpack.c.b16 %v3500, %v3498
        %v3909 = vpack.c.b16 %v3503, %v3501
        %v3910 = vpack.c.b16 %v3504, %v3502
        %v3911 = vpack.c.b16 %v3507, %v3505
        %v3912 = vpack.c.b16 %v3508, %v3506
        %v3913 = vpack.c.b16 %v3511, %v3509
        %v3914 = vpack.c.b16 %v3512, %v3510
        %v3915 = vpack.c.b16 %v3515, %v3513
        %v3916 = vpack.c.b16 %v3516, %v3514
        %v3917 = vpack.c.b16 %v3519, %v3517
        %v3918 = vpack.c.b16 %v3520, %v3518
        %v3919 = vpack.c.b16 %v3523, %v3521
        %v3920 = vpack.c.b16 %v3524, %v3522
        %v3921 = vpack.c.b16 %v3527, %v3525
        %v3922 = vpack.c.b16 %v3528, %v3526
        %v3923 = vpack.c.b16 %v3531, %v3529
        %v3924 = vpack.c.b16 %v3532, %v3530
        %v3925 = vpack.c.b16 %v3535, %v3533
        %v3926 = vpack.c.b16 %v3536, %v3534
        %v3927 = vpack.c.b16 %v3539, %v3537
        %v3928 = vpack.c.b16 %v3540, %v3538
        %v3929 = vpack.c.b16 %v3543, %v3541
        %v3930 = vpack.c.b16 %v3544, %v3542
        %v3931 = vpack.c.b16 %v3547, %v3545
        %v3932 = vpack.c.b16 %v3548, %v3546
        %v3933 = vpack.c.b16 %v3551, %v3549
        %v3934 = vpack.c.b16 %v3552, %v3550
        %v3935 = vpack.c.b16 %v3555, %v3553
        %v3936 = vpack.c.b16 %v3556, %v3554
        %v3937 = vpack.c.b16 %v3559, %v3557
        %v3938 = vpack.c.b16 %v3560, %v3558
        %v3939 = vpack.c.b16 %v3563, %v3561
        %v3940 = vpack.c.b16 %v3564, %v3562
        %v3941 = vpack.c.b16 %v3567, %v3565
        %v3942 = vpack.c.b16 %v3568, %v3566
        %v3943 = vpack.c.b16 %v3571, %v3569
        %v3944 = vpack.c.b16 %v3572, %v3570
        %v3945 = vpack.c.b16 %v3575, %v3573
        %v3946 = vpack.c.b16 %v3576, %v3574
        %v3947 = vpack.c.b16 %v3579, %v3577
        %v3948 = vpack.c.b16 %v3580, %v3578
        %v3949 = vpack.c.b16 %v3583, %v3581
        %v3950 = vpack.c.b16 %v3584, %v3582
        %v3951 = vpack.c.b16 %v3587, %v3585
        %v3952 = vpack.c.b16 %v3588, %v3586
        %v3953 = vpack.c.b16 %v3591, %v3589
        %v3954 = vpack.c.b16 %v3592, %v3590
        %v3955 = vpack.c.b16 %v3595, %v3593
        %v3956 = vpack.c.b16 %v3596, %v3594
        %v3957 = vpack.c.b16 %v3599, %v3597
        %v3958 = vpack.c.b16 %v3600, %v3598
        %v3959 = vpack.c.b16 %v3603, %v3601
        %v3960 = vpack.c.b16 %v3604, %v3602
        %v3961 = vpack.c.b16 %v3607, %v3605
        %v3962 = vpack.c.b16 %v3608, %v3606
        %v3963 = vpack.c.b16 %v3611, %v3609
        %v3964 = vpack.c.b16 %v3612, %v3610
        %v3965 = vpack.c.b16 %v3615, %v3613
        %v3966 = vpack.c.b16 %v3616, %v3614
        %v3967 = vpack.c.b16 %v3619, %v3617
        %v3968 = vpack.c.b16 %v3620, %v3618
        %v3969 = vpack.c.b16 %v3623, %v3621
        %v3970 = vpack.c.b16 %v3624, %v3622
        %v3971 = vpack.c.b16 %v3627, %v3625
        %v3972 = vpack.c.b16 %v3628, %v3626
        %v3973 = vpack.c.b16 %v3631, %v3629
        %v3974 = vpack.c.b16 %v3632, %v3630
        %v3975 = vpack.c.b16 %v3635, %v3633
        %v3976 = vpack.c.b16 %v3636, %v3634
        %v3977 = vpack.c.b16 %v3639, %v3637
        %v3978 = vpack.c.b16 %v3640, %v3638
        %v3979 = vpack.c.b16 %v3643, %v3641
        %v3980 = vpack.c.b16 %v3644, %v3642
        %v3981 = vpack.c.b16 %v3647, %v3645
        %v3982 = vpack.c.b16 %v3648, %v3646
        %v3983 = vpack.c.b16 %v3651, %v3649
        %v3984 = vpack.c.b16 %v3652, %v3650
        %v3985 = vpack.c.b16 %v3655, %v3653
        %v3986 = vpack.c.b16 %v3656, %v3654
        %v3987 = vpack.c.b16 %v3659, %v3657
        %v3988 = vpack.c.b16 %v3660, %v3658
        %v3989 = vpack.c.b16 %v3663, %v3661
        %v3990 = vpack.c.b16 %v3664, %v3662
        %v3991 = vpack.c.b16 %v3667, %v3665
        %v3992 = vpack.c.b16 %v3668, %v3666
        %v3993 = vpack.c.b16 %v3671, %v3669
        %v3994 = vpack.c.b16 %v3672, %v3670
        %v3995 = vpack.c.b16 %v3675, %v3673
        %v3996 = vpack.c.b16 %v3676, %v3674
        %v3997 = vpack.c.b16 %v3679, %v3677
        %v3998 = vpack.c.b16 %v3680, %v3678
        %v3999 = vpack.c.b16 %v3683, %v3681
        %v4000 = vpack.c.b16 %v3684, %v3682
        %v4001 = vpack.c.b16 %v3687, %v3685
        %v4002 = vpack.c.b16 %v3688, %v3686
        %v4003 = vpack.c.b16 %v3691, %v3689
        %v4004 = vpack.c.b16 %v3692, %v3690
        %v4005 = vpack.c.b16 %v3695, %v3693
        %v4006 = vpack.c.b16 %v3696, %v3694
        %v4007 = vpack.c.b16 %v3699, %v3697
        %v4008 = vpack.c.b16 %v3700, %v3698
        %v4009 = vpack.c.b16 %v3703, %v3701
        %v4010 = vpack.c.b16 %v3704, %v3702
        %v4011 = vpack.c.b16 %v3707, %v3705
        %v4012 = vpack.c.b16 %v3708, %v3706
        %v4013 = vpack.c.b16 %v3711, %v3709
        %v4014 = vpack.c.b16 %v3712, %v3710
        %v4015 = vpack.c.b16 %v3715, %v3713
        %v4016 = vpack.c.b16 %v3716, %v3714
        %v4017 = vpack.c.b16 %v3719, %v3717
        %v4018 = vpack.c.b16 %v3720, %v3718
        %v4019 = vpack.c.b16 %v3723, %v3721
        %v4020 = vpack.c.b16 %v3724, %v3722
        %v4021 = vpack.c.b16 %v3727, %v3725
        %v4022 = vpack.c.b16 %v3728, %v3726
        %v4023 = vpack.c.b16 %v3731, %v3729
        %v4024 = vpack.c.b16 %v3732, %v3730
        %v4025 = vpack.c.b16 %v3735, %v3733
        %v4026 = vpack.c.b16 %v3736, %v3734
        %v4027 = vpack.c.b16 %v3739, %v3737
        %v4028 = vpack.c.b16 %v3740, %v3738
        %v4029 = vpack.c.b16 %v3743, %v3741
        %v4030 = vpack.c.b16 %v3744, %v3742
        %v4031 = vpack.c.b16 %v3747, %v3745
        %v4032 = vpack.c.b16 %v3748, %v3746
        %v4033 = vpack.c.b16 %v3751, %v3749
        %v4034 = vpack.c.b16 %v3752, %v3750
        %v4035 = vpack.c.b16 %v3755, %v3753
        %v4036 = vpack.c.b16 %v3756, %v3754
        %v4037 = vpack.c.b16 %v3759, %v3757
        %v4038 = vpack.c.b16 %v3760, %v3758
        %v4039 = vpack.c.b16 %v3763, %v3761
        %v4040 = vpack.c.b16 %v3764, %v3762
        %v4041 = vpack.c.b16 %v3767, %v3765
        %v4042 = vpack.c.b16 %v3768, %v3766
        %v4043 = vpack.c.b16 %v3771, %v3769
        %v4044 = vpack.c.b16 %v3772, %v3770
        %v4045 = vpack.c.b16 %v3775, %v3773
        %v4046 = vpack.c.b16 %v3776, %v3774
        %v4047 = vpack.c.b16 %v3779, %v3777
        %v4048 = vpack.c.b16 %v3780, %v3778
        %v4049 = vpack.c.b16 %v3783, %v3781
        %v4050 = vpack.c.b16 %v3784, %v3782
        %v4051 = vpack.c.b16 %v3787, %v3785
        %v4052 = vpack.c.b16 %v3788, %v3786
        %v4053 = vpack.c.b16 %v3791, %v3789
        %v4054 = vpack.c.b16 %v3792, %v3790
        %v4055 = vpack.c.b16 %v3795, %v3793
        %v4056 = vpack.c.b16 %v3796, %v3794
        %v4057 = vpack.c.b16 %v3799, %v3797
        %v4058 = vpack.c.b16 %v3800, %v3798
        %v4059 = vpack.c.b16 %v3803, %v3801
        %v4060 = vpack.c.b16 %v3804, %v3802
        %v4318 = vlaneseq
        %v4319 = vshrl.u32 %v4318, 7
        %v4320 = vsub.s32 0, %v4319
        %v4321 = vrot.slane %v2920, %v4320
        %v4322 = vlaneseq
        %v4323 = vshrl.u32 %v4322, 7
        %v4324 = vsub.s32 1, %v4323
        %v4325 = vrot.slane %v2920, %v4324
        %4328 = vmatprep.subr.bf16.mxu0 %v3806
        %4329 = vmatpush1.bf16.msra.mxu0 %v3805
        %4330 = vmatprep.subr.bf16.mxu0 %v3808
        %4331 = vmatpush1.bf16.msra.mxu0 %v3807
        %4332 = vmatprep.subr.bf16.mxu0 %v3810
        %4333 = vmatpush1.bf16.msra.mxu0 %v3809
        %4334 = vmatprep.subr.bf16.mxu0 %v3812
        %4335 = vmatpush1.bf16.msra.mxu0 %v3811
        %4336 = vmatprep.subr.bf16.mxu0 %v3814
        %4337 = vmatpush1.bf16.msra.mxu0 %v3813
        %4338 = vmatprep.subr.bf16.mxu0 %v3816
        %4339 = vmatpush1.bf16.msra.mxu0 %v3815
        %4340 = vmatprep.subr.bf16.mxu0 %v3818
        %4341 = vmatpush1.bf16.msra.mxu0 %v3817
        %4342 = vmatprep.subr.bf16.mxu0 %v3820
        %4343 = vmatpush1.bf16.msra.mxu0 %v3819
        %4344 = vmatprep.subr.bf16.mxu0 %v3822
        %4345 = vmatpush1.bf16.msra.mxu0 %v3821
        %4346 = vmatprep.subr.bf16.mxu0 %v3824
        %4347 = vmatpush1.bf16.msra.mxu0 %v3823
        %4348 = vmatprep.subr.bf16.mxu0 %v3826
        %4349 = vmatpush1.bf16.msra.mxu0 %v3825
        %4350 = vmatprep.subr.bf16.mxu0 %v3828
        %4351 = vmatpush1.bf16.msra.mxu0 %v3827
        %4352 = vmatprep.subr.bf16.mxu0 %v3830
        %4353 = vmatpush1.bf16.msra.mxu0 %v3829
        %4354 = vmatprep.subr.bf16.mxu0 %v3832
        %4355 = vmatpush1.bf16.msra.mxu0 %v3831
        %4356 = vmatprep.subr.bf16.mxu0 %v3834
        %4357 = vmatpush1.bf16.msra.mxu0 %v3833
        %4358 = vmatprep.subr.bf16.mxu0 %v3836
        %4359 = vmatpush1.bf16.msra.mxu0 %v3835
        %4360 = vmatprep.mubr.bf16.mxu0 %v2960
        %4361 = vmatmul.mubr.bf16.gmra.mrb[0].mxu0 %v2946
        %v4362 = vpop.f32.mrb[0].mxu0
        %v4363 = vadd.f32 %v4321, %v4362
        %v4364 = vpop.f32.mrb[0].mxu0
        %v4365 = vadd.f32 %v4325, %v4364
        %v4366 = vpop.f32.mrb[0].mxu0
        %v4367 = vpop.f32.mrb[0].mxu0
        %4368 = vdwg.mxu0
        %4369 = vmatprep.subr.bf16.mxu0 %v3838
        %4370 = vmatpush1.bf16.msra.mxu0 %v3837
        %4371 = vmatprep.subr.bf16.mxu0 %v3840
        %4372 = vmatpush1.bf16.msra.mxu0 %v3839
        %4373 = vmatprep.subr.bf16.mxu0 %v3842
        %4374 = vmatpush1.bf16.msra.mxu0 %v3841
        %4375 = vmatprep.subr.bf16.mxu0 %v3844
        %4376 = vmatpush1.bf16.msra.mxu0 %v3843
        %4377 = vmatprep.subr.bf16.mxu0 %v3846
        %4378 = vmatpush1.bf16.msra.mxu0 %v3845
        %4379 = vmatprep.subr.bf16.mxu0 %v3848
        %4380 = vmatpush1.bf16.msra.mxu0 %v3847
        %4381 = vmatprep.subr.bf16.mxu0 %v3850
        %4382 = vmatpush1.bf16.msra.mxu0 %v3849
        %4383 = vmatprep.subr.bf16.mxu0 %v3852
        %4384 = vmatpush1.bf16.msra.mxu0 %v3851
        %4385 = vmatprep.subr.bf16.mxu0 %v3854
        %4386 = vmatpush1.bf16.msra.mxu0 %v3853
        %4387 = vmatprep.subr.bf16.mxu0 %v3856
        %4388 = vmatpush1.bf16.msra.mxu0 %v3855
        %4389 = vmatprep.subr.bf16.mxu0 %v3858
        %4390 = vmatpush1.bf16.msra.mxu0 %v3857
        %4391 = vmatprep.subr.bf16.mxu0 %v3860
        %4392 = vmatpush1.bf16.msra.mxu0 %v3859
        %4393 = vmatprep.subr.bf16.mxu0 %v3862
        %4394 = vmatpush1.bf16.msra.mxu0 %v3861
        %4395 = vmatprep.subr.bf16.mxu0 %v3864
        %4396 = vmatpush1.bf16.msra.mxu0 %v3863
        %4397 = vmatprep.subr.bf16.mxu0 %v3866
        %4398 = vmatpush1.bf16.msra.mxu0 %v3865
        %4399 = vmatprep.subr.bf16.mxu0 %v3868
        %4400 = vmatpush1.bf16.msra.mxu0 %v3867
        %4401 = vmatprep.mubr.bf16.mxu0 %v2970
        %4402 = vmatmul.mubr.bf16.gmra.mrb[0].mxu0 %v2968
        %v4403 = vpop.f32.mrb[0].mxu0
        %v4404 = vadd.f32 %v4363, %v4403
        %v4405 = vpop.f32.mrb[0].mxu0
        %v4406 = vadd.f32 %v4365, %v4405
        %v4407 = vpop.f32.mrb[0].mxu0
        %v4408 = vpop.f32.mrb[0].mxu0
        %4409 = vdwg.mxu0
        %4410 = vmatprep.subr.bf16.mxu0 %v3870
        %4411 = vmatpush1.bf16.msra.mxu0 %v3869
        %4412 = vmatprep.subr.bf16.mxu0 %v3872
        %4413 = vmatpush1.bf16.msra.mxu0 %v3871
        %4414 = vmatprep.subr.bf16.mxu0 %v3874
        %4415 = vmatpush1.bf16.msra.mxu0 %v3873
        %4416 = vmatprep.subr.bf16.mxu0 %v3876
        %4417 = vmatpush1.bf16.msra.mxu0 %v3875
        %4418 = vmatprep.subr.bf16.mxu0 %v3878
        %4419 = vmatpush1.bf16.msra.mxu0 %v3877
        %4420 = vmatprep.subr.bf16.mxu0 %v3880
        %4421 = vmatpush1.bf16.msra.mxu0 %v3879
        %4422 = vmatprep.subr.bf16.mxu0 %v3882
        %4423 = vmatpush1.bf16.msra.mxu0 %v3881
        %4424 = vmatprep.subr.bf16.mxu0 %v3884
        %4425 = vmatpush1.bf16.msra.mxu0 %v3883
        %4426 = vmatprep.subr.bf16.mxu0 %v3886
        %4427 = vmatpush1.bf16.msra.mxu0 %v3885
        %4428 = vmatprep.subr.bf16.mxu0 %v3888
        %4429 = vmatpush1.bf16.msra.mxu0 %v3887
        %4430 = vmatprep.subr.bf16.mxu0 %v3890
        %4431 = vmatpush1.bf16.msra.mxu0 %v3889
        %4432 = vmatprep.subr.bf16.mxu0 %v3892
        %4433 = vmatpush1.bf16.msra.mxu0 %v3891
        %4434 = vmatprep.subr.bf16.mxu0 %v3894
        %4435 = vmatpush1.bf16.msra.mxu0 %v3893
        %4436 = vmatprep.subr.bf16.mxu0 %v3896
        %4437 = vmatpush1.bf16.msra.mxu0 %v3895
        %4438 = vmatprep.subr.bf16.mxu0 %v3898
        %4439 = vmatpush1.bf16.msra.mxu0 %v3897
        %4440 = vmatprep.subr.bf16.mxu0 %v3900
        %4441 = vmatpush1.bf16.msra.mxu0 %v3899
        %4442 = vmatprep.mubr.bf16.mxu0 %v2967
        %4443 = vmatmul.mubr.bf16.gmra.mrb[0].mxu0 %v2953
        %v4444 = vpop.f32.mrb[0].mxu0
        %v4445 = vadd.f32 %v4404, %v4444
        %v4446 = vpop.f32.mrb[0].mxu0
        %v4447 = vadd.f32 %v4406, %v4446
        %v4448 = vpop.f32.mrb[0].mxu0
        %v4449 = vpop.f32.mrb[0].mxu0
        %4450 = vdwg.mxu0
        %4451 = vmatprep.subr.bf16.mxu0 %v3902
        %4452 = vmatpush1.bf16.msra.mxu0 %v3901
        %4453 = vmatprep.subr.bf16.mxu0 %v3904
        %4454 = vmatpush1.bf16.msra.mxu0 %v3903
        %4455 = vmatprep.subr.bf16.mxu0 %v3906
        %4456 = vmatpush1.bf16.msra.mxu0 %v3905
        %4457 = vmatprep.subr.bf16.mxu0 %v3908
        %4458 = vmatpush1.bf16.msra.mxu0 %v3907
        %4459 = vmatprep.subr.bf16.mxu0 %v3910
        %4460 = vmatpush1.bf16.msra.mxu0 %v3909
        %4461 = vmatprep.subr.bf16.mxu0 %v3912
        %4462 = vmatpush1.bf16.msra.mxu0 %v3911
        %4463 = vmatprep.subr.bf16.mxu0 %v3914
        %4464 = vmatpush1.bf16.msra.mxu0 %v3913
        %4465 = vmatprep.subr.bf16.mxu0 %v3916
        %4466 = vmatpush1.bf16.msra.mxu0 %v3915
        %4467 = vmatprep.subr.bf16.mxu0 %v3918
        %4468 = vmatpush1.bf16.msra.mxu0 %v3917
        %4469 = vmatprep.subr.bf16.mxu0 %v3920
        %4470 = vmatpush1.bf16.msra.mxu0 %v3919
        %4471 = vmatprep.subr.bf16.mxu0 %v3922
        %4472 = vmatpush1.bf16.msra.mxu0 %v3921
        %4473 = vmatprep.subr.bf16.mxu0 %v3924
        %4474 = vmatpush1.bf16.msra.mxu0 %v3923
        %4475 = vmatprep.subr.bf16.mxu0 %v3926
        %4476 = vmatpush1.bf16.msra.mxu0 %v3925
        %4477 = vmatprep.subr.bf16.mxu0 %v3928
        %4478 = vmatpush1.bf16.msra.mxu0 %v3927
        %4479 = vmatprep.subr.bf16.mxu0 %v3930
        %4480 = vmatpush1.bf16.msra.mxu0 %v3929
        %4481 = vmatprep.subr.bf16.mxu0 %v3932
        %4482 = vmatpush1.bf16.msra.mxu0 %v3931
        %4483 = vmatprep.mubr.bf16.mxu0 %v2971
        %4484 = vmatmul.mubr.bf16.gmra.mrb[0].mxu0 %v2969
        %v4485 = vpop.f32.mrb[0].mxu0
        %v4486 = vadd.f32 %v4445, %v4485
        %v4487 = vpop.f32.mrb[0].mxu0
        %v4488 = vadd.f32 %v4447, %v4487
        %v4489 = vpop.f32.mrb[0].mxu0
        %v4490 = vpop.f32.mrb[0].mxu0
        %4491 = vdwg.mxu0
        %4492 = vmatprep.subr.bf16.mxu0 %v3934
        %4493 = vmatpush1.bf16.msra.mxu0 %v3933
        %4494 = vmatprep.subr.bf16.mxu0 %v3936
        %4495 = vmatpush1.bf16.msra.mxu0 %v3935
        %4496 = vmatprep.subr.bf16.mxu0 %v3938
        %4497 = vmatpush1.bf16.msra.mxu0 %v3937
        %4498 = vmatprep.subr.bf16.mxu0 %v3940
        %4499 = vmatpush1.bf16.msra.mxu0 %v3939
        %4500 = vmatprep.subr.bf16.mxu0 %v3942
        %4501 = vmatpush1.bf16.msra.mxu0 %v3941
        %4502 = vmatprep.subr.bf16.mxu0 %v3944
        %4503 = vmatpush1.bf16.msra.mxu0 %v3943
        %4504 = vmatprep.subr.bf16.mxu0 %v3946
        %4505 = vmatpush1.bf16.msra.mxu0 %v3945
        %4506 = vmatprep.subr.bf16.mxu0 %v3948
        %4507 = vmatpush1.bf16.msra.mxu0 %v3947
        %4508 = vmatprep.subr.bf16.mxu0 %v3950
        %4509 = vmatpush1.bf16.msra.mxu0 %v3949
        %4510 = vmatprep.subr.bf16.mxu0 %v3952
        %4511 = vmatpush1.bf16.msra.mxu0 %v3951
        %4512 = vmatprep.subr.bf16.mxu0 %v3954
        %4513 = vmatpush1.bf16.msra.mxu0 %v3953
        %4514 = vmatprep.subr.bf16.mxu0 %v3956
        %4515 = vmatpush1.bf16.msra.mxu0 %v3955
        %4516 = vmatprep.subr.bf16.mxu0 %v3958
        %4517 = vmatpush1.bf16.msra.mxu0 %v3957
        %4518 = vmatprep.subr.bf16.mxu0 %v3960
        %4519 = vmatpush1.bf16.msra.mxu0 %v3959
        %4520 = vmatprep.subr.bf16.mxu0 %v3962
        %4521 = vmatpush1.bf16.msra.mxu0 %v3961
        %4522 = vmatprep.subr.bf16.mxu0 %v3964
        %4523 = vmatpush1.bf16.msra.mxu0 %v3963
        %4524 = vmatprep.mubr.bf16.mxu0 %v3009
        %4525 = vmatmul.mubr.bf16.gmra.mrb[0].mxu0 %v2995
        %v4526 = vpop.f32.mrb[0].mxu0
        %v4527 = vadd.f32 %v4486, %v4526
        %v4528 = vpop.f32.mrb[0].mxu0
        %v4529 = vadd.f32 %v4488, %v4528
        %v4530 = vpop.f32.mrb[0].mxu0
        %v4531 = vpop.f32.mrb[0].mxu0
        %4532 = vdwg.mxu0
        %4533 = vmatprep.subr.bf16.mxu0 %v3966
        %4534 = vmatpush1.bf16.msra.mxu0 %v3965
        %4535 = vmatprep.subr.bf16.mxu0 %v3968
        %4536 = vmatpush1.bf16.msra.mxu0 %v3967
        %4537 = vmatprep.subr.bf16.mxu0 %v3970
        %4538 = vmatpush1.bf16.msra.mxu0 %v3969
        %4539 = vmatprep.subr.bf16.mxu0 %v3972
        %4540 = vmatpush1.bf16.msra.mxu0 %v3971
        %4541 = vmatprep.subr.bf16.mxu0 %v3974
        %4542 = vmatpush1.bf16.msra.mxu0 %v3973
        %4543 = vmatprep.subr.bf16.mxu0 %v3976
        %4544 = vmatpush1.bf16.msra.mxu0 %v3975
        %4545 = vmatprep.subr.bf16.mxu0 %v3978
        %4546 = vmatpush1.bf16.msra.mxu0 %v3977
        %4547 = vmatprep.subr.bf16.mxu0 %v3980
        %4548 = vmatpush1.bf16.msra.mxu0 %v3979
        %4549 = vmatprep.subr.bf16.mxu0 %v3982
        %4550 = vmatpush1.bf16.msra.mxu0 %v3981
        %4551 = vmatprep.subr.bf16.mxu0 %v3984
        %4552 = vmatpush1.bf16.msra.mxu0 %v3983
        %4553 = vmatprep.subr.bf16.mxu0 %v3986
        %4554 = vmatpush1.bf16.msra.mxu0 %v3985
        %4555 = vmatprep.subr.bf16.mxu0 %v3988
        %4556 = vmatpush1.bf16.msra.mxu0 %v3987
        %4557 = vmatprep.subr.bf16.mxu0 %v3990
        %4558 = vmatpush1.bf16.msra.mxu0 %v3989
        %4559 = vmatprep.subr.bf16.mxu0 %v3992
        %4560 = vmatpush1.bf16.msra.mxu0 %v3991
        %4561 = vmatprep.subr.bf16.mxu0 %v3994
        %4562 = vmatpush1.bf16.msra.mxu0 %v3993
        %4563 = vmatprep.subr.bf16.mxu0 %v3996
        %4564 = vmatpush1.bf16.msra.mxu0 %v3995
        %4565 = vmatprep.mubr.bf16.mxu0 %v3019
        %4566 = vmatmul.mubr.bf16.gmra.mrb[0].mxu0 %v3017
        %v4567 = vpop.f32.mrb[0].mxu0
        %v4568 = vadd.f32 %v4527, %v4567
        %v4569 = vpop.f32.mrb[0].mxu0
        %v4570 = vadd.f32 %v4529, %v4569
        %v4571 = vpop.f32.mrb[0].mxu0
        %v4572 = vpop.f32.mrb[0].mxu0
        %4573 = vdwg.mxu0
        %4574 = vmatprep.subr.bf16.mxu0 %v3998
        %4575 = vmatpush1.bf16.msra.mxu0 %v3997
        %4576 = vmatprep.subr.bf16.mxu0 %v4000
        %4577 = vmatpush1.bf16.msra.mxu0 %v3999
        %4578 = vmatprep.subr.bf16.mxu0 %v4002
        %4579 = vmatpush1.bf16.msra.mxu0 %v4001
        %4580 = vmatprep.subr.bf16.mxu0 %v4004
        %4581 = vmatpush1.bf16.msra.mxu0 %v4003
        %4582 = vmatprep.subr.bf16.mxu0 %v4006
        %4583 = vmatpush1.bf16.msra.mxu0 %v4005
        %4584 = vmatprep.subr.bf16.mxu0 %v4008
        %4585 = vmatpush1.bf16.msra.mxu0 %v4007
        %4586 = vmatprep.subr.bf16.mxu0 %v4010
        %4587 = vmatpush1.bf16.msra.mxu0 %v4009
        %4588 = vmatprep.subr.bf16.mxu0 %v4012
        %4589 = vmatpush1.bf16.msra.mxu0 %v4011
        %4590 = vmatprep.subr.bf16.mxu0 %v4014
        %4591 = vmatpush1.bf16.msra.mxu0 %v4013
        %4592 = vmatprep.subr.bf16.mxu0 %v4016
        %4593 = vmatpush1.bf16.msra.mxu0 %v4015
        %4594 = vmatprep.subr.bf16.mxu0 %v4018
        %4595 = vmatpush1.bf16.msra.mxu0 %v4017
        %4596 = vmatprep.subr.bf16.mxu0 %v4020
        %4597 = vmatpush1.bf16.msra.mxu0 %v4019
        %4598 = vmatprep.subr.bf16.mxu0 %v4022
        %4599 = vmatpush1.bf16.msra.mxu0 %v4021
        %4600 = vmatprep.subr.bf16.mxu0 %v4024
        %4601 = vmatpush1.bf16.msra.mxu0 %v4023
        %4602 = vmatprep.subr.bf16.mxu0 %v4026
        %4603 = vmatpush1.bf16.msra.mxu0 %v4025
        %4604 = vmatprep.subr.bf16.mxu0 %v4028
        %4605 = vmatpush1.bf16.msra.mxu0 %v4027
        %4606 = vmatprep.mubr.bf16.mxu0 %v3016
        %4607 = vmatmul.mubr.bf16.gmra.mrb[0].mxu0 %v3002
        %v4608 = vpop.f32.mrb[0].mxu0
        %v4609 = vadd.f32 %v4568, %v4608
        %v4610 = vpop.f32.mrb[0].mxu0
        %v4611 = vadd.f32 %v4570, %v4610
        %v4612 = vpop.f32.mrb[0].mxu0
        %v4613 = vpop.f32.mrb[0].mxu0
        %4614 = vdwg.mxu0
        %4615 = vmatprep.subr.bf16.mxu0 %v4030
        %4616 = vmatpush1.bf16.msra.mxu0 %v4029
        %4617 = vmatprep.subr.bf16.mxu0 %v4032
        %4618 = vmatpush1.bf16.msra.mxu0 %v4031
        %4619 = vmatprep.subr.bf16.mxu0 %v4034
        %4620 = vmatpush1.bf16.msra.mxu0 %v4033
        %4621 = vmatprep.subr.bf16.mxu0 %v4036
        %4622 = vmatpush1.bf16.msra.mxu0 %v4035
        %4623 = vmatprep.subr.bf16.mxu0 %v4038
        %4624 = vmatpush1.bf16.msra.mxu0 %v4037
        %4625 = vmatprep.subr.bf16.mxu0 %v4040
        %4626 = vmatpush1.bf16.msra.mxu0 %v4039
        %4627 = vmatprep.subr.bf16.mxu0 %v4042
        %4628 = vmatpush1.bf16.msra.mxu0 %v4041
        %4629 = vmatprep.subr.bf16.mxu0 %v4044
        %4630 = vmatpush1.bf16.msra.mxu0 %v4043
        %4631 = vmatprep.subr.bf16.mxu0 %v4046
        %4632 = vmatpush1.bf16.msra.mxu0 %v4045
        %4633 = vmatprep.subr.bf16.mxu0 %v4048
        %4634 = vmatpush1.bf16.msra.mxu0 %v4047
        %4635 = vmatprep.subr.bf16.mxu0 %v4050
        %4636 = vmatpush1.bf16.msra.mxu0 %v4049
        %4637 = vmatprep.subr.bf16.mxu0 %v4052
        %4638 = vmatpush1.bf16.msra.mxu0 %v4051
        %4639 = vmatprep.subr.bf16.mxu0 %v4054
        %4640 = vmatpush1.bf16.msra.mxu0 %v4053
        %4641 = vmatprep.subr.bf16.mxu0 %v4056
        %4642 = vmatpush1.bf16.msra.mxu0 %v4055
        %4643 = vmatprep.subr.bf16.mxu0 %v4058
        %4644 = vmatpush1.bf16.msra.mxu0 %v4057
        %4645 = vmatprep.subr.bf16.mxu0 %v4060
        %4646 = vmatpush1.bf16.msra.mxu0 %v4059
        %4647 = vmatprep.mubr.bf16.mxu0 %v3020
        %4648 = vmatmul.mubr.bf16.gmra.mrb[0].mxu0 %v3018
        %v4649 = vpop.f32.mrb[0].mxu0
        %v4650 = vadd.f32 %v4609, %v4649
        %v4651 = vpop.f32.mrb[0].mxu0
        %v4652 = vadd.f32 %v4611, %v4651
        %v4653 = vpop.f32.mrb[0].mxu0
        %v4654 = vpop.f32.mrb[0].mxu0
        %4655 = vdwg.mxu0
        %v4656 = vmax.f32 %v4650, 0.0
        %v4657 = vmax.f32 %v4652, 0.0
        %v4658 = vpack.c.bf16 %v4656, %v4656
        %v4659 = vpack.c.bf16 %v4657, %v4657
        %v4660 = vld [vmem:[%s11] sm:$0xf]
        %v4661 = vld [vmem:[%s11 + $0x4] sm:$0xf]
        %v4662 = vld [vmem:[%s11 + $0x8] sm:$0xf]
        %v4663 = vld [vmem:[%s11 + $0xc] sm:$0xf]
        %v4664 = vld [vmem:[%s11 + $0x10] sm:$0xf]
        %v4665 = vld [vmem:[%s11 + $0x14] sm:$0xf]
        %v4666 = vld [vmem:[%s11 + $0x18] sm:$0xf]
        %v4667 = vld [vmem:[%s11 + $0x1c] sm:$0xf]
        %v4668 = vld [vmem:[%s11 + $0x20] sm:$0xf]
        %v4669 = vld [vmem:[%s11 + $0x24] sm:$0xf]
        %v4670 = vld [vmem:[%s11 + $0x28] sm:$0xf]
        %v4671 = vld [vmem:[%s11 + $0x2c] sm:$0xf]
        %v4672 = vld [vmem:[%s11 + $0x30] sm:$0xf]
        %v4673 = vld [vmem:[%s11 + $0x34] sm:$0xf]
        %v4674 = vld [vmem:[%s11 + $0x38] sm:$0xf]
        %v4675 = vld [vmem:[%s11 + $0x3c] sm:$0xf]
        %v4676 = vld [vmem:[%s11 + $0x40] sm:$0xf]
        %v4677 = vld [vmem:[%s11 + $0x44] sm:$0xf]
        %v4678 = vld [vmem:[%s11 + $0x48] sm:$0xf]
        %v4679 = vld [vmem:[%s11 + $0x4c] sm:$0xf]
        %v4680 = vld [vmem:[%s11 + $0x50] sm:$0xf]
        %v4681 = vld [vmem:[%s11 + $0x54] sm:$0xf]
        %v4682 = vld [vmem:[%s11 + $0x58] sm:$0xf]
        %v4683 = vld [vmem:[%s11 + $0x5c] sm:$0xf]
        %v4684 = vld [vmem:[%s11 + $0x60] sm:$0xf]
        %v4685 = vld [vmem:[%s11 + $0x64] sm:$0xf]
        %v4686 = vld [vmem:[%s11 + $0x68] sm:$0xf]
        %v4687 = vld [vmem:[%s11 + $0x6c] sm:$0xf]
        %v4688 = vld [vmem:[%s11 + $0x70] sm:$0xf]
        %v4689 = vld [vmem:[%s11 + $0x74] sm:$0xf]
        %v4690 = vld [vmem:[%s11 + $0x78] sm:$0xf]
        %v4691 = vld [vmem:[%s11 + $0x7c] sm:$0xf]
        %v4692 = vld [vmem:[%s12] sm:$0x1]
        %v4725 = vunpack.c.l.b16 %v4660
        %v4726 = vunpack.c.l.b16 %v4661
        %v4727 = vunpack.c.l.b16 %v4662
        %v4728 = vunpack.c.l.b16 %v4663
        %v4729 = vunpack.c.l.b16 %v4664
        %v4730 = vunpack.c.l.b16 %v4665
        %v4731 = vunpack.c.l.b16 %v4666
        %v4732 = vunpack.c.l.b16 %v4667
        %v4733 = vunpack.c.l.b16 %v4668
        %v4734 = vunpack.c.l.b16 %v4669
        %v4735 = vunpack.c.l.b16 %v4670
        %v4736 = vunpack.c.l.b16 %v4671
        %v4737 = vunpack.c.l.b16 %v4672
        %v4738 = vunpack.c.l.b16 %v4673
        %v4739 = vunpack.c.l.b16 %v4674
        %v4740 = vunpack.c.l.b16 %v4675
        %v4741 = vunpack.c.l.b16 %v4676
        %v4742 = vunpack.c.l.b16 %v4677
        %v4743 = vunpack.c.l.b16 %v4678
        %v4744 = vunpack.c.l.b16 %v4679
        %v4745 = vunpack.c.l.b16 %v4680
        %v4746 = vunpack.c.l.b16 %v4681
        %v4747 = vunpack.c.l.b16 %v4682
        %v4748 = vunpack.c.l.b16 %v4683
        %v4749 = vunpack.c.l.b16 %v4684
        %v4750 = vunpack.c.l.b16 %v4685
        %v4751 = vunpack.c.l.b16 %v4686
        %v4752 = vunpack.c.l.b16 %v4687
        %v4753 = vunpack.c.l.b16 %v4688
        %v4754 = vunpack.c.l.b16 %v4689
        %v4755 = vunpack.c.l.b16 %v4690
        %v4756 = vunpack.c.l.b16 %v4691
        %v4757 = vpack.c.b16 %v4726, %v4725
        %v4758 = vpack.c.b16 %v4728, %v4727
        %v4759 = vpack.c.b16 %v4730, %v4729
        %v4760 = vpack.c.b16 %v4732, %v4731
        %v4761 = vpack.c.b16 %v4734, %v4733
        %v4762 = vpack.c.b16 %v4736, %v4735
        %v4763 = vpack.c.b16 %v4738, %v4737
        %v4764 = vpack.c.b16 %v4740, %v4739
        %v4765 = vpack.c.b16 %v4742, %v4741
        %v4766 = vpack.c.b16 %v4744, %v4743
        %v4767 = vpack.c.b16 %v4746, %v4745
        %v4768 = vpack.c.b16 %v4748, %v4747
        %v4769 = vpack.c.b16 %v4750, %v4749
        %v4770 = vpack.c.b16 %v4752, %v4751
        %v4771 = vpack.c.b16 %v4754, %v4753
        %v4772 = vpack.c.b16 %v4756, %v4755
        %4789 = vmatprep.subr.bf16.mxu0 0
        %4790 = vmatpush1.bf16.msra.mxu0 %v4757
        %4791 = vmatprep.subr.bf16.mxu0 0
        %4792 = vmatpush1.bf16.msra.mxu0 %v4758
        %4793 = vmatprep.subr.bf16.mxu0 0
        %4794 = vmatpush1.bf16.msra.mxu0 %v4759
        %4795 = vmatprep.subr.bf16.mxu0 0
        %4796 = vmatpush1.bf16.msra.mxu0 %v4760
        %4797 = vmatprep.subr.bf16.mxu0 0
        %4798 = vmatpush1.bf16.msra.mxu0 %v4761
        %4799 = vmatprep.subr.bf16.mxu0 0
        %4800 = vmatpush1.bf16.msra.mxu0 %v4762
        %4801 = vmatprep.subr.bf16.mxu0 0
        %4802 = vmatpush1.bf16.msra.mxu0 %v4763
        %4803 = vmatprep.subr.bf16.mxu0 0
        %4804 = vmatpush1.bf16.msra.mxu0 %v4764
        %4805 = vmatprep.subr.bf16.mxu0 0
        %4806 = vmatpush1.bf16.msra.mxu0 %v4765
        %4807 = vmatprep.subr.bf16.mxu0 0
        %4808 = vmatpush1.bf16.msra.mxu0 %v4766
        %4809 = vmatprep.subr.bf16.mxu0 0
        %4810 = vmatpush1.bf16.msra.mxu0 %v4767
        %4811 = vmatprep.subr.bf16.mxu0 0
        %4812 = vmatpush1.bf16.msra.mxu0 %v4768
        %4813 = vmatprep.subr.bf16.mxu0 0
        %4814 = vmatpush1.bf16.msra.mxu0 %v4769
        %4815 = vmatprep.subr.bf16.mxu0 0
        %4816 = vmatpush1.bf16.msra.mxu0 %v4770
        %4817 = vmatprep.subr.bf16.mxu0 0
        %4818 = vmatpush1.bf16.msra.mxu0 %v4771
        %4819 = vmatprep.subr.bf16.mxu0 0
        %4820 = vmatpush1.bf16.msra.mxu0 %v4772
        %4821 = vmatprep.mubr.bf16.mxu0 %v4659
        %4822 = vmatmul.mubr.bf16.gmra.mrb[0].mxu0 %v4658
        %v4823 = vpop.f32.mrb[0].mxu0
        %v4824 = vadd.f32 %v4692, %v4823
        %v4825 = vpop.f32.mrb[0].mxu0
        %v4826 = vpop.f32.mrb[0].mxu0
        %v4827 = vpop.f32.mrb[0].mxu0
        %4828 = vdwg.mxu0
        %vm4829 = vcmask 73728
        %4830 = vst.msk [vmem:[%s434] sm:$0x1] %vm4829, %v4824
        %s4831 = sand.u32 %s315, 1
        %s4832 = scalar_lea.sflag [#allocation9], %s4831
        %s4833 = sand.u32 %s315, 1
        %s4834 = scalar_lea.vmem [#allocation8], %s4833
        // Predicated region
        $region73: #{forward.1} parent=71 // pred_check
          %p4835 = pneg %p325
        $region74: #{forward.1} parent=71 // pred_check_branch
          %4837 = sbr.rel (%p4835) target = $region76
        $region75: #{forward.1} parent=71 // pred_region
          %s4839 = ssub.s32 16, 16
          %4840 = vsyncadd %s4832, %s4839
          %s4841 = smul.addr %s29, 16
          %s4842 = scalar_lea.hbm %s13, %s4841
          %s4844 = sshll.u32 %s4834, 4
          %s4845 = int_to_ptr.vmem [resolvable:$true] %s4844
          %4847 = dma.vmem_to_hbm [thread:$0]  %s4845, 16, %s4842, %s4832
        $region76: #{forward.1} parent=71 // pred_fallthru
          _
      $region72: #{forward.1} parent=5 // pred_fallthru
        _
      %p4848 = scmp.le.s32.totalorder 2, %s24
      // Predicated region
      $region77: #{forward.1} parent=5 // pred_check
        %p4849 = pneg %p4848
      $region78: #{forward.1} parent=5 // pred_check_branch
        %4851 = sbr.rel (%p4849) target = $region80
      $region79: #{forward.1} parent=5 // pred_region
        %s4852 = ssub.s32 %s24, 2
        // Predicated region
        $region81: #{forward.1} parent=79 // pred_check
          %p4853 = pneg %p331
        $region82: #{forward.1} parent=79 // pred_check_branch
          %4855 = sbr.rel (%p4853) target = $region84
        $region83: #{forward.1} parent=79 // pred_region
          %s4856 = sand.u32 %s316, 1
          %s4857 = scalar_lea.sflag [#allocation9], %s4856
          %s4858 = sand.u32 %s316, 1
          %s4859 = scalar_lea.vmem [#allocation8], %s4858
          %4860 = dma.done %s4857, 16
        $region84: #{forward.1} parent=79 // pred_fallthru
          _
      $region80: #{forward.1} parent=5 // pred_fallthru
        _
    $region6: #{forward.1} parent=1 // loop_footer
      %s28 = sadd.s32 1, %s24
    $region7: #{forward.1} parent=1 // loop_footer_branch
      %23 = sbr.rel target = $region3
    $region8: #{forward.1} parent=1 // loop_exit
      _
    %4861 = vsyncpa [#allocation9], 1
    %s4862 = scalar_lea.sflag [#allocation9], 1
    %4863 = vsyncpa %s4862, 1

</llo_original>
